<compile_context>
chip_gen: v5e
topology: v5e:2x2
jax: 0.10.0
libtpu: 0.0.40
codegen_flags: <defaults>
</compile_context>

<pallas_src>
import functools
import math

import jax
import jax.numpy as jnp
from jax.experimental import pallas as pl
from jax.experimental.pallas import tpu as pltpu

_PER_LAYER = 18  # weight tensors per DecoderBlock (see prepare_decoder_params)


# ---------------------------------------------------------------------------
# In-kernel helpers (operate on loaded VMEM values)
# ---------------------------------------------------------------------------
def _linear_bf16(a, w):
    """y = a @ w.T with PyTorch (out, in) weight layout; bf16 operands, f32 acc."""
    return jax.lax.dot_general(
        a.astype(jnp.bfloat16), w,
        (((1,), (1,)), ((), ())), preferred_element_type=jnp.float32)


def _add_norm(x, y, gamma, beta):
    """LayerNorm(x + y) over the last dim (eps = 1e-5, PyTorch default), f32."""
    z = x + y
    mu = jnp.mean(z, axis=-1, keepdims=True)
    var = jnp.mean(jnp.square(z - mu), axis=-1, keepdims=True)
    return (z - mu) * jax.lax.rsqrt(var + jnp.float32(1e-5)) * gamma + beta


def _mha(xq, xkv, wq_r, wk_r, wv_r, wo_r, keep_mask, num_heads):
    """Head-batched multi-head attention for one batch element.

    xq: (Sq, H) f32, xkv: (Sk, H) f32.
    wq_r/wk_r/wv_r: (nh, H, dh) bf16, wo_r: (nh, dh, H) bf16 (pre-reshaped from
    the PyTorch (out, in) layout at setup time).
    keep_mask: (nh, Sq, Sk) bool; masked scores are set to the literal +1e-6
    used by the reference masked_softmax.
    """
    nh = num_heads
    sq, h = xq.shape
    sk = xkv.shape[0]
    dh = h // nh
    scale = jnp.float32(1.0 / math.sqrt(dh))

    xq_b = jnp.broadcast_to(xq.astype(jnp.bfloat16), (nh, sq, h))
    xkv_b = jnp.broadcast_to(xkv.astype(jnp.bfloat16), (nh, sk, h))

    def proj(a, w):  # (nh, S, H) x (nh, H, dh) -> (nh, S, dh), f32 accumulate
        return jax.lax.dot_general(
            a, w, (((2,), (1,)), ((0,), (0,))),
            preferred_element_type=jnp.float32)

    q = proj(xq_b, wq_r) * scale            # (nh, Sq, dh), 1/sqrt(d) folded in
    k = proj(xkv_b, wk_r)                   # (nh, Sk, dh)
    v = proj(xkv_b, wv_r)                   # (nh, Sk, dh)

    s = jax.lax.dot_general(                # (nh, Sq, Sk)
        q.astype(jnp.bfloat16), k.astype(jnp.bfloat16),
        (((2,), (2,)), ((0,), (0,))), preferred_element_type=jnp.float32)
    s = jnp.where(keep_mask, s, jnp.float32(1e-6))
    m = jnp.max(s, axis=-1, keepdims=True)
    e = jnp.exp(s - m)
    p = e * pl.reciprocal(jnp.sum(e, axis=-1, keepdims=True), approx=True)

    o = jax.lax.dot_general(                # (nh, Sq, dh)
        p.astype(jnp.bfloat16), v.astype(jnp.bfloat16),
        (((2,), (1,)), ((0,), (0,))), preferred_element_type=jnp.float32)
    oh = jax.lax.dot_general(               # (nh, Sq, H) — per-head W_o slice
        o.astype(jnp.bfloat16), wo_r,
        (((2,), (1,)), ((0,), (0,))), preferred_element_type=jnp.float32)
    return jnp.sum(oh, axis=0)              # sum heads == concat @ W_o.T


# ---------------------------------------------------------------------------
# Fused full-forward kernel (grid over batch)
# ---------------------------------------------------------------------------
def _fused_decoder_kernel(tok_sm, vl_sm,                 # scalar prefetch (SMEM)
                          enc_ref, emb_ref, pe_ref, *rest,
                          num_layers, num_heads):
    n_lw = num_layers * _PER_LAYER
    lw = rest[:n_lw]
    wd_ref, bd_ref = rest[n_lw], rest[n_lw + 1]
    out_ref = rest[n_lw + 2]
    x0_ref = rest[n_lw + 3]                               # VMEM scratch (S, H)

    b = pl.program_id(0)
    S = tok_sm.shape[1]
    H = emb_ref.shape[1]
    Se = enc_ref.shape[1]
    nh = num_heads

    # Embedding row gather (exact f32 rows) from the VMEM-resident table.
    for s in range(S):
        tok = tok_sm[b, s]
        x0_ref[pl.ds(s, 1), :] = emb_ref[pl.ds(tok, 1), :]
    # * sqrt(H) + PositionalEncoding quirk: the single PE row at index S
    # (PE[:, X.shape[1], :] in the module) is added to every position.
    x = x0_ref[...] * jnp.float32(math.sqrt(H)) + pe_ref[...]        # (S, H)

    enc = enc_ref[0]                                                 # (Se, H)

    # Masks built once per batch step, reused by every layer.
    qi = jax.lax.broadcasted_iota(jnp.int32, (nh, S, S), 1)
    kj = jax.lax.broadcasted_iota(jnp.int32, (nh, S, S), 2)
    self_keep = kj <= qi                    # causal: dec_valid_lens = [1..S]
    cj = jax.lax.broadcasted_iota(jnp.int32, (nh, S, Se), 2)
    cross_keep = cj < vl_sm[b]              # encoder valid lens

    for l in range(num_layers):
        (wq1, wk1, wv1, wo1, g1, b1, wq2, wk2, wv2, wo2, g2, b2,
         wf1, bf1, wf2, bf2, g3, b3) = lw[l * _PER_LAYER:(l + 1) * _PER_LAYER]

        # Self-attention + AddNorm1 (dropout p = 0 -> identity).
        x2 = _mha(x, x, wq1[...], wk1[...], wv1[...], wo1[...], self_keep, nh)
        y = _add_norm(x, x2, g1[...], b1[...])
        # Cross-attention + AddNorm2.
        y2 = _mha(y, enc, wq2[...], wk2[...], wv2[...], wo2[...], cross_keep, nh)
        z = _add_norm(y, y2, g2[...], b2[...])
        # Position-wise FFN + AddNorm3.
        f = jnp.maximum(_linear_bf16(z, wf1[...]) + bf1[...], 0.0)
        f = _linear_bf16(f, wf2[...]) + bf2[...]
        x = _add_norm(z, f, g3[...], b3[...])

    # Final vocab projection into a lane-dense (padded to 128) output slab.
    out_ref[0] = _linear_bf16(x, wd_ref[...]) + bd_ref[...]


# ---------------------------------------------------------------------------
# One-time parameter preparation (setup cost, outside the hot path)
# ---------------------------------------------------------------------------
def _split_heads_qkv(w, num_heads):
    """(H_out, H_in) torch Linear weight -> (nh, H_in, dh) bf16 head-major."""
    h_out, h_in = w.shape
    dh = h_out // num_heads
    return jnp.transpose(w.reshape(num_heads, dh, h_in), (0, 2, 1)).astype(
        jnp.bfloat16)


def _split_heads_out(w, num_heads):
    """(H_out, H_in = nh*dh) torch Linear weight -> (nh, dh, H_out) bf16."""
    h_out, h_in = w.shape
    dh = h_in // num_heads
    return jnp.transpose(w.reshape(h_out, num_heads, dh), (1, 2, 0)).astype(
        jnp.bfloat16)


def prepare_decoder_params(params, num_heads, lane=128):
    H = params["embedding"].shape[1]
    V = params["Wd"].shape[0]
    v_pad = ((V + lane - 1) // lane) * lane
    f32 = lambda a: jnp.asarray(a, jnp.float32)
    bf16 = lambda a: jnp.asarray(a, jnp.bfloat16)

    layer_weights = []
    for p in params["blocks"]:
        layer_weights += [
            _split_heads_qkv(p["Wq1"], num_heads),
            _split_heads_qkv(p["Wk1"], num_heads),
            _split_heads_qkv(p["Wv1"], num_heads),
            _split_heads_out(p["Wo1"], num_heads),
            f32(p["g1"]), f32(p["b1"]),
            _split_heads_qkv(p["Wq2"], num_heads),
            _split_heads_qkv(p["Wk2"], num_heads),
            _split_heads_qkv(p["Wv2"], num_heads),
            _split_heads_out(p["Wo2"], num_heads),
            f32(p["g2"]), f32(p["b2"]),
            bf16(p["Wf1"]), f32(p["bf1"]), bf16(p["Wf2"]), f32(p["bf2"]),
            f32(p["g3"]), f32(p["b3"]),
        ]
    assert len(layer_weights) == _PER_LAYER * len(params["blocks"])

    wd_pad = jnp.zeros((v_pad, H), jnp.float32).at[:V].set(
        params["Wd"]).astype(jnp.bfloat16)
    bd_pad = jnp.zeros((1, v_pad), jnp.float32).at[:, :V].set(params["bd"])

    return {
        "embedding": f32(params["embedding"]),
        "pe_row": f32(params["pe_row"]),
        "layer_weights": layer_weights,
        "wd_pad": wd_pad, "bd_pad": bd_pad,
        "num_layers": len(params["blocks"]), "num_heads": num_heads,
        "vocab": V, "vocab_pad": v_pad,
    }


# ---------------------------------------------------------------------------
# Full TransformerDecoder forward = ONE pallas_call
# ---------------------------------------------------------------------------
def transformer_decoder_forward(prep, tokens, enc_out, enc_valid_lens):
    B, S = tokens.shape
    _, Se, H = enc_out.shape
    v_pad = prep["vocab_pad"]
    lw = prep["layer_weights"]

    def const_spec(w):
        nd = w.ndim
        return pl.BlockSpec(w.shape, lambda i, *_: (0,) * nd)

    in_specs = [
        pl.BlockSpec((1, Se, H), lambda i, *_: (i, 0, 0)),   # enc_out (per batch)
        const_spec(prep["embedding"]),
        const_spec(prep["pe_row"]),
        *[const_spec(w) for w in lw],                        # VMEM-resident weights
        const_spec(prep["wd_pad"]),
        const_spec(prep["bd_pad"]),
    ]
    grid_spec = pltpu.PrefetchScalarGridSpec(
        num_scalar_prefetch=2,          # token ids + enc_valid_lens -> SMEM
        grid=(B,),                      # parallel batch axis: both TCs on v7x.
        # NOTE: on single-TC v5e/v6e this grid is a serial loop (~0.35 us/step);
        # folding B into the row dim would remove it, but would halve v7x.
        in_specs=in_specs,
        out_specs=pl.BlockSpec((1, S, v_pad), lambda i, *_: (i, 0, 0)),
        scratch_shapes=[pltpu.VMEM((S, H), jnp.float32)],
    )
    kern = functools.partial(_fused_decoder_kernel,
                             num_layers=prep["num_layers"],
                             num_heads=prep["num_heads"])
    logits_pad = pl.pallas_call(
        kern,
        out_shape=jax.ShapeDtypeStruct((B, S, v_pad), jnp.float32),
        grid_spec=grid_spec,
        compiler_params=pltpu.CompilerParams(
            dimension_semantics=("parallel",)),
    )(tokens.astype(jnp.int32), enc_valid_lens.astype(jnp.int32),
      enc_out.astype(jnp.float32), prep["embedding"], prep["pe_row"],
      *lw, prep["wd_pad"], prep["bd_pad"])
    return logits_pad[..., :prep["vocab"]]


# ---------------------------------------------------------------------------
# Pure-JAX reference mirroring the PyTorch module structure.  Matmul operands
# are rounded to bf16 (f32 accumulate) to mirror the kernel's declared MXU
# precision policy; all other math is f32.
# ---------------------------------------------------------------------------
def transpose_qkv(x, num_heads):
    B, S, H = x.shape
    x = x.reshape(B, S, num_heads, H // num_heads)
    x = jnp.transpose(x, (0, 2, 1, 3))
    return x.reshape(B * num_heads, S, H // num_heads)


def transpose_output(x, num_heads):
    BH, S, dh = x.shape
    x = x.reshape(BH // num_heads, num_heads, S, dh)
    x = jnp.transpose(x, (0, 2, 1, 3))
    return x.reshape(BH // num_heads, S, num_heads * dh)


def _bflin(a, w):
    return jnp.einsum("...i,oi->...o", a.astype(jnp.bfloat16),
                      w.astype(jnp.bfloat16),
                      preferred_element_type=jnp.float32)


def _ref_mha(q_in, k_in, v_in, valid_lens, Wq, Wk, Wv, Wo, num_heads):
    q = transpose_qkv(_bflin(q_in, Wq), num_heads)
    k = transpose_qkv(_bflin(k_in, Wk), num_heads)
    v = transpose_qkv(_bflin(v_in, Wv), num_heads)
    d = q.shape[-1]
    scores = jnp.einsum("bqd,bkd->bqk",
                        (q * (1.0 / math.sqrt(d))).astype(jnp.bfloat16),
                        k.astype(jnp.bfloat16),
                        preferred_element_type=jnp.float32)
    BH, Sq, Sk = scores.shape
    if valid_lens.ndim == 1:
        vl = jnp.repeat(valid_lens, num_heads, axis=0)
        vl = jnp.repeat(vl, Sq)
    else:
        vl = jnp.repeat(valid_lens, num_heads, axis=0).reshape(-1)
    col = jnp.arange(Sk)[None, :]
    flat = scores.reshape(-1, Sk)
    flat = jnp.where(col < vl[:, None], flat, jnp.float32(1e-6))
    attn = jax.nn.softmax(flat.reshape(BH, Sq, Sk), axis=-1)
    out = jnp.einsum("bqk,bkd->bqd", attn.astype(jnp.bfloat16),
                     v.astype(jnp.bfloat16),
                     preferred_element_type=jnp.float32)
    return _bflin(transpose_output(out, num_heads), Wo)


def _ref_layernorm(x, g, b):
    mu = jnp.mean(x, axis=-1, keepdims=True)
    var = jnp.mean(jnp.square(x - mu), axis=-1, keepdims=True)
    return (x - mu) / jnp.sqrt(var + 1e-5) * g + b


def reference_forward(params, tokens, enc_out, enc_valid_lens, num_heads):
    emb = params["embedding"]
    H = emb.shape[1]
    B, S = tokens.shape
    x = emb[tokens] * math.sqrt(H) + params["pe_row"]
    dec_vl = jnp.tile(jnp.arange(1, S + 1, dtype=jnp.int32), (B, 1))
    for p in params["blocks"]:
        x2 = _ref_mha(x, x, x, dec_vl,
                      p["Wq1"], p["Wk1"], p["Wv1"], p["Wo1"], num_heads)
        y = _ref_layernorm(x + x2, p["g1"], p["b1"])
        y2 = _ref_mha(y, enc_out, enc_out, enc_valid_lens,
                      p["Wq2"], p["Wk2"], p["Wv2"], p["Wo2"], num_heads)
        z = _ref_layernorm(y + y2, p["g2"], p["b2"])
        f = jnp.maximum(_bflin(z, p["Wf1"]) + p["bf1"], 0.0)
        f = _bflin(f, p["Wf2"]) + p["bf2"]
        x = _ref_layernorm(z + f, p["g3"], p["b3"])
    return _bflin(x, params["Wd"]) + params["bd"]


# ---------------------------------------------------------------------------
if __name__ == "__main__":
    key = jax.random.PRNGKey(0)

    B, S, Se = 2, 8, 8
    vocab_size = 100
    num_hiddens, num_heads = 32, 4
    ffn_num_hiddens = 64
    num_layers = 2
    # dropout prob = 0.0 -> nn.Dropout is the identity (deterministic forward)

    keys = iter(jax.random.split(key, 64))

    def rnd(shape, s=0.1):
        return jax.random.normal(next(keys), shape, jnp.float32) * s

    blocks = []
    for _ in range(num_layers):
        blocks.append({
            "Wq1": rnd((num_hiddens, num_hiddens)),
            "Wk1": rnd((num_hiddens, num_hiddens)),
            "Wv1": rnd((num_hiddens, num_hiddens)),
            "Wo1": rnd((num_hiddens, num_hiddens)),
            "g1": 1.0 + rnd((1, num_hiddens)), "b1": rnd((1, num_hiddens)),
            "Wq2": rnd((num_hiddens, num_hiddens)),
            "Wk2": rnd((num_hiddens, num_hiddens)),
            "Wv2": rnd((num_hiddens, num_hiddens)),
            "Wo2": rnd((num_hiddens, num_hiddens)),
            "g2": 1.0 + rnd((1, num_hiddens)), "b2": rnd((1, num_hiddens)),
            "Wf1": rnd((ffn_num_hiddens, num_hiddens)),
            "bf1": rnd((1, ffn_num_hiddens)),
            "Wf2": rnd((num_hiddens, ffn_num_hiddens)),
            "bf2": rnd((1, num_hiddens)),
            "g3": 1.0 + rnd((1, num_hiddens)), "b3": rnd((1, num_hiddens)),
        })

    embedding = jax.random.normal(next(keys), (vocab_size, num_hiddens),
                                  jnp.float32)
    Wd = rnd((vocab_size, num_hiddens))
    bd = rnd((1, vocab_size))

    # Positional-encoding row: replicate the module's PE[:, X.shape[1], :]
    # quirk — the single PE row at index S, added to every position.
    ang = jnp.float32(S) / jnp.power(
        1000.0, jnp.arange(0, num_hiddens, 2, dtype=jnp.float32) / num_hiddens)
    pe_row = jnp.zeros((num_hiddens,), jnp.float32)
    pe_row = pe_row.at[0::2].set(jnp.sin(ang)).at[1::2].set(jnp.cos(ang))
    pe_row = pe_row.reshape(1, num_hiddens)

    params = {"embedding": embedding, "pe_row": pe_row, "Wd": Wd, "bd": bd,
              "blocks": blocks}

    tokens = jax.random.randint(next(keys), (B, S), 0, vocab_size,
                                dtype=jnp.int32)
    enc_out = jax.random.normal(next(keys), (B, Se, num_hiddens), jnp.float32)
    enc_valid_lens = jnp.array([3, 6], dtype=jnp.int32)

    prep = prepare_decoder_params(params, num_heads)
    out = transformer_decoder_forward(prep, tokens, enc_out, enc_valid_lens)
    out = jax.block_until_ready(out)
    assert out.shape == (B, S, vocab_size)

    ref = reference_forward(params, tokens, enc_out, enc_valid_lens, num_heads)
    max_err = float(jnp.max(jnp.abs(out - ref)))
    # Tolerance covers the approx-reciprocal softmax denominator and the
    # accumulation-order differences between MXU and XLA matmuls.
    assert jnp.allclose(out, ref, atol=3e-2, rtol=3e-2), max_err

    print("KERNEL_OK")
</pallas_src>

<mosaic_0001>
module attributes {stable_mosaic.version = 11 : i64} {
  func.func @_fused_decoder_kernel(%arg0: i32, %arg1: memref<2x8xi32, #tpu.memory_space<smem>>, %arg2: memref<2xi32, #tpu.memory_space<smem>>, %arg3: memref<1x8x32xf32, #tpu.memory_space<vmem>>, %arg4: memref<100x32xf32, #tpu.memory_space<vmem>>, %arg5: memref<1x32xf32, #tpu.memory_space<vmem>>, %arg6: memref<4x32x8xbf16, #tpu.memory_space<vmem>>, %arg7: memref<4x32x8xbf16, #tpu.memory_space<vmem>>, %arg8: memref<4x32x8xbf16, #tpu.memory_space<vmem>>, %arg9: memref<4x8x32xbf16, #tpu.memory_space<vmem>>, %arg10: memref<1x32xf32, #tpu.memory_space<vmem>>, %arg11: memref<1x32xf32, #tpu.memory_space<vmem>>, %arg12: memref<4x32x8xbf16, #tpu.memory_space<vmem>>, %arg13: memref<4x32x8xbf16, #tpu.memory_space<vmem>>, %arg14: memref<4x32x8xbf16, #tpu.memory_space<vmem>>, %arg15: memref<4x8x32xbf16, #tpu.memory_space<vmem>>, %arg16: memref<1x32xf32, #tpu.memory_space<vmem>>, %arg17: memref<1x32xf32, #tpu.memory_space<vmem>>, %arg18: memref<64x32xbf16, #tpu.memory_space<vmem>>, %arg19: memref<1x64xf32, #tpu.memory_space<vmem>>, %arg20: memref<32x64xbf16, #tpu.memory_space<vmem>>, %arg21: memref<1x32xf32, #tpu.memory_space<vmem>>, %arg22: memref<1x32xf32, #tpu.memory_space<vmem>>, %arg23: memref<1x32xf32, #tpu.memory_space<vmem>>, %arg24: memref<4x32x8xbf16, #tpu.memory_space<vmem>>, %arg25: memref<4x32x8xbf16, #tpu.memory_space<vmem>>, %arg26: memref<4x32x8xbf16, #tpu.memory_space<vmem>>, %arg27: memref<4x8x32xbf16, #tpu.memory_space<vmem>>, %arg28: memref<1x32xf32, #tpu.memory_space<vmem>>, %arg29: memref<1x32xf32, #tpu.memory_space<vmem>>, %arg30: memref<4x32x8xbf16, #tpu.memory_space<vmem>>, %arg31: memref<4x32x8xbf16, #tpu.memory_space<vmem>>, %arg32: memref<4x32x8xbf16, #tpu.memory_space<vmem>>, %arg33: memref<4x8x32xbf16, #tpu.memory_space<vmem>>, %arg34: memref<1x32xf32, #tpu.memory_space<vmem>>, %arg35: memref<1x32xf32, #tpu.memory_space<vmem>>, %arg36: memref<64x32xbf16, #tpu.memory_space<vmem>>, %arg37: memref<1x64xf32, #tpu.memory_space<vmem>>, %arg38: memref<32x64xbf16, #tpu.memory_space<vmem>>, %arg39: memref<1x32xf32, #tpu.memory_space<vmem>>, %arg40: memref<1x32xf32, #tpu.memory_space<vmem>>, %arg41: memref<1x32xf32, #tpu.memory_space<vmem>>, %arg42: memref<128x32xbf16, #tpu.memory_space<vmem>>, %arg43: memref<1x128xf32, #tpu.memory_space<vmem>>, %arg44: memref<1x8x128xf32, #tpu.memory_space<vmem>>, %arg45: memref<8x32xf32, #tpu.memory_space<vmem>>) attributes {dimension_semantics = [#tpu.dimension_semantics<parallel>], iteration_bounds = array<i64: 2>, scalar_prefetch = 2 : i64, scratch_operands = 1 : i64, tpu.core_type = #tpu.core_type<tc>, window_params = [{transform_indices = @transform_0, window_bounds = array<i64: 1, 8, 32>}, {pipeline_mode = #tpu.pipeline_mode<synchronous>, transform_indices = @transform_1, window_bounds = array<i64: 100, 32>}, {pipeline_mode = #tpu.pipeline_mode<synchronous>, transform_indices = @transform_2, window_bounds = array<i64: 1, 32>}, {pipeline_mode = #tpu.pipeline_mode<synchronous>, transform_indices = @transform_3, window_bounds = array<i64: 4, 32, 8>}, {pipeline_mode = #tpu.pipeline_mode<synchronous>, transform_indices = @transform_4, window_bounds = array<i64: 4, 32, 8>}, {pipeline_mode = #tpu.pipeline_mode<synchronous>, transform_indices = @transform_5, window_bounds = array<i64: 4, 32, 8>}, {pipeline_mode = #tpu.pipeline_mode<synchronous>, transform_indices = @transform_6, window_bounds = array<i64: 4, 8, 32>}, {pipeline_mode = #tpu.pipeline_mode<synchronous>, transform_indices = @transform_7, window_bounds = array<i64: 1, 32>}, {pipeline_mode = #tpu.pipeline_mode<synchronous>, transform_indices = @transform_8, window_bounds = array<i64: 1, 32>}, {pipeline_mode = #tpu.pipeline_mode<synchronous>, transform_indices = @transform_9, window_bounds = array<i64: 4, 32, 8>}, {pipeline_mode = #tpu.pipeline_mode<synchronous>, transform_indices = @transform_10, window_bounds = array<i64: 4, 32, 8>}, {pipeline_mode = #tpu.pipeline_mode<synchronous>, transform_indices = @transform_11, window_bounds = array<i64: 4, 32, 8>}, {pipeline_mode = #tpu.pipeline_mode<synchronous>, transform_indices = @transform_12, window_bounds = array<i64: 4, 8, 32>}, {pipeline_mode = #tpu.pipeline_mode<synchronous>, transform_indices = @transform_13, window_bounds = array<i64: 1, 32>}, {pipeline_mode = #tpu.pipeline_mode<synchronous>, transform_indices = @transform_14, window_bounds = array<i64: 1, 32>}, {pipeline_mode = #tpu.pipeline_mode<synchronous>, transform_indices = @transform_15, window_bounds = array<i64: 64, 32>}, {pipeline_mode = #tpu.pipeline_mode<synchronous>, transform_indices = @transform_16, window_bounds = array<i64: 1, 64>}, {pipeline_mode = #tpu.pipeline_mode<synchronous>, transform_indices = @transform_17, window_bounds = array<i64: 32, 64>}, {pipeline_mode = #tpu.pipeline_mode<synchronous>, transform_indices = @transform_18, window_bounds = array<i64: 1, 32>}, {pipeline_mode = #tpu.pipeline_mode<synchronous>, transform_indices = @transform_19, window_bounds = array<i64: 1, 32>}, {pipeline_mode = #tpu.pipeline_mode<synchronous>, transform_indices = @transform_20, window_bounds = array<i64: 1, 32>}, {pipeline_mode = #tpu.pipeline_mode<synchronous>, transform_indices = @transform_21, window_bounds = array<i64: 4, 32, 8>}, {pipeline_mode = #tpu.pipeline_mode<synchronous>, transform_indices = @transform_22, window_bounds = array<i64: 4, 32, 8>}, {pipeline_mode = #tpu.pipeline_mode<synchronous>, transform_indices = @transform_23, window_bounds = array<i64: 4, 32, 8>}, {pipeline_mode = #tpu.pipeline_mode<synchronous>, transform_indices = @transform_24, window_bounds = array<i64: 4, 8, 32>}, {pipeline_mode = #tpu.pipeline_mode<synchronous>, transform_indices = @transform_25, window_bounds = array<i64: 1, 32>}, {pipeline_mode = #tpu.pipeline_mode<synchronous>, transform_indices = @transform_26, window_bounds = array<i64: 1, 32>}, {pipeline_mode = #tpu.pipeline_mode<synchronous>, transform_indices = @transform_27, window_bounds = array<i64: 4, 32, 8>}, {pipeline_mode = #tpu.pipeline_mode<synchronous>, transform_indices = @transform_28, window_bounds = array<i64: 4, 32, 8>}, {pipeline_mode = #tpu.pipeline_mode<synchronous>, transform_indices = @transform_29, window_bounds = array<i64: 4, 32, 8>}, {pipeline_mode = #tpu.pipeline_mode<synchronous>, transform_indices = @transform_30, window_bounds = array<i64: 4, 8, 32>}, {pipeline_mode = #tpu.pipeline_mode<synchronous>, transform_indices = @transform_31, window_bounds = array<i64: 1, 32>}, {pipeline_mode = #tpu.pipeline_mode<synchronous>, transform_indices = @transform_32, window_bounds = array<i64: 1, 32>}, {pipeline_mode = #tpu.pipeline_mode<synchronous>, transform_indices = @transform_33, window_bounds = array<i64: 64, 32>}, {pipeline_mode = #tpu.pipeline_mode<synchronous>, transform_indices = @transform_34, window_bounds = array<i64: 1, 64>}, {pipeline_mode = #tpu.pipeline_mode<synchronous>, transform_indices = @transform_35, window_bounds = array<i64: 32, 64>}, {pipeline_mode = #tpu.pipeline_mode<synchronous>, transform_indices = @transform_36, window_bounds = array<i64: 1, 32>}, {pipeline_mode = #tpu.pipeline_mode<synchronous>, transform_indices = @transform_37, window_bounds = array<i64: 1, 32>}, {pipeline_mode = #tpu.pipeline_mode<synchronous>, transform_indices = @transform_38, window_bounds = array<i64: 1, 32>}, {pipeline_mode = #tpu.pipeline_mode<synchronous>, transform_indices = @transform_39, window_bounds = array<i64: 128, 32>}, {pipeline_mode = #tpu.pipeline_mode<synchronous>, transform_indices = @transform_40, window_bounds = array<i64: 1, 128>}, {transform_indices = @transform_41, window_bounds = array<i64: 1, 8, 128>}]} {
    %0 = arith.index_cast %arg0 : i32 to index
    %c0 = arith.constant 0 : index
    %1 = memref.load %arg1[%0, %c0] : memref<2x8xi32, #tpu.memory_space<smem>>
    %2 = arith.index_cast %1 : i32 to index
    %c0_0 = arith.constant 0 : index
    %3 = vector.load %arg4[%2, %c0_0] : memref<100x32xf32, #tpu.memory_space<vmem>>, vector<1x32xf32>
    %c0_1 = arith.constant 0 : index
    %c0_2 = arith.constant 0 : index
    %4 = vector.load %arg45[%c0_1, %c0_2] : memref<8x32xf32, #tpu.memory_space<vmem>>, vector<1x32xf32>
    tpu.vector_store %arg45[%c0_1, %c0_2], %3 {strides = array<i32>} : memref<8x32xf32, #tpu.memory_space<vmem>>, vector<1x32xf32>,
    %5 = arith.index_cast %arg0 : i32 to index
    %c1 = arith.constant 1 : index
    %6 = memref.load %arg1[%5, %c1] : memref<2x8xi32, #tpu.memory_space<smem>>
    %7 = arith.index_cast %6 : i32 to index
    %c0_3 = arith.constant 0 : index
    %8 = vector.load %arg4[%7, %c0_3] : memref<100x32xf32, #tpu.memory_space<vmem>>, vector<1x32xf32>
    %c1_4 = arith.constant 1 : index
    %c0_5 = arith.constant 0 : index
    %9 = vector.load %arg45[%c1_4, %c0_5] : memref<8x32xf32, #tpu.memory_space<vmem>>, vector<1x32xf32>
    tpu.vector_store %arg45[%c1_4, %c0_5], %8 {strides = array<i32>} : memref<8x32xf32, #tpu.memory_space<vmem>>, vector<1x32xf32>,
    %10 = arith.index_cast %arg0 : i32 to index
    %c2 = arith.constant 2 : index
    %11 = memref.load %arg1[%10, %c2] : memref<2x8xi32, #tpu.memory_space<smem>>
    %12 = arith.index_cast %11 : i32 to index
    %c0_6 = arith.constant 0 : index
    %13 = vector.load %arg4[%12, %c0_6] : memref<100x32xf32, #tpu.memory_space<vmem>>, vector<1x32xf32>
    %c2_7 = arith.constant 2 : index
    %c0_8 = arith.constant 0 : index
    %14 = vector.load %arg45[%c2_7, %c0_8] : memref<8x32xf32, #tpu.memory_space<vmem>>, vector<1x32xf32>
    tpu.vector_store %arg45[%c2_7, %c0_8], %13 {strides = array<i32>} : memref<8x32xf32, #tpu.memory_space<vmem>>, vector<1x32xf32>,
    %15 = arith.index_cast %arg0 : i32 to index
    %c3 = arith.constant 3 : index
    %16 = memref.load %arg1[%15, %c3] : memref<2x8xi32, #tpu.memory_space<smem>>
    %17 = arith.index_cast %16 : i32 to index
    %c0_9 = arith.constant 0 : index
    %18 = vector.load %arg4[%17, %c0_9] : memref<100x32xf32, #tpu.memory_space<vmem>>, vector<1x32xf32>
    %c3_10 = arith.constant 3 : index
    %c0_11 = arith.constant 0 : index
    %19 = vector.load %arg45[%c3_10, %c0_11] : memref<8x32xf32, #tpu.memory_space<vmem>>, vector<1x32xf32>
    tpu.vector_store %arg45[%c3_10, %c0_11], %18 {strides = array<i32>} : memref<8x32xf32, #tpu.memory_space<vmem>>, vector<1x32xf32>,
    %20 = arith.index_cast %arg0 : i32 to index
    %c4 = arith.constant 4 : index
    %21 = memref.load %arg1[%20, %c4] : memref<2x8xi32, #tpu.memory_space<smem>>
    %22 = arith.index_cast %21 : i32 to index
    %c0_12 = arith.constant 0 : index
    %23 = vector.load %arg4[%22, %c0_12] : memref<100x32xf32, #tpu.memory_space<vmem>>, vector<1x32xf32>
    %c4_13 = arith.constant 4 : index
    %c0_14 = arith.constant 0 : index
    %24 = vector.load %arg45[%c4_13, %c0_14] : memref<8x32xf32, #tpu.memory_space<vmem>>, vector<1x32xf32>
    tpu.vector_store %arg45[%c4_13, %c0_14], %23 {strides = array<i32>} : memref<8x32xf32, #tpu.memory_space<vmem>>, vector<1x32xf32>,
    %25 = arith.index_cast %arg0 : i32 to index
    %c5 = arith.constant 5 : index
    %26 = memref.load %arg1[%25, %c5] : memref<2x8xi32, #tpu.memory_space<smem>>
    %27 = arith.index_cast %26 : i32 to index
    %c0_15 = arith.constant 0 : index
    %28 = vector.load %arg4[%27, %c0_15] : memref<100x32xf32, #tpu.memory_space<vmem>>, vector<1x32xf32>
    %c5_16 = arith.constant 5 : index
    %c0_17 = arith.constant 0 : index
    %29 = vector.load %arg45[%c5_16, %c0_17] : memref<8x32xf32, #tpu.memory_space<vmem>>, vector<1x32xf32>
    tpu.vector_store %arg45[%c5_16, %c0_17], %28 {strides = array<i32>} : memref<8x32xf32, #tpu.memory_space<vmem>>, vector<1x32xf32>,
    %30 = arith.index_cast %arg0 : i32 to index
    %c6 = arith.constant 6 : index
    %31 = memref.load %arg1[%30, %c6] : memref<2x8xi32, #tpu.memory_space<smem>>
    %32 = arith.index_cast %31 : i32 to index
    %c0_18 = arith.constant 0 : index
    %33 = vector.load %arg4[%32, %c0_18] : memref<100x32xf32, #tpu.memory_space<vmem>>, vector<1x32xf32>
    %c6_19 = arith.constant 6 : index
    %c0_20 = arith.constant 0 : index
    %34 = vector.load %arg45[%c6_19, %c0_20] : memref<8x32xf32, #tpu.memory_space<vmem>>, vector<1x32xf32>
    tpu.vector_store %arg45[%c6_19, %c0_20], %33 {strides = array<i32>} : memref<8x32xf32, #tpu.memory_space<vmem>>, vector<1x32xf32>,
    %35 = arith.index_cast %arg0 : i32 to index
    %c7 = arith.constant 7 : index
    %36 = memref.load %arg1[%35, %c7] : memref<2x8xi32, #tpu.memory_space<smem>>
    %37 = arith.index_cast %36 : i32 to index
    %c0_21 = arith.constant 0 : index
    %38 = vector.load %arg4[%37, %c0_21] : memref<100x32xf32, #tpu.memory_space<vmem>>, vector<1x32xf32>
    %c7_22 = arith.constant 7 : index
    %c0_23 = arith.constant 0 : index
    %39 = vector.load %arg45[%c7_22, %c0_23] : memref<8x32xf32, #tpu.memory_space<vmem>>, vector<1x32xf32>
    tpu.vector_store %arg45[%c7_22, %c0_23], %38 {strides = array<i32>} : memref<8x32xf32, #tpu.memory_space<vmem>>, vector<1x32xf32>,
    %c0_24 = arith.constant 0 : index
    %c0_25 = arith.constant 0 : index
    %40 = vector.load %arg45[%c0_24, %c0_25] : memref<8x32xf32, #tpu.memory_space<vmem>>, vector<8x32xf32>
    %cst = arith.constant 5.65685415 : f32
    %41 = vector.broadcast %cst : f32 to vector<8x32xf32>
    %42 = arith.mulf %40, %41 : vector<8x32xf32>
    %c0_26 = arith.constant 0 : index
    %c0_27 = arith.constant 0 : index
    %43 = vector.load %arg5[%c0_26, %c0_27] : memref<1x32xf32, #tpu.memory_space<vmem>>, vector<1x32xf32>
    %44 = vector.broadcast %43 : vector<1x32xf32> to vector<8x32xf32>
    %45 = arith.addf %42, %44 : vector<8x32xf32>
    %c0_28 = arith.constant 0 : index
    %c0_29 = arith.constant 0 : index
    %c0_30 = arith.constant 0 : index
    %46 = vector.load %arg3[%c0_28, %c0_29, %c0_30] : memref<1x8x32xf32, #tpu.memory_space<vmem>>, vector<1x8x32xf32>
    %47 = vector.shape_cast %46 : vector<1x8x32xf32> to vector<8x32xf32>
    %48 = tpu.iota {dimensions = array<i32: 1>} : vector<4x8x8xi32>
    %49 = tpu.iota {dimensions = array<i32: 2>} : vector<4x8x8xi32>
    %50 = arith.cmpi sle, %49, %48 : vector<4x8x8xi32>
    %51 = tpu.iota {dimensions = array<i32: 2>} : vector<4x8x8xi32>
    %52 = arith.index_cast %arg0 : i32 to index
    %53 = memref.load %arg2[%52] : memref<2xi32, #tpu.memory_space<smem>>
    %54 = vector.broadcast %53 : i32 to vector<4x8x8xi32>
    %55 = arith.cmpi slt, %51, %54 : vector<4x8x8xi32>
    %c0_31 = arith.constant 0 : index
    %c0_32 = arith.constant 0 : index
    %c0_33 = arith.constant 0 : index
    %56 = vector.load %arg6[%c0_31, %c0_32, %c0_33] : memref<4x32x8xbf16, #tpu.memory_space<vmem>>, vector<4x32x8xbf16>
    %c0_34 = arith.constant 0 : index
    %c0_35 = arith.constant 0 : index
    %c0_36 = arith.constant 0 : index
    %57 = vector.load %arg7[%c0_34, %c0_35, %c0_36] : memref<4x32x8xbf16, #tpu.memory_space<vmem>>, vector<4x32x8xbf16>
    %c0_37 = arith.constant 0 : index
    %c0_38 = arith.constant 0 : index
    %c0_39 = arith.constant 0 : index
    %58 = vector.load %arg8[%c0_37, %c0_38, %c0_39] : memref<4x32x8xbf16, #tpu.memory_space<vmem>>, vector<4x32x8xbf16>
    %c0_40 = arith.constant 0 : index
    %c0_41 = arith.constant 0 : index
    %c0_42 = arith.constant 0 : index
    %59 = vector.load %arg9[%c0_40, %c0_41, %c0_42] : memref<4x8x32xbf16, #tpu.memory_space<vmem>>, vector<4x8x32xbf16>
    %60 = arith.truncf %45 : vector<8x32xf32> to vector<8x32xbf16>
    %61 = vector.shape_cast %60 : vector<8x32xbf16> to vector<1x8x32xbf16>
    %62 = vector.broadcast %61 : vector<1x8x32xbf16> to vector<4x8x32xbf16>
    %63 = arith.truncf %45 : vector<8x32xf32> to vector<8x32xbf16>
    %64 = vector.shape_cast %63 : vector<8x32xbf16> to vector<1x8x32xbf16>
    %65 = vector.broadcast %64 : vector<1x8x32xbf16> to vector<4x8x32xbf16>
    %cst_43 = arith.constant dense<0.000000e+00> : vector<4x8x8xf32>
    %66 = tpu.matmul %62, %56, %cst_43 {dimension_numbers = #tpu.dot_dimension_numbers<[2], [1], [1], [2], [0, 0, 0, 1, 1, 2], [0], [0]>} : vector<4x8x32xbf16>, vector<4x32x8xbf16>, vector<4x8x8xf32> -> vector<4x8x8xf32>
    %cst_44 = arith.constant 0.353553385 : f32
    %67 = vector.broadcast %cst_44 : f32 to vector<4x8x8xf32>
    %68 = arith.mulf %66, %67 : vector<4x8x8xf32>
    %cst_45 = arith.constant dense<0.000000e+00> : vector<4x8x8xf32>
    %69 = tpu.matmul %65, %57, %cst_45 {dimension_numbers = #tpu.dot_dimension_numbers<[2], [1], [1], [2], [0, 0, 0, 1, 1, 2], [0], [0]>} : vector<4x8x32xbf16>, vector<4x32x8xbf16>, vector<4x8x8xf32> -> vector<4x8x8xf32>
    %cst_46 = arith.constant dense<0.000000e+00> : vector<4x8x8xf32>
    %70 = tpu.matmul %65, %58, %cst_46 {dimension_numbers = #tpu.dot_dimension_numbers<[2], [1], [1], [2], [0, 0, 0, 1, 1, 2], [0], [0]>} : vector<4x8x32xbf16>, vector<4x32x8xbf16>, vector<4x8x8xf32> -> vector<4x8x8xf32>
    %71 = arith.truncf %68 : vector<4x8x8xf32> to vector<4x8x8xbf16>
    %72 = arith.truncf %69 : vector<4x8x8xf32> to vector<4x8x8xbf16>
    %cst_47 = arith.constant dense<0.000000e+00> : vector<4x8x8xf32>
    %73 = tpu.matmul %71, %72, %cst_47 {dimension_numbers = #tpu.dot_dimension_numbers<[2], [2], [1], [1], [0, 0, 0, 1, 1, 1], [0], [0]>} : vector<4x8x8xbf16>, vector<4x8x8xbf16>, vector<4x8x8xf32> -> vector<4x8x8xf32>
    %cst_48 = arith.constant 9.99999997E-7 : f32
    %74 = vector.broadcast %cst_48 : f32 to vector<4x8x8xf32>
    %75 = arith.select %50, %73, %74 : vector<4x8x8xi1>, vector<4x8x8xf32>
    %cst_49 = arith.constant dense<0xFF800000> : vector<4x8xf32>
    %76 = vector.multi_reduction <maximumf>, %75, %cst_49 [2] : vector<4x8x8xf32> to vector<4x8xf32>
    %77 = vector.shape_cast %76 : vector<4x8xf32> to vector<4x8x1xf32>
    %78 = vector.broadcast %77 : vector<4x8x1xf32> to vector<4x8x8xf32>
    %79 = arith.subf %75, %78 : vector<4x8x8xf32>
    %80 = math.exp %79 : vector<4x8x8xf32>
    %cst_50 = arith.constant dense<0.000000e+00> : vector<4x8xf32>
    %81 = vector.multi_reduction <add>, %80, %cst_50 [2] : vector<4x8x8xf32> to vector<4x8xf32>
    %82 = vector.shape_cast %81 : vector<4x8xf32> to vector<4x8x1xf32>
    %83 = tpu.reciprocal %82 {approx = true} : vector<4x8x1xf32> -> vector<4x8x1xf32>
    %84 = vector.broadcast %83 : vector<4x8x1xf32> to vector<4x8x8xf32>
    %85 = arith.mulf %80, %84 : vector<4x8x8xf32>
    %86 = arith.truncf %85 : vector<4x8x8xf32> to vector<4x8x8xbf16>
    %87 = arith.truncf %70 : vector<4x8x8xf32> to vector<4x8x8xbf16>
    %cst_51 = arith.constant dense<0.000000e+00> : vector<4x8x8xf32>
    %88 = tpu.matmul %86, %87, %cst_51 {dimension_numbers = #tpu.dot_dimension_numbers<[2], [1], [1], [2], [0, 0, 0, 1, 1, 2], [0], [0]>} : vector<4x8x8xbf16>, vector<4x8x8xbf16>, vector<4x8x8xf32> -> vector<4x8x8xf32>
    %89 = arith.truncf %88 : vector<4x8x8xf32> to vector<4x8x8xbf16>
    %cst_52 = arith.constant dense<0.000000e+00> : vector<4x8x32xf32>
    %90 = tpu.matmul %89, %59, %cst_52 {dimension_numbers = #tpu.dot_dimension_numbers<[2], [1], [1], [2], [0, 0, 0, 1, 1, 2], [0], [0]>} : vector<4x8x8xbf16>, vector<4x8x32xbf16>, vector<4x8x32xf32> -> vector<4x8x32xf32>
    %cst_53 = arith.constant dense<0.000000e+00> : vector<8x32xf32>
    %91 = vector.multi_reduction <add>, %90, %cst_53 [0] : vector<4x8x32xf32> to vector<8x32xf32>
    %c0_54 = arith.constant 0 : index
    %c0_55 = arith.constant 0 : index
    %92 = vector.load %arg10[%c0_54, %c0_55] : memref<1x32xf32, #tpu.memory_space<vmem>>, vector<1x32xf32>
    %c0_56 = arith.constant 0 : index
    %c0_57 = arith.constant 0 : index
    %93 = vector.load %arg11[%c0_56, %c0_57] : memref<1x32xf32, #tpu.memory_space<vmem>>, vector<1x32xf32>
    %94 = arith.addf %45, %91 : vector<8x32xf32>
    %cst_58 = arith.constant dense<0.000000e+00> : vector<8xf32>
    %95 = vector.multi_reduction <add>, %94, %cst_58 [1] : vector<8x32xf32> to vector<8xf32>
    %96 = vector.shape_cast %95 : vector<8xf32> to vector<8x1xf32>
    %cst_59 = arith.constant 3.200000e+01 : f32
    %97 = vector.broadcast %cst_59 : f32 to vector<8x1xf32>
    %98 = arith.divf %96, %97 : vector<8x1xf32>
    %99 = vector.broadcast %98 : vector<8x1xf32> to vector<8x32xf32>
    %100 = arith.subf %94, %99 : vector<8x32xf32>
    %101 = arith.mulf %100, %100 : vector<8x32xf32>
    %cst_60 = arith.constant dense<0.000000e+00> : vector<8xf32>
    %102 = vector.multi_reduction <add>, %101, %cst_60 [1] : vector<8x32xf32> to vector<8xf32>
    %103 = vector.shape_cast %102 : vector<8xf32> to vector<8x1xf32>
    %cst_61 = arith.constant 3.200000e+01 : f32
    %104 = vector.broadcast %cst_61 : f32 to vector<8x1xf32>
    %105 = arith.divf %103, %104 : vector<8x1xf32>
    %106 = vector.broadcast %98 : vector<8x1xf32> to vector<8x32xf32>
    %107 = arith.subf %94, %106 : vector<8x32xf32>
    %cst_62 = arith.constant 9.99999974E-6 : f32
    %108 = vector.broadcast %cst_62 : f32 to vector<8x1xf32>
    %109 = arith.addf %105, %108 : vector<8x1xf32>
    %110 = math.rsqrt %109 : vector<8x1xf32>
    %111 = vector.broadcast %110 : vector<8x1xf32> to vector<8x32xf32>
    %112 = arith.mulf %107, %111 : vector<8x32xf32>
    %113 = vector.broadcast %92 : vector<1x32xf32> to vector<8x32xf32>
    %114 = arith.mulf %112, %113 : vector<8x32xf32>
    %115 = vector.broadcast %93 : vector<1x32xf32> to vector<8x32xf32>
    %116 = arith.addf %114, %115 : vector<8x32xf32>
    %c0_63 = arith.constant 0 : index
    %c0_64 = arith.constant 0 : index
    %c0_65 = arith.constant 0 : index
    %117 = vector.load %arg12[%c0_63, %c0_64, %c0_65] : memref<4x32x8xbf16, #tpu.memory_space<vmem>>, vector<4x32x8xbf16>
    %c0_66 = arith.constant 0 : index
    %c0_67 = arith.constant 0 : index
    %c0_68 = arith.constant 0 : index
    %118 = vector.load %arg13[%c0_66, %c0_67, %c0_68] : memref<4x32x8xbf16, #tpu.memory_space<vmem>>, vector<4x32x8xbf16>
    %c0_69 = arith.constant 0 : index
    %c0_70 = arith.constant 0 : index
    %c0_71 = arith.constant 0 : index
    %119 = vector.load %arg14[%c0_69, %c0_70, %c0_71] : memref<4x32x8xbf16, #tpu.memory_space<vmem>>, vector<4x32x8xbf16>
    %c0_72 = arith.constant 0 : index
    %c0_73 = arith.constant 0 : index
    %c0_74 = arith.constant 0 : index
    %120 = vector.load %arg15[%c0_72, %c0_73, %c0_74] : memref<4x8x32xbf16, #tpu.memory_space<vmem>>, vector<4x8x32xbf16>
    %121 = arith.truncf %116 : vector<8x32xf32> to vector<8x32xbf16>
    %122 = vector.shape_cast %121 : vector<8x32xbf16> to vector<1x8x32xbf16>
    %123 = vector.broadcast %122 : vector<1x8x32xbf16> to vector<4x8x32xbf16>
    %124 = arith.truncf %47 : vector<8x32xf32> to vector<8x32xbf16>
    %125 = vector.shape_cast %124 : vector<8x32xbf16> to vector<1x8x32xbf16>
    %126 = vector.broadcast %125 : vector<1x8x32xbf16> to vector<4x8x32xbf16>
    %cst_75 = arith.constant dense<0.000000e+00> : vector<4x8x8xf32>
    %127 = tpu.matmul %123, %117, %cst_75 {dimension_numbers = #tpu.dot_dimension_numbers<[2], [1], [1], [2], [0, 0, 0, 1, 1, 2], [0], [0]>} : vector<4x8x32xbf16>, vector<4x32x8xbf16>, vector<4x8x8xf32> -> vector<4x8x8xf32>
    %cst_76 = arith.constant 0.353553385 : f32
    %128 = vector.broadcast %cst_76 : f32 to vector<4x8x8xf32>
    %129 = arith.mulf %127, %128 : vector<4x8x8xf32>
    %cst_77 = arith.constant dense<0.000000e+00> : vector<4x8x8xf32>
    %130 = tpu.matmul %126, %118, %cst_77 {dimension_numbers = #tpu.dot_dimension_numbers<[2], [1], [1], [2], [0, 0, 0, 1, 1, 2], [0], [0]>} : vector<4x8x32xbf16>, vector<4x32x8xbf16>, vector<4x8x8xf32> -> vector<4x8x8xf32>
    %cst_78 = arith.constant dense<0.000000e+00> : vector<4x8x8xf32>
    %131 = tpu.matmul %126, %119, %cst_78 {dimension_numbers = #tpu.dot_dimension_numbers<[2], [1], [1], [2], [0, 0, 0, 1, 1, 2], [0], [0]>} : vector<4x8x32xbf16>, vector<4x32x8xbf16>, vector<4x8x8xf32> -> vector<4x8x8xf32>
    %132 = arith.truncf %129 : vector<4x8x8xf32> to vector<4x8x8xbf16>
    %133 = arith.truncf %130 : vector<4x8x8xf32> to vector<4x8x8xbf16>
    %cst_79 = arith.constant dense<0.000000e+00> : vector<4x8x8xf32>
    %134 = tpu.matmul %132, %133, %cst_79 {dimension_numbers = #tpu.dot_dimension_numbers<[2], [2], [1], [1], [0, 0, 0, 1, 1, 1], [0], [0]>} : vector<4x8x8xbf16>, vector<4x8x8xbf16>, vector<4x8x8xf32> -> vector<4x8x8xf32>
    %cst_80 = arith.constant 9.99999997E-7 : f32
    %135 = vector.broadcast %cst_80 : f32 to vector<4x8x8xf32>
    %136 = arith.select %55, %134, %135 : vector<4x8x8xi1>, vector<4x8x8xf32>
    %cst_81 = arith.constant dense<0xFF800000> : vector<4x8xf32>
    %137 = vector.multi_reduction <maximumf>, %136, %cst_81 [2] : vector<4x8x8xf32> to vector<4x8xf32>
    %138 = vector.shape_cast %137 : vector<4x8xf32> to vector<4x8x1xf32>
    %139 = vector.broadcast %138 : vector<4x8x1xf32> to vector<4x8x8xf32>
    %140 = arith.subf %136, %139 : vector<4x8x8xf32>
    %141 = math.exp %140 : vector<4x8x8xf32>
    %cst_82 = arith.constant dense<0.000000e+00> : vector<4x8xf32>
    %142 = vector.multi_reduction <add>, %141, %cst_82 [2] : vector<4x8x8xf32> to vector<4x8xf32>
    %143 = vector.shape_cast %142 : vector<4x8xf32> to vector<4x8x1xf32>
    %144 = tpu.reciprocal %143 {approx = true} : vector<4x8x1xf32> -> vector<4x8x1xf32>
    %145 = vector.broadcast %144 : vector<4x8x1xf32> to vector<4x8x8xf32>
    %146 = arith.mulf %141, %145 : vector<4x8x8xf32>
    %147 = arith.truncf %146 : vector<4x8x8xf32> to vector<4x8x8xbf16>
    %148 = arith.truncf %131 : vector<4x8x8xf32> to vector<4x8x8xbf16>
    %cst_83 = arith.constant dense<0.000000e+00> : vector<4x8x8xf32>
    %149 = tpu.matmul %147, %148, %cst_83 {dimension_numbers = #tpu.dot_dimension_numbers<[2], [1], [1], [2], [0, 0, 0, 1, 1, 2], [0], [0]>} : vector<4x8x8xbf16>, vector<4x8x8xbf16>, vector<4x8x8xf32> -> vector<4x8x8xf32>
    %150 = arith.truncf %149 : vector<4x8x8xf32> to vector<4x8x8xbf16>
    %cst_84 = arith.constant dense<0.000000e+00> : vector<4x8x32xf32>
    %151 = tpu.matmul %150, %120, %cst_84 {dimension_numbers = #tpu.dot_dimension_numbers<[2], [1], [1], [2], [0, 0, 0, 1, 1, 2], [0], [0]>} : vector<4x8x8xbf16>, vector<4x8x32xbf16>, vector<4x8x32xf32> -> vector<4x8x32xf32>
    %cst_85 = arith.constant dense<0.000000e+00> : vector<8x32xf32>
    %152 = vector.multi_reduction <add>, %151, %cst_85 [0] : vector<4x8x32xf32> to vector<8x32xf32>
    %c0_86 = arith.constant 0 : index
    %c0_87 = arith.constant 0 : index
    %153 = vector.load %arg16[%c0_86, %c0_87] : memref<1x32xf32, #tpu.memory_space<vmem>>, vector<1x32xf32>
    %c0_88 = arith.constant 0 : index
    %c0_89 = arith.constant 0 : index
    %154 = vector.load %arg17[%c0_88, %c0_89] : memref<1x32xf32, #tpu.memory_space<vmem>>, vector<1x32xf32>
    %155 = arith.addf %116, %152 : vector<8x32xf32>
    %cst_90 = arith.constant dense<0.000000e+00> : vector<8xf32>
    %156 = vector.multi_reduction <add>, %155, %cst_90 [1] : vector<8x32xf32> to vector<8xf32>
    %157 = vector.shape_cast %156 : vector<8xf32> to vector<8x1xf32>
    %cst_91 = arith.constant 3.200000e+01 : f32
    %158 = vector.broadcast %cst_91 : f32 to vector<8x1xf32>
    %159 = arith.divf %157, %158 : vector<8x1xf32>
    %160 = vector.broadcast %159 : vector<8x1xf32> to vector<8x32xf32>
    %161 = arith.subf %155, %160 : vector<8x32xf32>
    %162 = arith.mulf %161, %161 : vector<8x32xf32>
    %cst_92 = arith.constant dense<0.000000e+00> : vector<8xf32>
    %163 = vector.multi_reduction <add>, %162, %cst_92 [1] : vector<8x32xf32> to vector<8xf32>
    %164 = vector.shape_cast %163 : vector<8xf32> to vector<8x1xf32>
    %cst_93 = arith.constant 3.200000e+01 : f32
    %165 = vector.broadcast %cst_93 : f32 to vector<8x1xf32>
    %166 = arith.divf %164, %165 : vector<8x1xf32>
    %167 = vector.broadcast %159 : vector<8x1xf32> to vector<8x32xf32>
    %168 = arith.subf %155, %167 : vector<8x32xf32>
    %cst_94 = arith.constant 9.99999974E-6 : f32
    %169 = vector.broadcast %cst_94 : f32 to vector<8x1xf32>
    %170 = arith.addf %166, %169 : vector<8x1xf32>
    %171 = math.rsqrt %170 : vector<8x1xf32>
    %172 = vector.broadcast %171 : vector<8x1xf32> to vector<8x32xf32>
    %173 = arith.mulf %168, %172 : vector<8x32xf32>
    %174 = vector.broadcast %153 : vector<1x32xf32> to vector<8x32xf32>
    %175 = arith.mulf %173, %174 : vector<8x32xf32>
    %176 = vector.broadcast %154 : vector<1x32xf32> to vector<8x32xf32>
    %177 = arith.addf %175, %176 : vector<8x32xf32>
    %c0_95 = arith.constant 0 : index
    %c0_96 = arith.constant 0 : index
    %178 = vector.load %arg18[%c0_95, %c0_96] : memref<64x32xbf16, #tpu.memory_space<vmem>>, vector<64x32xbf16>
    %179 = arith.truncf %177 : vector<8x32xf32> to vector<8x32xbf16>
    %cst_97 = arith.constant dense<0.000000e+00> : vector<8x64xf32>
    %180 = tpu.matmul %179, %178, %cst_97 {dimension_numbers = #tpu.dot_dimension_numbers<[1], [1], [0], [0], [0, 0, 1, 0], [], []>} : vector<8x32xbf16>, vector<64x32xbf16>, vector<8x64xf32> -> vector<8x64xf32>
    %c0_98 = arith.constant 0 : index
    %c0_99 = arith.constant 0 : index
    %181 = vector.load %arg19[%c0_98, %c0_99] : memref<1x64xf32, #tpu.memory_space<vmem>>, vector<1x64xf32>
    %182 = vector.broadcast %181 : vector<1x64xf32> to vector<8x64xf32>
    %183 = arith.addf %180, %182 : vector<8x64xf32>
    %cst_100 = arith.constant 0.000000e+00 : f32
    %184 = vector.broadcast %cst_100 : f32 to vector<8x64xf32>
    %185 = arith.maximumf %183, %184 : vector<8x64xf32>
    %c0_101 = arith.constant 0 : index
    %c0_102 = arith.constant 0 : index
    %186 = vector.load %arg20[%c0_101, %c0_102] : memref<32x64xbf16, #tpu.memory_space<vmem>>, vector<32x64xbf16>
    %187 = arith.truncf %185 : vector<8x64xf32> to vector<8x64xbf16>
    %cst_103 = arith.constant dense<0.000000e+00> : vector<8x32xf32>
    %188 = tpu.matmul %187, %186, %cst_103 {dimension_numbers = #tpu.dot_dimension_numbers<[1], [1], [0], [0], [0, 0, 1, 0], [], []>} : vector<8x64xbf16>, vector<32x64xbf16>, vector<8x32xf32> -> vector<8x32xf32>
    %c0_104 = arith.constant 0 : index
    %c0_105 = arith.constant 0 : index
    %189 = vector.load %arg21[%c0_104, %c0_105] : memref<1x32xf32, #tpu.memory_space<vmem>>, vector<1x32xf32>
    %190 = vector.broadcast %189 : vector<1x32xf32> to vector<8x32xf32>
    %191 = arith.addf %188, %190 : vector<8x32xf32>
    %c0_106 = arith.constant 0 : index
    %c0_107 = arith.constant 0 : index
    %192 = vector.load %arg22[%c0_106, %c0_107] : memref<1x32xf32, #tpu.memory_space<vmem>>, vector<1x32xf32>
    %c0_108 = arith.constant 0 : index
    %c0_109 = arith.constant 0 : index
    %193 = vector.load %arg23[%c0_108, %c0_109] : memref<1x32xf32, #tpu.memory_space<vmem>>, vector<1x32xf32>
    %194 = arith.addf %177, %191 : vector<8x32xf32>
    %cst_110 = arith.constant dense<0.000000e+00> : vector<8xf32>
    %195 = vector.multi_reduction <add>, %194, %cst_110 [1] : vector<8x32xf32> to vector<8xf32>
    %196 = vector.shape_cast %195 : vector<8xf32> to vector<8x1xf32>
    %cst_111 = arith.constant 3.200000e+01 : f32
    %197 = vector.broadcast %cst_111 : f32 to vector<8x1xf32>
    %198 = arith.divf %196, %197 : vector<8x1xf32>
    %199 = vector.broadcast %198 : vector<8x1xf32> to vector<8x32xf32>
    %200 = arith.subf %194, %199 : vector<8x32xf32>
    %201 = arith.mulf %200, %200 : vector<8x32xf32>
    %cst_112 = arith.constant dense<0.000000e+00> : vector<8xf32>
    %202 = vector.multi_reduction <add>, %201, %cst_112 [1] : vector<8x32xf32> to vector<8xf32>
    %203 = vector.shape_cast %202 : vector<8xf32> to vector<8x1xf32>
    %cst_113 = arith.constant 3.200000e+01 : f32
    %204 = vector.broadcast %cst_113 : f32 to vector<8x1xf32>
    %205 = arith.divf %203, %204 : vector<8x1xf32>
    %206 = vector.broadcast %198 : vector<8x1xf32> to vector<8x32xf32>
    %207 = arith.subf %194, %206 : vector<8x32xf32>
    %cst_114 = arith.constant 9.99999974E-6 : f32
    %208 = vector.broadcast %cst_114 : f32 to vector<8x1xf32>
    %209 = arith.addf %205, %208 : vector<8x1xf32>
    %210 = math.rsqrt %209 : vector<8x1xf32>
    %211 = vector.broadcast %210 : vector<8x1xf32> to vector<8x32xf32>
    %212 = arith.mulf %207, %211 : vector<8x32xf32>
    %213 = vector.broadcast %192 : vector<1x32xf32> to vector<8x32xf32>
    %214 = arith.mulf %212, %213 : vector<8x32xf32>
    %215 = vector.broadcast %193 : vector<1x32xf32> to vector<8x32xf32>
    %216 = arith.addf %214, %215 : vector<8x32xf32>
    %c0_115 = arith.constant 0 : index
    %c0_116 = arith.constant 0 : index
    %c0_117 = arith.constant 0 : index
    %217 = vector.load %arg24[%c0_115, %c0_116, %c0_117] : memref<4x32x8xbf16, #tpu.memory_space<vmem>>, vector<4x32x8xbf16>
    %c0_118 = arith.constant 0 : index
    %c0_119 = arith.constant 0 : index
    %c0_120 = arith.constant 0 : index
    %218 = vector.load %arg25[%c0_118, %c0_119, %c0_120] : memref<4x32x8xbf16, #tpu.memory_space<vmem>>, vector<4x32x8xbf16>
    %c0_121 = arith.constant 0 : index
    %c0_122 = arith.constant 0 : index
    %c0_123 = arith.constant 0 : index
    %219 = vector.load %arg26[%c0_121, %c0_122, %c0_123] : memref<4x32x8xbf16, #tpu.memory_space<vmem>>, vector<4x32x8xbf16>
    %c0_124 = arith.constant 0 : index
    %c0_125 = arith.constant 0 : index
    %c0_126 = arith.constant 0 : index
    %220 = vector.load %arg27[%c0_124, %c0_125, %c0_126] : memref<4x8x32xbf16, #tpu.memory_space<vmem>>, vector<4x8x32xbf16>
    %221 = arith.truncf %216 : vector<8x32xf32> to vector<8x32xbf16>
    %222 = vector.shape_cast %221 : vector<8x32xbf16> to vector<1x8x32xbf16>
    %223 = vector.broadcast %222 : vector<1x8x32xbf16> to vector<4x8x32xbf16>
    %224 = arith.truncf %216 : vector<8x32xf32> to vector<8x32xbf16>
    %225 = vector.shape_cast %224 : vector<8x32xbf16> to vector<1x8x32xbf16>
    %226 = vector.broadcast %225 : vector<1x8x32xbf16> to vector<4x8x32xbf16>
    %cst_127 = arith.constant dense<0.000000e+00> : vector<4x8x8xf32>
    %227 = tpu.matmul %223, %217, %cst_127 {dimension_numbers = #tpu.dot_dimension_numbers<[2], [1], [1], [2], [0, 0, 0, 1, 1, 2], [0], [0]>} : vector<4x8x32xbf16>, vector<4x32x8xbf16>, vector<4x8x8xf32> -> vector<4x8x8xf32>
    %cst_128 = arith.constant 0.353553385 : f32
    %228 = vector.broadcast %cst_128 : f32 to vector<4x8x8xf32>
    %229 = arith.mulf %227, %228 : vector<4x8x8xf32>
    %cst_129 = arith.constant dense<0.000000e+00> : vector<4x8x8xf32>
    %230 = tpu.matmul %226, %218, %cst_129 {dimension_numbers = #tpu.dot_dimension_numbers<[2], [1], [1], [2], [0, 0, 0, 1, 1, 2], [0], [0]>} : vector<4x8x32xbf16>, vector<4x32x8xbf16>, vector<4x8x8xf32> -> vector<4x8x8xf32>
    %cst_130 = arith.constant dense<0.000000e+00> : vector<4x8x8xf32>
    %231 = tpu.matmul %226, %219, %cst_130 {dimension_numbers = #tpu.dot_dimension_numbers<[2], [1], [1], [2], [0, 0, 0, 1, 1, 2], [0], [0]>} : vector<4x8x32xbf16>, vector<4x32x8xbf16>, vector<4x8x8xf32> -> vector<4x8x8xf32>
    %232 = arith.truncf %229 : vector<4x8x8xf32> to vector<4x8x8xbf16>
    %233 = arith.truncf %230 : vector<4x8x8xf32> to vector<4x8x8xbf16>
    %cst_131 = arith.constant dense<0.000000e+00> : vector<4x8x8xf32>
    %234 = tpu.matmul %232, %233, %cst_131 {dimension_numbers = #tpu.dot_dimension_numbers<[2], [2], [1], [1], [0, 0, 0, 1, 1, 1], [0], [0]>} : vector<4x8x8xbf16>, vector<4x8x8xbf16>, vector<4x8x8xf32> -> vector<4x8x8xf32>
    %cst_132 = arith.constant 9.99999997E-7 : f32
    %235 = vector.broadcast %cst_132 : f32 to vector<4x8x8xf32>
    %236 = arith.select %50, %234, %235 : vector<4x8x8xi1>, vector<4x8x8xf32>
    %cst_133 = arith.constant dense<0xFF800000> : vector<4x8xf32>
    %237 = vector.multi_reduction <maximumf>, %236, %cst_133 [2] : vector<4x8x8xf32> to vector<4x8xf32>
    %238 = vector.shape_cast %237 : vector<4x8xf32> to vector<4x8x1xf32>
    %239 = vector.broadcast %238 : vector<4x8x1xf32> to vector<4x8x8xf32>
    %240 = arith.subf %236, %239 : vector<4x8x8xf32>
    %241 = math.exp %240 : vector<4x8x8xf32>
    %cst_134 = arith.constant dense<0.000000e+00> : vector<4x8xf32>
    %242 = vector.multi_reduction <add>, %241, %cst_134 [2] : vector<4x8x8xf32> to vector<4x8xf32>
    %243 = vector.shape_cast %242 : vector<4x8xf32> to vector<4x8x1xf32>
    %244 = tpu.reciprocal %243 {approx = true} : vector<4x8x1xf32> -> vector<4x8x1xf32>
    %245 = vector.broadcast %244 : vector<4x8x1xf32> to vector<4x8x8xf32>
    %246 = arith.mulf %241, %245 : vector<4x8x8xf32>
    %247 = arith.truncf %246 : vector<4x8x8xf32> to vector<4x8x8xbf16>
    %248 = arith.truncf %231 : vector<4x8x8xf32> to vector<4x8x8xbf16>
    %cst_135 = arith.constant dense<0.000000e+00> : vector<4x8x8xf32>
    %249 = tpu.matmul %247, %248, %cst_135 {dimension_numbers = #tpu.dot_dimension_numbers<[2], [1], [1], [2], [0, 0, 0, 1, 1, 2], [0], [0]>} : vector<4x8x8xbf16>, vector<4x8x8xbf16>, vector<4x8x8xf32> -> vector<4x8x8xf32>
    %250 = arith.truncf %249 : vector<4x8x8xf32> to vector<4x8x8xbf16>
    %cst_136 = arith.constant dense<0.000000e+00> : vector<4x8x32xf32>
    %251 = tpu.matmul %250, %220, %cst_136 {dimension_numbers = #tpu.dot_dimension_numbers<[2], [1], [1], [2], [0, 0, 0, 1, 1, 2], [0], [0]>} : vector<4x8x8xbf16>, vector<4x8x32xbf16>, vector<4x8x32xf32> -> vector<4x8x32xf32>
    %cst_137 = arith.constant dense<0.000000e+00> : vector<8x32xf32>
    %252 = vector.multi_reduction <add>, %251, %cst_137 [0] : vector<4x8x32xf32> to vector<8x32xf32>
    %c0_138 = arith.constant 0 : index
    %c0_139 = arith.constant 0 : index
    %253 = vector.load %arg28[%c0_138, %c0_139] : memref<1x32xf32, #tpu.memory_space<vmem>>, vector<1x32xf32>
    %c0_140 = arith.constant 0 : index
    %c0_141 = arith.constant 0 : index
    %254 = vector.load %arg29[%c0_140, %c0_141] : memref<1x32xf32, #tpu.memory_space<vmem>>, vector<1x32xf32>
    %255 = arith.addf %216, %252 : vector<8x32xf32>
    %cst_142 = arith.constant dense<0.000000e+00> : vector<8xf32>
    %256 = vector.multi_reduction <add>, %255, %cst_142 [1] : vector<8x32xf32> to vector<8xf32>
    %257 = vector.shape_cast %256 : vector<8xf32> to vector<8x1xf32>
    %cst_143 = arith.constant 3.200000e+01 : f32
    %258 = vector.broadcast %cst_143 : f32 to vector<8x1xf32>
    %259 = arith.divf %257, %258 : vector<8x1xf32>
    %260 = vector.broadcast %259 : vector<8x1xf32> to vector<8x32xf32>
    %261 = arith.subf %255, %260 : vector<8x32xf32>
    %262 = arith.mulf %261, %261 : vector<8x32xf32>
    %cst_144 = arith.constant dense<0.000000e+00> : vector<8xf32>
    %263 = vector.multi_reduction <add>, %262, %cst_144 [1] : vector<8x32xf32> to vector<8xf32>
    %264 = vector.shape_cast %263 : vector<8xf32> to vector<8x1xf32>
    %cst_145 = arith.constant 3.200000e+01 : f32
    %265 = vector.broadcast %cst_145 : f32 to vector<8x1xf32>
    %266 = arith.divf %264, %265 : vector<8x1xf32>
    %267 = vector.broadcast %259 : vector<8x1xf32> to vector<8x32xf32>
    %268 = arith.subf %255, %267 : vector<8x32xf32>
    %cst_146 = arith.constant 9.99999974E-6 : f32
    %269 = vector.broadcast %cst_146 : f32 to vector<8x1xf32>
    %270 = arith.addf %266, %269 : vector<8x1xf32>
    %271 = math.rsqrt %270 : vector<8x1xf32>
    %272 = vector.broadcast %271 : vector<8x1xf32> to vector<8x32xf32>
    %273 = arith.mulf %268, %272 : vector<8x32xf32>
    %274 = vector.broadcast %253 : vector<1x32xf32> to vector<8x32xf32>
    %275 = arith.mulf %273, %274 : vector<8x32xf32>
    %276 = vector.broadcast %254 : vector<1x32xf32> to vector<8x32xf32>
    %277 = arith.addf %275, %276 : vector<8x32xf32>
    %c0_147 = arith.constant 0 : index
    %c0_148 = arith.constant 0 : index
    %c0_149 = arith.constant 0 : index
    %278 = vector.load %arg30[%c0_147, %c0_148, %c0_149] : memref<4x32x8xbf16, #tpu.memory_space<vmem>>, vector<4x32x8xbf16>
    %c0_150 = arith.constant 0 : index
    %c0_151 = arith.constant 0 : index
    %c0_152 = arith.constant 0 : index
    %279 = vector.load %arg31[%c0_150, %c0_151, %c0_152] : memref<4x32x8xbf16, #tpu.memory_space<vmem>>, vector<4x32x8xbf16>
    %c0_153 = arith.constant 0 : index
    %c0_154 = arith.constant 0 : index
    %c0_155 = arith.constant 0 : index
    %280 = vector.load %arg32[%c0_153, %c0_154, %c0_155] : memref<4x32x8xbf16, #tpu.memory_space<vmem>>, vector<4x32x8xbf16>
    %c0_156 = arith.constant 0 : index
    %c0_157 = arith.constant 0 : index
    %c0_158 = arith.constant 0 : index
    %281 = vector.load %arg33[%c0_156, %c0_157, %c0_158] : memref<4x8x32xbf16, #tpu.memory_space<vmem>>, vector<4x8x32xbf16>
    %282 = arith.truncf %277 : vector<8x32xf32> to vector<8x32xbf16>
    %283 = vector.shape_cast %282 : vector<8x32xbf16> to vector<1x8x32xbf16>
    %284 = vector.broadcast %283 : vector<1x8x32xbf16> to vector<4x8x32xbf16>
    %285 = arith.truncf %47 : vector<8x32xf32> to vector<8x32xbf16>
    %286 = vector.shape_cast %285 : vector<8x32xbf16> to vector<1x8x32xbf16>
    %287 = vector.broadcast %286 : vector<1x8x32xbf16> to vector<4x8x32xbf16>
    %cst_159 = arith.constant dense<0.000000e+00> : vector<4x8x8xf32>
    %288 = tpu.matmul %284, %278, %cst_159 {dimension_numbers = #tpu.dot_dimension_numbers<[2], [1], [1], [2], [0, 0, 0, 1, 1, 2], [0], [0]>} : vector<4x8x32xbf16>, vector<4x32x8xbf16>, vector<4x8x8xf32> -> vector<4x8x8xf32>
    %cst_160 = arith.constant 0.353553385 : f32
    %289 = vector.broadcast %cst_160 : f32 to vector<4x8x8xf32>
    %290 = arith.mulf %288, %289 : vector<4x8x8xf32>
    %cst_161 = arith.constant dense<0.000000e+00> : vector<4x8x8xf32>
    %291 = tpu.matmul %287, %279, %cst_161 {dimension_numbers = #tpu.dot_dimension_numbers<[2], [1], [1], [2], [0, 0, 0, 1, 1, 2], [0], [0]>} : vector<4x8x32xbf16>, vector<4x32x8xbf16>, vector<4x8x8xf32> -> vector<4x8x8xf32>
    %cst_162 = arith.constant dense<0.000000e+00> : vector<4x8x8xf32>
    %292 = tpu.matmul %287, %280, %cst_162 {dimension_numbers = #tpu.dot_dimension_numbers<[2], [1], [1], [2], [0, 0, 0, 1, 1, 2], [0], [0]>} : vector<4x8x32xbf16>, vector<4x32x8xbf16>, vector<4x8x8xf32> -> vector<4x8x8xf32>
    %293 = arith.truncf %290 : vector<4x8x8xf32> to vector<4x8x8xbf16>
    %294 = arith.truncf %291 : vector<4x8x8xf32> to vector<4x8x8xbf16>
    %cst_163 = arith.constant dense<0.000000e+00> : vector<4x8x8xf32>
    %295 = tpu.matmul %293, %294, %cst_163 {dimension_numbers = #tpu.dot_dimension_numbers<[2], [2], [1], [1], [0, 0, 0, 1, 1, 1], [0], [0]>} : vector<4x8x8xbf16>, vector<4x8x8xbf16>, vector<4x8x8xf32> -> vector<4x8x8xf32>
    %cst_164 = arith.constant 9.99999997E-7 : f32
    %296 = vector.broadcast %cst_164 : f32 to vector<4x8x8xf32>
    %297 = arith.select %55, %295, %296 : vector<4x8x8xi1>, vector<4x8x8xf32>
    %cst_165 = arith.constant dense<0xFF800000> : vector<4x8xf32>
    %298 = vector.multi_reduction <maximumf>, %297, %cst_165 [2] : vector<4x8x8xf32> to vector<4x8xf32>
    %299 = vector.shape_cast %298 : vector<4x8xf32> to vector<4x8x1xf32>
    %300 = vector.broadcast %299 : vector<4x8x1xf32> to vector<4x8x8xf32>
    %301 = arith.subf %297, %300 : vector<4x8x8xf32>
    %302 = math.exp %301 : vector<4x8x8xf32>
    %cst_166 = arith.constant dense<0.000000e+00> : vector<4x8xf32>
    %303 = vector.multi_reduction <add>, %302, %cst_166 [2] : vector<4x8x8xf32> to vector<4x8xf32>
    %304 = vector.shape_cast %303 : vector<4x8xf32> to vector<4x8x1xf32>
    %305 = tpu.reciprocal %304 {approx = true} : vector<4x8x1xf32> -> vector<4x8x1xf32>
    %306 = vector.broadcast %305 : vector<4x8x1xf32> to vector<4x8x8xf32>
    %307 = arith.mulf %302, %306 : vector<4x8x8xf32>
    %308 = arith.truncf %307 : vector<4x8x8xf32> to vector<4x8x8xbf16>
    %309 = arith.truncf %292 : vector<4x8x8xf32> to vector<4x8x8xbf16>
    %cst_167 = arith.constant dense<0.000000e+00> : vector<4x8x8xf32>
    %310 = tpu.matmul %308, %309, %cst_167 {dimension_numbers = #tpu.dot_dimension_numbers<[2], [1], [1], [2], [0, 0, 0, 1, 1, 2], [0], [0]>} : vector<4x8x8xbf16>, vector<4x8x8xbf16>, vector<4x8x8xf32> -> vector<4x8x8xf32>
    %311 = arith.truncf %310 : vector<4x8x8xf32> to vector<4x8x8xbf16>
    %cst_168 = arith.constant dense<0.000000e+00> : vector<4x8x32xf32>
    %312 = tpu.matmul %311, %281, %cst_168 {dimension_numbers = #tpu.dot_dimension_numbers<[2], [1], [1], [2], [0, 0, 0, 1, 1, 2], [0], [0]>} : vector<4x8x8xbf16>, vector<4x8x32xbf16>, vector<4x8x32xf32> -> vector<4x8x32xf32>
    %cst_169 = arith.constant dense<0.000000e+00> : vector<8x32xf32>
    %313 = vector.multi_reduction <add>, %312, %cst_169 [0] : vector<4x8x32xf32> to vector<8x32xf32>
    %c0_170 = arith.constant 0 : index
    %c0_171 = arith.constant 0 : index
    %314 = vector.load %arg34[%c0_170, %c0_171] : memref<1x32xf32, #tpu.memory_space<vmem>>, vector<1x32xf32>
    %c0_172 = arith.constant 0 : index
    %c0_173 = arith.constant 0 : index
    %315 = vector.load %arg35[%c0_172, %c0_173] : memref<1x32xf32, #tpu.memory_space<vmem>>, vector<1x32xf32>
    %316 = arith.addf %277, %313 : vector<8x32xf32>
    %cst_174 = arith.constant dense<0.000000e+00> : vector<8xf32>
    %317 = vector.multi_reduction <add>, %316, %cst_174 [1] : vector<8x32xf32> to vector<8xf32>
    %318 = vector.shape_cast %317 : vector<8xf32> to vector<8x1xf32>
    %cst_175 = arith.constant 3.200000e+01 : f32
    %319 = vector.broadcast %cst_175 : f32 to vector<8x1xf32>
    %320 = arith.divf %318, %319 : vector<8x1xf32>
    %321 = vector.broadcast %320 : vector<8x1xf32> to vector<8x32xf32>
    %322 = arith.subf %316, %321 : vector<8x32xf32>
    %323 = arith.mulf %322, %322 : vector<8x32xf32>
    %cst_176 = arith.constant dense<0.000000e+00> : vector<8xf32>
    %324 = vector.multi_reduction <add>, %323, %cst_176 [1] : vector<8x32xf32> to vector<8xf32>
    %325 = vector.shape_cast %324 : vector<8xf32> to vector<8x1xf32>
    %cst_177 = arith.constant 3.200000e+01 : f32
    %326 = vector.broadcast %cst_177 : f32 to vector<8x1xf32>
    %327 = arith.divf %325, %326 : vector<8x1xf32>
    %328 = vector.broadcast %320 : vector<8x1xf32> to vector<8x32xf32>
    %329 = arith.subf %316, %328 : vector<8x32xf32>
    %cst_178 = arith.constant 9.99999974E-6 : f32
    %330 = vector.broadcast %cst_178 : f32 to vector<8x1xf32>
    %331 = arith.addf %327, %330 : vector<8x1xf32>
    %332 = math.rsqrt %331 : vector<8x1xf32>
    %333 = vector.broadcast %332 : vector<8x1xf32> to vector<8x32xf32>
    %334 = arith.mulf %329, %333 : vector<8x32xf32>
    %335 = vector.broadcast %314 : vector<1x32xf32> to vector<8x32xf32>
    %336 = arith.mulf %334, %335 : vector<8x32xf32>
    %337 = vector.broadcast %315 : vector<1x32xf32> to vector<8x32xf32>
    %338 = arith.addf %336, %337 : vector<8x32xf32>
    %c0_179 = arith.constant 0 : index
    %c0_180 = arith.constant 0 : index
    %339 = vector.load %arg36[%c0_179, %c0_180] : memref<64x32xbf16, #tpu.memory_space<vmem>>, vector<64x32xbf16>
    %340 = arith.truncf %338 : vector<8x32xf32> to vector<8x32xbf16>
    %cst_181 = arith.constant dense<0.000000e+00> : vector<8x64xf32>
    %341 = tpu.matmul %340, %339, %cst_181 {dimension_numbers = #tpu.dot_dimension_numbers<[1], [1], [0], [0], [0, 0, 1, 0], [], []>} : vector<8x32xbf16>, vector<64x32xbf16>, vector<8x64xf32> -> vector<8x64xf32>
    %c0_182 = arith.constant 0 : index
    %c0_183 = arith.constant 0 : index
    %342 = vector.load %arg37[%c0_182, %c0_183] : memref<1x64xf32, #tpu.memory_space<vmem>>, vector<1x64xf32>
    %343 = vector.broadcast %342 : vector<1x64xf32> to vector<8x64xf32>
    %344 = arith.addf %341, %343 : vector<8x64xf32>
    %cst_184 = arith.constant 0.000000e+00 : f32
    %345 = vector.broadcast %cst_184 : f32 to vector<8x64xf32>
    %346 = arith.maximumf %344, %345 : vector<8x64xf32>
    %c0_185 = arith.constant 0 : index
    %c0_186 = arith.constant 0 : index
    %347 = vector.load %arg38[%c0_185, %c0_186] : memref<32x64xbf16, #tpu.memory_space<vmem>>, vector<32x64xbf16>
    %348 = arith.truncf %346 : vector<8x64xf32> to vector<8x64xbf16>
    %cst_187 = arith.constant dense<0.000000e+00> : vector<8x32xf32>
    %349 = tpu.matmul %348, %347, %cst_187 {dimension_numbers = #tpu.dot_dimension_numbers<[1], [1], [0], [0], [0, 0, 1, 0], [], []>} : vector<8x64xbf16>, vector<32x64xbf16>, vector<8x32xf32> -> vector<8x32xf32>
    %c0_188 = arith.constant 0 : index
    %c0_189 = arith.constant 0 : index
    %350 = vector.load %arg39[%c0_188, %c0_189] : memref<1x32xf32, #tpu.memory_space<vmem>>, vector<1x32xf32>
    %351 = vector.broadcast %350 : vector<1x32xf32> to vector<8x32xf32>
    %352 = arith.addf %349, %351 : vector<8x32xf32>
    %c0_190 = arith.constant 0 : index
    %c0_191 = arith.constant 0 : index
    %353 = vector.load %arg40[%c0_190, %c0_191] : memref<1x32xf32, #tpu.memory_space<vmem>>, vector<1x32xf32>
    %c0_192 = arith.constant 0 : index
    %c0_193 = arith.constant 0 : index
    %354 = vector.load %arg41[%c0_192, %c0_193] : memref<1x32xf32, #tpu.memory_space<vmem>>, vector<1x32xf32>
    %355 = arith.addf %338, %352 : vector<8x32xf32>
    %cst_194 = arith.constant dense<0.000000e+00> : vector<8xf32>
    %356 = vector.multi_reduction <add>, %355, %cst_194 [1] : vector<8x32xf32> to vector<8xf32>
    %357 = vector.shape_cast %356 : vector<8xf32> to vector<8x1xf32>
    %cst_195 = arith.constant 3.200000e+01 : f32
    %358 = vector.broadcast %cst_195 : f32 to vector<8x1xf32>
    %359 = arith.divf %357, %358 : vector<8x1xf32>
    %360 = vector.broadcast %359 : vector<8x1xf32> to vector<8x32xf32>
    %361 = arith.subf %355, %360 : vector<8x32xf32>
    %362 = arith.mulf %361, %361 : vector<8x32xf32>
    %cst_196 = arith.constant dense<0.000000e+00> : vector<8xf32>
    %363 = vector.multi_reduction <add>, %362, %cst_196 [1] : vector<8x32xf32> to vector<8xf32>
    %364 = vector.shape_cast %363 : vector<8xf32> to vector<8x1xf32>
    %cst_197 = arith.constant 3.200000e+01 : f32
    %365 = vector.broadcast %cst_197 : f32 to vector<8x1xf32>
    %366 = arith.divf %364, %365 : vector<8x1xf32>
    %367 = vector.broadcast %359 : vector<8x1xf32> to vector<8x32xf32>
    %368 = arith.subf %355, %367 : vector<8x32xf32>
    %cst_198 = arith.constant 9.99999974E-6 : f32
    %369 = vector.broadcast %cst_198 : f32 to vector<8x1xf32>
    %370 = arith.addf %366, %369 : vector<8x1xf32>
    %371 = math.rsqrt %370 : vector<8x1xf32>
    %372 = vector.broadcast %371 : vector<8x1xf32> to vector<8x32xf32>
    %373 = arith.mulf %368, %372 : vector<8x32xf32>
    %374 = vector.broadcast %353 : vector<1x32xf32> to vector<8x32xf32>
    %375 = arith.mulf %373, %374 : vector<8x32xf32>
    %376 = vector.broadcast %354 : vector<1x32xf32> to vector<8x32xf32>
    %377 = arith.addf %375, %376 : vector<8x32xf32>
    %c0_199 = arith.constant 0 : index
    %c0_200 = arith.constant 0 : index
    %378 = vector.load %arg42[%c0_199, %c0_200] : memref<128x32xbf16, #tpu.memory_space<vmem>>, vector<128x32xbf16>
    %379 = arith.truncf %377 : vector<8x32xf32> to vector<8x32xbf16>
    %cst_201 = arith.constant dense<0.000000e+00> : vector<8x128xf32>
    %380 = tpu.matmul %379, %378, %cst_201 {dimension_numbers = #tpu.dot_dimension_numbers<[1], [1], [0], [0], [0, 0, 1, 0], [], []>} : vector<8x32xbf16>, vector<128x32xbf16>, vector<8x128xf32> -> vector<8x128xf32>
    %c0_202 = arith.constant 0 : index
    %c0_203 = arith.constant 0 : index
    %381 = vector.load %arg43[%c0_202, %c0_203] : memref<1x128xf32, #tpu.memory_space<vmem>>, vector<1x128xf32>
    %382 = vector.broadcast %381 : vector<1x128xf32> to vector<8x128xf32>
    %383 = arith.addf %380, %382 : vector<8x128xf32>
    %c0_204 = arith.constant 0 : index
    %c0_205 = arith.constant 0 : index
    %c0_206 = arith.constant 0 : index
    %384 = vector.load %arg44[%c0_204, %c0_205, %c0_206] : memref<1x8x128xf32, #tpu.memory_space<vmem>>, vector<1x8x128xf32>
    %385 = vector.shape_cast %384 : vector<1x8x128xf32> to vector<8x128xf32>
    %386 = vector.shape_cast %383 : vector<8x128xf32> to vector<1x8x128xf32>
    tpu.vector_store %arg44[%c0_204, %c0_205, %c0_206], %386 {strides = array<i32>} : memref<1x8x128xf32, #tpu.memory_space<vmem>>, vector<1x8x128xf32>,
    return
  }
  func.func @transform_0(%arg0: i32, %arg1: memref<2x8xi32, #tpu.memory_space<smem>>, %arg2: memref<2xi32, #tpu.memory_space<smem>>) -> (i32, i32, i32) {
    %c0_i32 = arith.constant 0 : i32
    %c0_i32_0 = arith.constant 0 : i32
    %c0_i32_1 = arith.constant 0 : i32
    return %arg0, %c0_i32, %c0_i32_0 : i32, i32, i32
  }
  func.func @transform_1(%arg0: i32, %arg1: memref<2x8xi32, #tpu.memory_space<smem>>, %arg2: memref<2xi32, #tpu.memory_space<smem>>) -> (i32, i32) {
    %c0_i32 = arith.constant 0 : i32
    %c0_i32_0 = arith.constant 0 : i32
    %c0_i32_1 = arith.constant 0 : i32
    return %c0_i32, %c0_i32_0 : i32, i32
  }
  func.func @transform_2(%arg0: i32, %arg1: memref<2x8xi32, #tpu.memory_space<smem>>, %arg2: memref<2xi32, #tpu.memory_space<smem>>) -> (i32, i32) {
    %c0_i32 = arith.constant 0 : i32
    %c0_i32_0 = arith.constant 0 : i32
    %c0_i32_1 = arith.constant 0 : i32
    return %c0_i32, %c0_i32_0 : i32, i32
  }
  func.func @transform_3(%arg0: i32, %arg1: memref<2x8xi32, #tpu.memory_space<smem>>, %arg2: memref<2xi32, #tpu.memory_space<smem>>) -> (i32, i32, i32) {
    %c0_i32 = arith.constant 0 : i32
    %c0_i32_0 = arith.constant 0 : i32
    %c0_i32_1 = arith.constant 0 : i32
    %c0_i32_2 = arith.constant 0 : i32
    return %c0_i32, %c0_i32_0, %c0_i32_1 : i32, i32, i32
  }
  func.func @transform_4(%arg0: i32, %arg1: memref<2x8xi32, #tpu.memory_space<smem>>, %arg2: memref<2xi32, #tpu.memory_space<smem>>) -> (i32, i32, i32) {
    %c0_i32 = arith.constant 0 : i32
    %c0_i32_0 = arith.constant 0 : i32
    %c0_i32_1 = arith.constant 0 : i32
    %c0_i32_2 = arith.constant 0 : i32
    return %c0_i32, %c0_i32_0, %c0_i32_1 : i32, i32, i32
  }
  func.func @transform_5(%arg0: i32, %arg1: memref<2x8xi32, #tpu.memory_space<smem>>, %arg2: memref<2xi32, #tpu.memory_space<smem>>) -> (i32, i32, i32) {
    %c0_i32 = arith.constant 0 : i32
    %c0_i32_0 = arith.constant 0 : i32
    %c0_i32_1 = arith.constant 0 : i32
    %c0_i32_2 = arith.constant 0 : i32
    return %c0_i32, %c0_i32_0, %c0_i32_1 : i32, i32, i32
  }
  func.func @transform_6(%arg0: i32, %arg1: memref<2x8xi32, #tpu.memory_space<smem>>, %arg2: memref<2xi32, #tpu.memory_space<smem>>) -> (i32, i32, i32) {
    %c0_i32 = arith.constant 0 : i32
    %c0_i32_0 = arith.constant 0 : i32
    %c0_i32_1 = arith.constant 0 : i32
    %c0_i32_2 = arith.constant 0 : i32
    return %c0_i32, %c0_i32_0, %c0_i32_1 : i32, i32, i32
  }
  func.func @transform_7(%arg0: i32, %arg1: memref<2x8xi32, #tpu.memory_space<smem>>, %arg2: memref<2xi32, #tpu.memory_space<smem>>) -> (i32, i32) {
    %c0_i32 = arith.constant 0 : i32
    %c0_i32_0 = arith.constant 0 : i32
    %c0_i32_1 = arith.constant 0 : i32
    return %c0_i32, %c0_i32_0 : i32, i32
  }
  func.func @transform_8(%arg0: i32, %arg1: memref<2x8xi32, #tpu.memory_space<smem>>, %arg2: memref<2xi32, #tpu.memory_space<smem>>) -> (i32, i32) {
    %c0_i32 = arith.constant 0 : i32
    %c0_i32_0 = arith.constant 0 : i32
    %c0_i32_1 = arith.constant 0 : i32
    return %c0_i32, %c0_i32_0 : i32, i32
  }
  func.func @transform_9(%arg0: i32, %arg1: memref<2x8xi32, #tpu.memory_space<smem>>, %arg2: memref<2xi32, #tpu.memory_space<smem>>) -> (i32, i32, i32) {
    %c0_i32 = arith.constant 0 : i32
    %c0_i32_0 = arith.constant 0 : i32
    %c0_i32_1 = arith.constant 0 : i32
    %c0_i32_2 = arith.constant 0 : i32
    return %c0_i32, %c0_i32_0, %c0_i32_1 : i32, i32, i32
  }
  func.func @transform_10(%arg0: i32, %arg1: memref<2x8xi32, #tpu.memory_space<smem>>, %arg2: memref<2xi32, #tpu.memory_space<smem>>) -> (i32, i32, i32) {
    %c0_i32 = arith.constant 0 : i32
    %c0_i32_0 = arith.constant 0 : i32
    %c0_i32_1 = arith.constant 0 : i32
    %c0_i32_2 = arith.constant 0 : i32
    return %c0_i32, %c0_i32_0, %c0_i32_1 : i32, i32, i32
  }
  func.func @transform_11(%arg0: i32, %arg1: memref<2x8xi32, #tpu.memory_space<smem>>, %arg2: memref<2xi32, #tpu.memory_space<smem>>) -> (i32, i32, i32) {
    %c0_i32 = arith.constant 0 : i32
    %c0_i32_0 = arith.constant 0 : i32
    %c0_i32_1 = arith.constant 0 : i32
    %c0_i32_2 = arith.constant 0 : i32
    return %c0_i32, %c0_i32_0, %c0_i32_1 : i32, i32, i32
  }
  func.func @transform_12(%arg0: i32, %arg1: memref<2x8xi32, #tpu.memory_space<smem>>, %arg2: memref<2xi32, #tpu.memory_space<smem>>) -> (i32, i32, i32) {
    %c0_i32 = arith.constant 0 : i32
    %c0_i32_0 = arith.constant 0 : i32
    %c0_i32_1 = arith.constant 0 : i32
    %c0_i32_2 = arith.constant 0 : i32
    return %c0_i32, %c0_i32_0, %c0_i32_1 : i32, i32, i32
  }
  func.func @transform_13(%arg0: i32, %arg1: memref<2x8xi32, #tpu.memory_space<smem>>, %arg2: memref<2xi32, #tpu.memory_space<smem>>) -> (i32, i32) {
    %c0_i32 = arith.constant 0 : i32
    %c0_i32_0 = arith.constant 0 : i32
    %c0_i32_1 = arith.constant 0 : i32
    return %c0_i32, %c0_i32_0 : i32, i32
  }
  func.func @transform_14(%arg0: i32, %arg1: memref<2x8xi32, #tpu.memory_space<smem>>, %arg2: memref<2xi32, #tpu.memory_space<smem>>) -> (i32, i32) {
    %c0_i32 = arith.constant 0 : i32
    %c0_i32_0 = arith.constant 0 : i32
    %c0_i32_1 = arith.constant 0 : i32
    return %c0_i32, %c0_i32_0 : i32, i32
  }
  func.func @transform_15(%arg0: i32, %arg1: memref<2x8xi32, #tpu.memory_space<smem>>, %arg2: memref<2xi32, #tpu.memory_space<smem>>) -> (i32, i32) {
    %c0_i32 = arith.constant 0 : i32
    %c0_i32_0 = arith.constant 0 : i32
    %c0_i32_1 = arith.constant 0 : i32
    return %c0_i32, %c0_i32_0 : i32, i32
  }
  func.func @transform_16(%arg0: i32, %arg1: memref<2x8xi32, #tpu.memory_space<smem>>, %arg2: memref<2xi32, #tpu.memory_space<smem>>) -> (i32, i32) {
    %c0_i32 = arith.constant 0 : i32
    %c0_i32_0 = arith.constant 0 : i32
    %c0_i32_1 = arith.constant 0 : i32
    return %c0_i32, %c0_i32_0 : i32, i32
  }
  func.func @transform_17(%arg0: i32, %arg1: memref<2x8xi32, #tpu.memory_space<smem>>, %arg2: memref<2xi32, #tpu.memory_space<smem>>) -> (i32, i32) {
    %c0_i32 = arith.constant 0 : i32
    %c0_i32_0 = arith.constant 0 : i32
    %c0_i32_1 = arith.constant 0 : i32
    return %c0_i32, %c0_i32_0 : i32, i32
  }
  func.func @transform_18(%arg0: i32, %arg1: memref<2x8xi32, #tpu.memory_space<smem>>, %arg2: memref<2xi32, #tpu.memory_space<smem>>) -> (i32, i32) {
    %c0_i32 = arith.constant 0 : i32
    %c0_i32_0 = arith.constant 0 : i32
    %c0_i32_1 = arith.constant 0 : i32
    return %c0_i32, %c0_i32_0 : i32, i32
  }
  func.func @transform_19(%arg0: i32, %arg1: memref<2x8xi32, #tpu.memory_space<smem>>, %arg2: memref<2xi32, #tpu.memory_space<smem>>) -> (i32, i32) {
    %c0_i32 = arith.constant 0 : i32
    %c0_i32_0 = arith.constant 0 : i32
    %c0_i32_1 = arith.constant 0 : i32
    return %c0_i32, %c0_i32_0 : i32, i32
  }
  func.func @transform_20(%arg0: i32, %arg1: memref<2x8xi32, #tpu.memory_space<smem>>, %arg2: memref<2xi32, #tpu.memory_space<smem>>) -> (i32, i32) {
    %c0_i32 = arith.constant 0 : i32
    %c0_i32_0 = arith.constant 0 : i32
    %c0_i32_1 = arith.constant 0 : i32
    return %c0_i32, %c0_i32_0 : i32, i32
  }
  func.func @transform_21(%arg0: i32, %arg1: memref<2x8xi32, #tpu.memory_space<smem>>, %arg2: memref<2xi32, #tpu.memory_space<smem>>) -> (i32, i32, i32) {
    %c0_i32 = arith.constant 0 : i32
    %c0_i32_0 = arith.constant 0 : i32
    %c0_i32_1 = arith.constant 0 : i32
    %c0_i32_2 = arith.constant 0 : i32
    return %c0_i32, %c0_i32_0, %c0_i32_1 : i32, i32, i32
  }
  func.func @transform_22(%arg0: i32, %arg1: memref<2x8xi32, #tpu.memory_space<smem>>, %arg2: memref<2xi32, #tpu.memory_space<smem>>) -> (i32, i32, i32) {
    %c0_i32 = arith.constant 0 : i32
    %c0_i32_0 = arith.constant 0 : i32
    %c0_i32_1 = arith.constant 0 : i32
    %c0_i32_2 = arith.constant 0 : i32
    return %c0_i32, %c0_i32_0, %c0_i32_1 : i32, i32, i32
  }
  func.func @transform_23(%arg0: i32, %arg1: memref<2x8xi32, #tpu.memory_space<smem>>, %arg2: memref<2xi32, #tpu.memory_space<smem>>) -> (i32, i32, i32) {
    %c0_i32 = arith.constant 0 : i32
    %c0_i32_0 = arith.constant 0 : i32
    %c0_i32_1 = arith.constant 0 : i32
    %c0_i32_2 = arith.constant 0 : i32
    return %c0_i32, %c0_i32_0, %c0_i32_1 : i32, i32, i32
  }
  func.func @transform_24(%arg0: i32, %arg1: memref<2x8xi32, #tpu.memory_space<smem>>, %arg2: memref<2xi32, #tpu.memory_space<smem>>) -> (i32, i32, i32) {
    %c0_i32 = arith.constant 0 : i32
    %c0_i32_0 = arith.constant 0 : i32
    %c0_i32_1 = arith.constant 0 : i32
    %c0_i32_2 = arith.constant 0 : i32
    return %c0_i32, %c0_i32_0, %c0_i32_1 : i32, i32, i32
  }
  func.func @transform_25(%arg0: i32, %arg1: memref<2x8xi32, #tpu.memory_space<smem>>, %arg2: memref<2xi32, #tpu.memory_space<smem>>) -> (i32, i32) {
    %c0_i32 = arith.constant 0 : i32
    %c0_i32_0 = arith.constant 0 : i32
    %c0_i32_1 = arith.constant 0 : i32
    return %c0_i32, %c0_i32_0 : i32, i32
  }
  func.func @transform_26(%arg0: i32, %arg1: memref<2x8xi32, #tpu.memory_space<smem>>, %arg2: memref<2xi32, #tpu.memory_space<smem>>) -> (i32, i32) {
    %c0_i32 = arith.constant 0 : i32
    %c0_i32_0 = arith.constant 0 : i32
    %c0_i32_1 = arith.constant 0 : i32
    return %c0_i32, %c0_i32_0 : i32, i32
  }
  func.func @transform_27(%arg0: i32, %arg1: memref<2x8xi32, #tpu.memory_space<smem>>, %arg2: memref<2xi32, #tpu.memory_space<smem>>) -> (i32, i32, i32) {
    %c0_i32 = arith.constant 0 : i32
    %c0_i32_0 = arith.constant 0 : i32
    %c0_i32_1 = arith.constant 0 : i32
    %c0_i32_2 = arith.constant 0 : i32
    return %c0_i32, %c0_i32_0, %c0_i32_1 : i32, i32, i32
  }
  func.func @transform_28(%arg0: i32, %arg1: memref<2x8xi32, #tpu.memory_space<smem>>, %arg2: memref<2xi32, #tpu.memory_space<smem>>) -> (i32, i32, i32) {
    %c0_i32 = arith.constant 0 : i32
    %c0_i32_0 = arith.constant 0 : i32
    %c0_i32_1 = arith.constant 0 : i32
    %c0_i32_2 = arith.constant 0 : i32
    return %c0_i32, %c0_i32_0, %c0_i32_1 : i32, i32, i32
  }
  func.func @transform_29(%arg0: i32, %arg1: memref<2x8xi32, #tpu.memory_space<smem>>, %arg2: memref<2xi32, #tpu.memory_space<smem>>) -> (i32, i32, i32) {
    %c0_i32 = arith.constant 0 : i32
    %c0_i32_0 = arith.constant 0 : i32
    %c0_i32_1 = arith.constant 0 : i32
    %c0_i32_2 = arith.constant 0 : i32
    return %c0_i32, %c0_i32_0, %c0_i32_1 : i32, i32, i32
  }
  func.func @transform_30(%arg0: i32, %arg1: memref<2x8xi32, #tpu.memory_space<smem>>, %arg2: memref<2xi32, #tpu.memory_space<smem>>) -> (i32, i32, i32) {
    %c0_i32 = arith.constant 0 : i32
    %c0_i32_0 = arith.constant 0 : i32
    %c0_i32_1 = arith.constant 0 : i32
    %c0_i32_2 = arith.constant 0 : i32
    return %c0_i32, %c0_i32_0, %c0_i32_1 : i32, i32, i32
  }
  func.func @transform_31(%arg0: i32, %arg1: memref<2x8xi32, #tpu.memory_space<smem>>, %arg2: memref<2xi32, #tpu.memory_space<smem>>) -> (i32, i32) {
    %c0_i32 = arith.constant 0 : i32
    %c0_i32_0 = arith.constant 0 : i32
    %c0_i32_1 = arith.constant 0 : i32
    return %c0_i32, %c0_i32_0 : i32, i32
  }
  func.func @transform_32(%arg0: i32, %arg1: memref<2x8xi32, #tpu.memory_space<smem>>, %arg2: memref<2xi32, #tpu.memory_space<smem>>) -> (i32, i32) {
    %c0_i32 = arith.constant 0 : i32
    %c0_i32_0 = arith.constant 0 : i32
    %c0_i32_1 = arith.constant 0 : i32
    return %c0_i32, %c0_i32_0 : i32, i32
  }
  func.func @transform_33(%arg0: i32, %arg1: memref<2x8xi32, #tpu.memory_space<smem>>, %arg2: memref<2xi32, #tpu.memory_space<smem>>) -> (i32, i32) {
    %c0_i32 = arith.constant 0 : i32
    %c0_i32_0 = arith.constant 0 : i32
    %c0_i32_1 = arith.constant 0 : i32
    return %c0_i32, %c0_i32_0 : i32, i32
  }
  func.func @transform_34(%arg0: i32, %arg1: memref<2x8xi32, #tpu.memory_space<smem>>, %arg2: memref<2xi32, #tpu.memory_space<smem>>) -> (i32, i32) {
    %c0_i32 = arith.constant 0 : i32
    %c0_i32_0 = arith.constant 0 : i32
    %c0_i32_1 = arith.constant 0 : i32
    return %c0_i32, %c0_i32_0 : i32, i32
  }
  func.func @transform_35(%arg0: i32, %arg1: memref<2x8xi32, #tpu.memory_space<smem>>, %arg2: memref<2xi32, #tpu.memory_space<smem>>) -> (i32, i32) {
    %c0_i32 = arith.constant 0 : i32
    %c0_i32_0 = arith.constant 0 : i32
    %c0_i32_1 = arith.constant 0 : i32
    return %c0_i32, %c0_i32_0 : i32, i32
  }
  func.func @transform_36(%arg0: i32, %arg1: memref<2x8xi32, #tpu.memory_space<smem>>, %arg2: memref<2xi32, #tpu.memory_space<smem>>) -> (i32, i32) {
    %c0_i32 = arith.constant 0 : i32
    %c0_i32_0 = arith.constant 0 : i32
    %c0_i32_1 = arith.constant 0 : i32
    return %c0_i32, %c0_i32_0 : i32, i32
  }
  func.func @transform_37(%arg0: i32, %arg1: memref<2x8xi32, #tpu.memory_space<smem>>, %arg2: memref<2xi32, #tpu.memory_space<smem>>) -> (i32, i32) {
    %c0_i32 = arith.constant 0 : i32
    %c0_i32_0 = arith.constant 0 : i32
    %c0_i32_1 = arith.constant 0 : i32
    return %c0_i32, %c0_i32_0 : i32, i32
  }
  func.func @transform_38(%arg0: i32, %arg1: memref<2x8xi32, #tpu.memory_space<smem>>, %arg2: memref<2xi32, #tpu.memory_space<smem>>) -> (i32, i32) {
    %c0_i32 = arith.constant 0 : i32
    %c0_i32_0 = arith.constant 0 : i32
    %c0_i32_1 = arith.constant 0 : i32
    return %c0_i32, %c0_i32_0 : i32, i32
  }
  func.func @transform_39(%arg0: i32, %arg1: memref<2x8xi32, #tpu.memory_space<smem>>, %arg2: memref<2xi32, #tpu.memory_space<smem>>) -> (i32, i32) {
    %c0_i32 = arith.constant 0 : i32
    %c0_i32_0 = arith.constant 0 : i32
    %c0_i32_1 = arith.constant 0 : i32
    return %c0_i32, %c0_i32_0 : i32, i32
  }
  func.func @transform_40(%arg0: i32, %arg1: memref<2x8xi32, #tpu.memory_space<smem>>, %arg2: memref<2xi32, #tpu.memory_space<smem>>) -> (i32, i32) {
    %c0_i32 = arith.constant 0 : i32
    %c0_i32_0 = arith.constant 0 : i32
    %c0_i32_1 = arith.constant 0 : i32
    return %c0_i32, %c0_i32_0 : i32, i32
  }
  func.func @transform_41(%arg0: i32, %arg1: memref<2x8xi32, #tpu.memory_space<smem>>, %arg2: memref<2xi32, #tpu.memory_space<smem>>) -> (i32, i32, i32) {
    %c0_i32 = arith.constant 0 : i32
    %c0_i32_0 = arith.constant 0 : i32
    %c0_i32_1 = arith.constant 0 : i32
    return %arg0, %c0_i32, %c0_i32_0 : i32, i32, i32
  }
}

</mosaic_0001>

<llo_original>
// kernel: tpu_custom_call.1
$region0: #{tpu_custom_call.1}
  #allocation0 [shape = 'u32[]', space=smem, size = 0x4, offset = 0x4, fixed_abs, tag = 'smem constant byte address 0x4 - core index']
  #allocation1 [shape = 'u32[72,128]{1,0:T(1,128)}', space=vmem, size = 0x9000, scoped, tag = 'internal scratch']
  #allocation2 [shape = 'f32[8,32]{1,0:T(8,128)}', space=vmem, size = 0x1000, scoped, tag = 'scratch operand']
  #allocation3 [shape = 's32[1]{0}', space=sflag, size = 0x4, scoped, tag = 'scoped memory for tpu_custom_call.1']
  #allocation4 [shape = 'u8[1024]{0}', space=smem, size = 0x400, scoped, tag = 'prefetched SMEM operand 0']
  #allocation5 [shape = 'u8[512]{0}', space=smem, size = 0x200, scoped, tag = 'prefetched SMEM operand 1']
  %s0 = inlined_call_operand.smem [shape: u32[44], index: -1, kind: input, shape index: {}]
  %s1 = sld [smem:[%s0]]
  %s2 = scalar_lea.smem %s0, 1
  %s3 = sld [smem:[%s2]]
  %s4 = scalar_lea.smem %s0, 2
  %s5 = sld [smem:[%s4]]
  %s6 = scalar_lea.smem %s0, 3
  %s7 = sld [smem:[%s6]]
  %s8 = scalar_lea.smem %s0, 4
  %s9 = sld [smem:[%s8]]
  %s10 = scalar_lea.smem %s0, 5
  %s11 = sld [smem:[%s10]]
  %s12 = scalar_lea.smem %s0, 6
  %s13 = sld [smem:[%s12]]
  %s14 = scalar_lea.smem %s0, 7
  %s15 = sld [smem:[%s14]]
  %s16 = scalar_lea.smem %s0, 8
  %s17 = sld [smem:[%s16]]
  %s18 = scalar_lea.smem %s0, 9
  %s19 = sld [smem:[%s18]]
  %s20 = scalar_lea.smem %s0, 10
  %s21 = sld [smem:[%s20]]
  %s22 = scalar_lea.smem %s0, 11
  %s23 = sld [smem:[%s22]]
  %s24 = scalar_lea.smem %s0, 12
  %s25 = sld [smem:[%s24]]
  %s26 = scalar_lea.smem %s0, 13
  %s27 = sld [smem:[%s26]]
  %s28 = scalar_lea.smem %s0, 14
  %s29 = sld [smem:[%s28]]
  %s30 = scalar_lea.smem %s0, 15
  %s31 = sld [smem:[%s30]]
  %s32 = scalar_lea.smem %s0, 16
  %s33 = sld [smem:[%s32]]
  %s34 = scalar_lea.smem %s0, 17
  %s35 = sld [smem:[%s34]]
  %s36 = scalar_lea.smem %s0, 18
  %s37 = sld [smem:[%s36]]
  %s38 = scalar_lea.smem %s0, 19
  %s39 = sld [smem:[%s38]]
  %s40 = scalar_lea.smem %s0, 20
  %s41 = sld [smem:[%s40]]
  %s42 = scalar_lea.smem %s0, 21
  %s43 = sld [smem:[%s42]]
  %s44 = scalar_lea.smem %s0, 22
  %s45 = sld [smem:[%s44]]
  %s46 = scalar_lea.smem %s0, 23
  %s47 = sld [smem:[%s46]]
  %s48 = scalar_lea.smem %s0, 24
  %s49 = sld [smem:[%s48]]
  %s50 = scalar_lea.smem %s0, 25
  %s51 = sld [smem:[%s50]]
  %s52 = scalar_lea.smem %s0, 26
  %s53 = sld [smem:[%s52]]
  %s54 = scalar_lea.smem %s0, 27
  %s55 = sld [smem:[%s54]]
  %s56 = scalar_lea.smem %s0, 28
  %s57 = sld [smem:[%s56]]
  %s58 = scalar_lea.smem %s0, 29
  %s59 = sld [smem:[%s58]]
  %s60 = scalar_lea.smem %s0, 30
  %s61 = sld [smem:[%s60]]
  %s62 = scalar_lea.smem %s0, 31
  %s63 = sld [smem:[%s62]]
  %s64 = scalar_lea.smem %s0, 32
  %s65 = sld [smem:[%s64]]
  %s66 = scalar_lea.smem %s0, 33
  %s67 = sld [smem:[%s66]]
  %s68 = scalar_lea.smem %s0, 34
  %s69 = sld [smem:[%s68]]
  %s70 = scalar_lea.smem %s0, 35
  %s71 = sld [smem:[%s70]]
  %s72 = scalar_lea.smem %s0, 36
  %s73 = sld [smem:[%s72]]
  %s74 = scalar_lea.smem %s0, 37
  %s75 = sld [smem:[%s74]]
  %s76 = scalar_lea.smem %s0, 38
  %s77 = sld [smem:[%s76]]
  %s78 = scalar_lea.smem %s0, 39
  %s79 = sld [smem:[%s78]]
  %s80 = scalar_lea.smem %s0, 40
  %s81 = sld [smem:[%s80]]
  %s82 = scalar_lea.smem %s0, 41
  %s83 = sld [smem:[%s82]]
  %s84 = scalar_lea.smem %s0, 42
  %s85 = sld [smem:[%s84]]
  %s86 = scalar_lea.smem %s0, 43
  %s87 = sld [smem:[%s86]]
  %s88 = sld [smem:[#allocation0]]
  $region197: #{tpu_custom_call.1} parent=0
    _
  %s90 = ssub.s32 1, %s88
  %s91 = scalar_select 0, %s90, %s88
  %s93 = sshll.u32 %s1, 4
  %s94 = int_to_ptr.vmem [resolvable:$true] %s93
  %96 = dma.vmem_to_smem %s94, 32, [#allocation4], [#allocation3]
  %s98 = sshll.u32 %s3, 4
  %s99 = int_to_ptr.vmem [resolvable:$true] %s98
  %101 = dma.vmem_to_smem %s99, 16, [#allocation5], [#allocation3]
  %103 = dma.done [#allocation3], 48
  %104 = sfence
  $region1: #{tpu_custom_call.1} parent=0
    #allocation6 [shape = 'u8[8192]{0}', space=vmem, size = 0x2000, scoped, tag = 'output window, operand 0']
    #allocation7 [shape = 's32[2]{0}', space=sflag, size = 0x8, scoped, tag = 'scoped memory for tpu_custom_call.1']
    %105 = vsyncpa [#allocation7], 0
    %s106 = scalar_lea.sflag [#allocation7], 1
    %107 = vsyncpa %s106, 0
    loop: start=0, step=1, limit=4
    $region2: #{tpu_custom_call.1} parent=1 // loop_pre_header
      _
    $region3: #{tpu_custom_call.1} parent=1 // loop_header
      %s109 = sphi 0, %s113
      %p110 = scmp.ge.s32.totalorder %s109, 4
      %s119 = sphi 0, %s121
      %s122 = sphi 0, %s119
      %s123 = sphi 0, %s122
      %s139 = sphi 0, %s123
      %s143 = sphi 0, %s143
      %s145 = sphi 0, %s143
      %s146 = sphi 0, %s145
      %s160 = sphi 0, %s146
      %s164 = sphi 0, %s164
      %s166 = sphi 0, %s164
      %s167 = sphi 0, %s166
      %s181 = sphi 0, %s167
      %s185 = sphi 0, %s185
      %s187 = sphi 0, %s185
      %s188 = sphi 0, %s187
      %s202 = sphi 0, %s188
      %s206 = sphi 0, %s206
      %s208 = sphi 0, %s206
      %s209 = sphi 0, %s208
      %s223 = sphi 0, %s209
      %s227 = sphi 0, %s227
      %s229 = sphi 0, %s227
      %s230 = sphi 0, %s229
      %s244 = sphi 0, %s230
      %s248 = sphi 0, %s248
      %s250 = sphi 0, %s248
      %s251 = sphi 0, %s250
      %s265 = sphi 0, %s251
      %s269 = sphi 0, %s269
      %s271 = sphi 0, %s269
      %s272 = sphi 0, %s271
      %s286 = sphi 0, %s272
      %s290 = sphi 0, %s290
      %s292 = sphi 0, %s290
      %s293 = sphi 0, %s292
      %s307 = sphi 0, %s293
      %s311 = sphi 0, %s311
      %s313 = sphi 0, %s311
      %s314 = sphi 0, %s313
      %s328 = sphi 0, %s314
      %s332 = sphi 0, %s332
      %s334 = sphi 0, %s332
      %s335 = sphi 0, %s334
      %s349 = sphi 0, %s335
      %s353 = sphi 0, %s353
      %s355 = sphi 0, %s353
      %s356 = sphi 0, %s355
      %s370 = sphi 0, %s356
      %s374 = sphi 0, %s374
      %s376 = sphi 0, %s374
      %s377 = sphi 0, %s376
      %s391 = sphi 0, %s377
      %s395 = sphi 0, %s395
      %s397 = sphi 0, %s395
      %s398 = sphi 0, %s397
      %s412 = sphi 0, %s398
      %s416 = sphi 0, %s416
      %s418 = sphi 0, %s416
      %s419 = sphi 0, %s418
      %s433 = sphi 0, %s419
      %s437 = sphi 0, %s437
      %s439 = sphi 0, %s437
      %s440 = sphi 0, %s439
      %s454 = sphi 0, %s440
      %s458 = sphi 0, %s458
      %s460 = sphi 0, %s458
      %s461 = sphi 0, %s460
      %s475 = sphi 0, %s461
      %s479 = sphi 0, %s479
      %s481 = sphi 0, %s479
      %s482 = sphi 0, %s481
      %s496 = sphi 0, %s482
      %s500 = sphi 0, %s500
      %s502 = sphi 0, %s500
      %s503 = sphi 0, %s502
      %s517 = sphi 0, %s503
      %s521 = sphi 0, %s521
      %s523 = sphi 0, %s521
      %s524 = sphi 0, %s523
      %s538 = sphi 0, %s524
      %s542 = sphi 0, %s542
      %s544 = sphi 0, %s542
      %s545 = sphi 0, %s544
      %s559 = sphi 0, %s545
      %s563 = sphi 0, %s563
      %s565 = sphi 0, %s563
      %s566 = sphi 0, %s565
      %s580 = sphi 0, %s566
      %s584 = sphi 0, %s584
      %s586 = sphi 0, %s584
      %s587 = sphi 0, %s586
      %s601 = sphi 0, %s587
      %s605 = sphi 0, %s605
      %s607 = sphi 0, %s605
      %s608 = sphi 0, %s607
      %s622 = sphi 0, %s608
      %s626 = sphi 0, %s626
      %s628 = sphi 0, %s626
      %s629 = sphi 0, %s628
      %s643 = sphi 0, %s629
      %s647 = sphi 0, %s647
      %s649 = sphi 0, %s647
      %s650 = sphi 0, %s649
      %s664 = sphi 0, %s650
      %s668 = sphi 0, %s668
      %s670 = sphi 0, %s668
      %s671 = sphi 0, %s670
      %s685 = sphi 0, %s671
      %s689 = sphi 0, %s689
      %s691 = sphi 0, %s689
      %s692 = sphi 0, %s691
      %s706 = sphi 0, %s692
      %s710 = sphi 0, %s710
      %s712 = sphi 0, %s710
      %s713 = sphi 0, %s712
      %s727 = sphi 0, %s713
      %s731 = sphi 0, %s731
      %s733 = sphi 0, %s731
      %s734 = sphi 0, %s733
      %s748 = sphi 0, %s734
      %s752 = sphi 0, %s752
      %s754 = sphi 0, %s752
      %s755 = sphi 0, %s754
      %s769 = sphi 0, %s755
      %s773 = sphi 0, %s773
      %s775 = sphi 0, %s773
      %s776 = sphi 0, %s775
      %s790 = sphi 0, %s776
      %s794 = sphi 0, %s794
      %s796 = sphi 0, %s794
      %s797 = sphi 0, %s796
      %s811 = sphi 0, %s797
      %s815 = sphi 0, %s815
      %s817 = sphi 0, %s815
      %s818 = sphi 0, %s817
      %s832 = sphi 0, %s818
      %s836 = sphi 0, %s836
      %s838 = sphi 0, %s836
      %s839 = sphi 0, %s838
      %s853 = sphi 0, %s839
      %s857 = sphi 0, %s857
      %s859 = sphi 0, %s857
      %s860 = sphi 0, %s859
      %s874 = sphi 0, %s860
      %s878 = sphi 0, %s878
      %s880 = sphi 0, %s878
      %s881 = sphi 0, %s880
      %s895 = sphi 0, %s881
      %s899 = sphi 0, %s899
      %s901 = sphi 0, %s899
      %s902 = sphi 0, %s901
      %s916 = sphi 0, %s902
      %s920 = sphi 0, %s920
      %s922 = sphi 0, %s920
      %s923 = sphi 0, %s922
      %s937 = sphi 0, %s923
      %s941 = sphi 0, %s941
      %s943 = sphi 0, %s941
      %s944 = sphi 0, %s943
      %s958 = sphi 0, %s944
      %s962 = sphi 0, %s962
      %s964 = sphi 0, %s962
      %s965 = sphi 0, %s964
      %s979 = sphi 0, %s965
      %s985 = sphi 0, %s987
      %s988 = sphi 0, %s985
      %s989 = sphi 0, %s988
      %s1005 = sphi 0, %s989
    $region4: #{tpu_custom_call.1} parent=1 // loop_header_branch
      %112 = sbr.rel (%p110) target = $region8
    $region5: #{tpu_custom_call.1} parent=1 // loop_body
      %s114 = ssub.s32 %s109, 1
      %s115 = ssub.s32 %s109, 2
      %s116 = sadd.s32 %s109, 1
      %s117 = ssub.s32 %s109, %s116
      %p118 = scmp.eq.s32.totalorder %s117, 0
      %s120 = sadd.s32 %s119, 1
      %s121 = scalar_select %p118, %s119, %s120
      %p124 = pneg %p118
      %p125 = scmp.eq.s32.totalorder %s109, 1
      %p126 = por %p124, %p125
      %p127 = scmp.ne.s32.totalorder %s119, %s122
      %p128 = scmp.eq.s32.totalorder %s109, 0
      %p129 = por %p127, %p128
      %p130 = scmp.ne.s32.totalorder %s119, %s122
      %p131 = scmp.eq.s32.totalorder %s114, 1
      %p132 = por %p130, %p131
      %p133 = scmp.ne.s32.totalorder %s122, %s123
      %p134 = scmp.eq.s32.totalorder %s114, 0
      %p135 = por %p133, %p134
      %p136 = scmp.ne.s32.totalorder %s122, %s123
      %p137 = scmp.eq.s32.totalorder %s115, 1
      %p138 = por %p136, %p137
      %p140 = scmp.ne.s32.totalorder %s123, %s139
      %p141 = scmp.eq.s32.totalorder %s115, 0
      %p142 = por %p140, %p141
      %s144 = sadd.s32 %s143, 1
      %p147 = scmp.eq.s32.totalorder %s109, 1
      %p148 = scmp.ne.s32.totalorder %s143, %s145
      %p149 = scmp.eq.s32.totalorder %s109, 0
      %p150 = por %p148, %p149
      %p151 = scmp.ne.s32.totalorder %s143, %s145
      %p152 = scmp.eq.s32.totalorder %s114, 1
      %p153 = por %p151, %p152
      %p154 = scmp.ne.s32.totalorder %s145, %s146
      %p155 = scmp.eq.s32.totalorder %s114, 0
      %p156 = por %p154, %p155
      %p157 = scmp.ne.s32.totalorder %s145, %s146
      %p158 = scmp.eq.s32.totalorder %s115, 1
      %p159 = por %p157, %p158
      %p161 = scmp.ne.s32.totalorder %s146, %s160
      %p162 = scmp.eq.s32.totalorder %s115, 0
      %p163 = por %p161, %p162
      %s165 = sadd.s32 %s164, 1
      %p168 = scmp.eq.s32.totalorder %s109, 1
      %p169 = scmp.ne.s32.totalorder %s164, %s166
      %p170 = scmp.eq.s32.totalorder %s109, 0
      %p171 = por %p169, %p170
      %p172 = scmp.ne.s32.totalorder %s164, %s166
      %p173 = scmp.eq.s32.totalorder %s114, 1
      %p174 = por %p172, %p173
      %p175 = scmp.ne.s32.totalorder %s166, %s167
      %p176 = scmp.eq.s32.totalorder %s114, 0
      %p177 = por %p175, %p176
      %p178 = scmp.ne.s32.totalorder %s166, %s167
      %p179 = scmp.eq.s32.totalorder %s115, 1
      %p180 = por %p178, %p179
      %p182 = scmp.ne.s32.totalorder %s167, %s181
      %p183 = scmp.eq.s32.totalorder %s115, 0
      %p184 = por %p182, %p183
      %s186 = sadd.s32 %s185, 1
      %p189 = scmp.eq.s32.totalorder %s109, 1
      %p190 = scmp.ne.s32.totalorder %s185, %s187
      %p191 = scmp.eq.s32.totalorder %s109, 0
      %p192 = por %p190, %p191
      %p193 = scmp.ne.s32.totalorder %s185, %s187
      %p194 = scmp.eq.s32.totalorder %s114, 1
      %p195 = por %p193, %p194
      %p196 = scmp.ne.s32.totalorder %s187, %s188
      %p197 = scmp.eq.s32.totalorder %s114, 0
      %p198 = por %p196, %p197
      %p199 = scmp.ne.s32.totalorder %s187, %s188
      %p200 = scmp.eq.s32.totalorder %s115, 1
      %p201 = por %p199, %p200
      %p203 = scmp.ne.s32.totalorder %s188, %s202
      %p204 = scmp.eq.s32.totalorder %s115, 0
      %p205 = por %p203, %p204
      %s207 = sadd.s32 %s206, 1
      %p210 = scmp.eq.s32.totalorder %s109, 1
      %p211 = scmp.ne.s32.totalorder %s206, %s208
      %p212 = scmp.eq.s32.totalorder %s109, 0
      %p213 = por %p211, %p212
      %p214 = scmp.ne.s32.totalorder %s206, %s208
      %p215 = scmp.eq.s32.totalorder %s114, 1
      %p216 = por %p214, %p215
      %p217 = scmp.ne.s32.totalorder %s208, %s209
      %p218 = scmp.eq.s32.totalorder %s114, 0
      %p219 = por %p217, %p218
      %p220 = scmp.ne.s32.totalorder %s208, %s209
      %p221 = scmp.eq.s32.totalorder %s115, 1
      %p222 = por %p220, %p221
      %p224 = scmp.ne.s32.totalorder %s209, %s223
      %p225 = scmp.eq.s32.totalorder %s115, 0
      %p226 = por %p224, %p225
      %s228 = sadd.s32 %s227, 1
      %p231 = scmp.eq.s32.totalorder %s109, 1
      %p232 = scmp.ne.s32.totalorder %s227, %s229
      %p233 = scmp.eq.s32.totalorder %s109, 0
      %p234 = por %p232, %p233
      %p235 = scmp.ne.s32.totalorder %s227, %s229
      %p236 = scmp.eq.s32.totalorder %s114, 1
      %p237 = por %p235, %p236
      %p238 = scmp.ne.s32.totalorder %s229, %s230
      %p239 = scmp.eq.s32.totalorder %s114, 0
      %p240 = por %p238, %p239
      %p241 = scmp.ne.s32.totalorder %s229, %s230
      %p242 = scmp.eq.s32.totalorder %s115, 1
      %p243 = por %p241, %p242
      %p245 = scmp.ne.s32.totalorder %s230, %s244
      %p246 = scmp.eq.s32.totalorder %s115, 0
      %p247 = por %p245, %p246
      %s249 = sadd.s32 %s248, 1
      %p252 = scmp.eq.s32.totalorder %s109, 1
      %p253 = scmp.ne.s32.totalorder %s248, %s250
      %p254 = scmp.eq.s32.totalorder %s109, 0
      %p255 = por %p253, %p254
      %p256 = scmp.ne.s32.totalorder %s248, %s250
      %p257 = scmp.eq.s32.totalorder %s114, 1
      %p258 = por %p256, %p257
      %p259 = scmp.ne.s32.totalorder %s250, %s251
      %p260 = scmp.eq.s32.totalorder %s114, 0
      %p261 = por %p259, %p260
      %p262 = scmp.ne.s32.totalorder %s250, %s251
      %p263 = scmp.eq.s32.totalorder %s115, 1
      %p264 = por %p262, %p263
      %p266 = scmp.ne.s32.totalorder %s251, %s265
      %p267 = scmp.eq.s32.totalorder %s115, 0
      %p268 = por %p266, %p267
      %s270 = sadd.s32 %s269, 1
      %p273 = scmp.eq.s32.totalorder %s109, 1
      %p274 = scmp.ne.s32.totalorder %s269, %s271
      %p275 = scmp.eq.s32.totalorder %s109, 0
      %p276 = por %p274, %p275
      %p277 = scmp.ne.s32.totalorder %s269, %s271
      %p278 = scmp.eq.s32.totalorder %s114, 1
      %p279 = por %p277, %p278
      %p280 = scmp.ne.s32.totalorder %s271, %s272
      %p281 = scmp.eq.s32.totalorder %s114, 0
      %p282 = por %p280, %p281
      %p283 = scmp.ne.s32.totalorder %s271, %s272
      %p284 = scmp.eq.s32.totalorder %s115, 1
      %p285 = por %p283, %p284
      %p287 = scmp.ne.s32.totalorder %s272, %s286
      %p288 = scmp.eq.s32.totalorder %s115, 0
      %p289 = por %p287, %p288
      %s291 = sadd.s32 %s290, 1
      %p294 = scmp.eq.s32.totalorder %s109, 1
      %p295 = scmp.ne.s32.totalorder %s290, %s292
      %p296 = scmp.eq.s32.totalorder %s109, 0
      %p297 = por %p295, %p296
      %p298 = scmp.ne.s32.totalorder %s290, %s292
      %p299 = scmp.eq.s32.totalorder %s114, 1
      %p300 = por %p298, %p299
      %p301 = scmp.ne.s32.totalorder %s292, %s293
      %p302 = scmp.eq.s32.totalorder %s114, 0
      %p303 = por %p301, %p302
      %p304 = scmp.ne.s32.totalorder %s292, %s293
      %p305 = scmp.eq.s32.totalorder %s115, 1
      %p306 = por %p304, %p305
      %p308 = scmp.ne.s32.totalorder %s293, %s307
      %p309 = scmp.eq.s32.totalorder %s115, 0
      %p310 = por %p308, %p309
      %s312 = sadd.s32 %s311, 1
      %p315 = scmp.eq.s32.totalorder %s109, 1
      %p316 = scmp.ne.s32.totalorder %s311, %s313
      %p317 = scmp.eq.s32.totalorder %s109, 0
      %p318 = por %p316, %p317
      %p319 = scmp.ne.s32.totalorder %s311, %s313
      %p320 = scmp.eq.s32.totalorder %s114, 1
      %p321 = por %p319, %p320
      %p322 = scmp.ne.s32.totalorder %s313, %s314
      %p323 = scmp.eq.s32.totalorder %s114, 0
      %p324 = por %p322, %p323
      %p325 = scmp.ne.s32.totalorder %s313, %s314
      %p326 = scmp.eq.s32.totalorder %s115, 1
      %p327 = por %p325, %p326
      %p329 = scmp.ne.s32.totalorder %s314, %s328
      %p330 = scmp.eq.s32.totalorder %s115, 0
      %p331 = por %p329, %p330
      %s333 = sadd.s32 %s332, 1
      %p336 = scmp.eq.s32.totalorder %s109, 1
      %p337 = scmp.ne.s32.totalorder %s332, %s334
      %p338 = scmp.eq.s32.totalorder %s109, 0
      %p339 = por %p337, %p338
      %p340 = scmp.ne.s32.totalorder %s332, %s334
      %p341 = scmp.eq.s32.totalorder %s114, 1
      %p342 = por %p340, %p341
      %p343 = scmp.ne.s32.totalorder %s334, %s335
      %p344 = scmp.eq.s32.totalorder %s114, 0
      %p345 = por %p343, %p344
      %p346 = scmp.ne.s32.totalorder %s334, %s335
      %p347 = scmp.eq.s32.totalorder %s115, 1
      %p348 = por %p346, %p347
      %p350 = scmp.ne.s32.totalorder %s335, %s349
      %p351 = scmp.eq.s32.totalorder %s115, 0
      %p352 = por %p350, %p351
      %s354 = sadd.s32 %s353, 1
      %p357 = scmp.eq.s32.totalorder %s109, 1
      %p358 = scmp.ne.s32.totalorder %s353, %s355
      %p359 = scmp.eq.s32.totalorder %s109, 0
      %p360 = por %p358, %p359
      %p361 = scmp.ne.s32.totalorder %s353, %s355
      %p362 = scmp.eq.s32.totalorder %s114, 1
      %p363 = por %p361, %p362
      %p364 = scmp.ne.s32.totalorder %s355, %s356
      %p365 = scmp.eq.s32.totalorder %s114, 0
      %p366 = por %p364, %p365
      %p367 = scmp.ne.s32.totalorder %s355, %s356
      %p368 = scmp.eq.s32.totalorder %s115, 1
      %p369 = por %p367, %p368
      %p371 = scmp.ne.s32.totalorder %s356, %s370
      %p372 = scmp.eq.s32.totalorder %s115, 0
      %p373 = por %p371, %p372
      %s375 = sadd.s32 %s374, 1
      %p378 = scmp.eq.s32.totalorder %s109, 1
      %p379 = scmp.ne.s32.totalorder %s374, %s376
      %p380 = scmp.eq.s32.totalorder %s109, 0
      %p381 = por %p379, %p380
      %p382 = scmp.ne.s32.totalorder %s374, %s376
      %p383 = scmp.eq.s32.totalorder %s114, 1
      %p384 = por %p382, %p383
      %p385 = scmp.ne.s32.totalorder %s376, %s377
      %p386 = scmp.eq.s32.totalorder %s114, 0
      %p387 = por %p385, %p386
      %p388 = scmp.ne.s32.totalorder %s376, %s377
      %p389 = scmp.eq.s32.totalorder %s115, 1
      %p390 = por %p388, %p389
      %p392 = scmp.ne.s32.totalorder %s377, %s391
      %p393 = scmp.eq.s32.totalorder %s115, 0
      %p394 = por %p392, %p393
      %s396 = sadd.s32 %s395, 1
      %p399 = scmp.eq.s32.totalorder %s109, 1
      %p400 = scmp.ne.s32.totalorder %s395, %s397
      %p401 = scmp.eq.s32.totalorder %s109, 0
      %p402 = por %p400, %p401
      %p403 = scmp.ne.s32.totalorder %s395, %s397
      %p404 = scmp.eq.s32.totalorder %s114, 1
      %p405 = por %p403, %p404
      %p406 = scmp.ne.s32.totalorder %s397, %s398
      %p407 = scmp.eq.s32.totalorder %s114, 0
      %p408 = por %p406, %p407
      %p409 = scmp.ne.s32.totalorder %s397, %s398
      %p410 = scmp.eq.s32.totalorder %s115, 1
      %p411 = por %p409, %p410
      %p413 = scmp.ne.s32.totalorder %s398, %s412
      %p414 = scmp.eq.s32.totalorder %s115, 0
      %p415 = por %p413, %p414
      %s417 = sadd.s32 %s416, 1
      %p420 = scmp.eq.s32.totalorder %s109, 1
      %p421 = scmp.ne.s32.totalorder %s416, %s418
      %p422 = scmp.eq.s32.totalorder %s109, 0
      %p423 = por %p421, %p422
      %p424 = scmp.ne.s32.totalorder %s416, %s418
      %p425 = scmp.eq.s32.totalorder %s114, 1
      %p426 = por %p424, %p425
      %p427 = scmp.ne.s32.totalorder %s418, %s419
      %p428 = scmp.eq.s32.totalorder %s114, 0
      %p429 = por %p427, %p428
      %p430 = scmp.ne.s32.totalorder %s418, %s419
      %p431 = scmp.eq.s32.totalorder %s115, 1
      %p432 = por %p430, %p431
      %p434 = scmp.ne.s32.totalorder %s419, %s433
      %p435 = scmp.eq.s32.totalorder %s115, 0
      %p436 = por %p434, %p435
      %s438 = sadd.s32 %s437, 1
      %p441 = scmp.eq.s32.totalorder %s109, 1
      %p442 = scmp.ne.s32.totalorder %s437, %s439
      %p443 = scmp.eq.s32.totalorder %s109, 0
      %p444 = por %p442, %p443
      %p445 = scmp.ne.s32.totalorder %s437, %s439
      %p446 = scmp.eq.s32.totalorder %s114, 1
      %p447 = por %p445, %p446
      %p448 = scmp.ne.s32.totalorder %s439, %s440
      %p449 = scmp.eq.s32.totalorder %s114, 0
      %p450 = por %p448, %p449
      %p451 = scmp.ne.s32.totalorder %s439, %s440
      %p452 = scmp.eq.s32.totalorder %s115, 1
      %p453 = por %p451, %p452
      %p455 = scmp.ne.s32.totalorder %s440, %s454
      %p456 = scmp.eq.s32.totalorder %s115, 0
      %p457 = por %p455, %p456
      %s459 = sadd.s32 %s458, 1
      %p462 = scmp.eq.s32.totalorder %s109, 1
      %p463 = scmp.ne.s32.totalorder %s458, %s460
      %p464 = scmp.eq.s32.totalorder %s109, 0
      %p465 = por %p463, %p464
      %p466 = scmp.ne.s32.totalorder %s458, %s460
      %p467 = scmp.eq.s32.totalorder %s114, 1
      %p468 = por %p466, %p467
      %p469 = scmp.ne.s32.totalorder %s460, %s461
      %p470 = scmp.eq.s32.totalorder %s114, 0
      %p471 = por %p469, %p470
      %p472 = scmp.ne.s32.totalorder %s460, %s461
      %p473 = scmp.eq.s32.totalorder %s115, 1
      %p474 = por %p472, %p473
      %p476 = scmp.ne.s32.totalorder %s461, %s475
      %p477 = scmp.eq.s32.totalorder %s115, 0
      %p478 = por %p476, %p477
      %s480 = sadd.s32 %s479, 1
      %p483 = scmp.eq.s32.totalorder %s109, 1
      %p484 = scmp.ne.s32.totalorder %s479, %s481
      %p485 = scmp.eq.s32.totalorder %s109, 0
      %p486 = por %p484, %p485
      %p487 = scmp.ne.s32.totalorder %s479, %s481
      %p488 = scmp.eq.s32.totalorder %s114, 1
      %p489 = por %p487, %p488
      %p490 = scmp.ne.s32.totalorder %s481, %s482
      %p491 = scmp.eq.s32.totalorder %s114, 0
      %p492 = por %p490, %p491
      %p493 = scmp.ne.s32.totalorder %s481, %s482
      %p494 = scmp.eq.s32.totalorder %s115, 1
      %p495 = por %p493, %p494
      %p497 = scmp.ne.s32.totalorder %s482, %s496
      %p498 = scmp.eq.s32.totalorder %s115, 0
      %p499 = por %p497, %p498
      %s501 = sadd.s32 %s500, 1
      %p504 = scmp.eq.s32.totalorder %s109, 1
      %p505 = scmp.ne.s32.totalorder %s500, %s502
      %p506 = scmp.eq.s32.totalorder %s109, 0
      %p507 = por %p505, %p506
      %p508 = scmp.ne.s32.totalorder %s500, %s502
      %p509 = scmp.eq.s32.totalorder %s114, 1
      %p510 = por %p508, %p509
      %p511 = scmp.ne.s32.totalorder %s502, %s503
      %p512 = scmp.eq.s32.totalorder %s114, 0
      %p513 = por %p511, %p512
      %p514 = scmp.ne.s32.totalorder %s502, %s503
      %p515 = scmp.eq.s32.totalorder %s115, 1
      %p516 = por %p514, %p515
      %p518 = scmp.ne.s32.totalorder %s503, %s517
      %p519 = scmp.eq.s32.totalorder %s115, 0
      %p520 = por %p518, %p519
      %s522 = sadd.s32 %s521, 1
      %p525 = scmp.eq.s32.totalorder %s109, 1
      %p526 = scmp.ne.s32.totalorder %s521, %s523
      %p527 = scmp.eq.s32.totalorder %s109, 0
      %p528 = por %p526, %p527
      %p529 = scmp.ne.s32.totalorder %s521, %s523
      %p530 = scmp.eq.s32.totalorder %s114, 1
      %p531 = por %p529, %p530
      %p532 = scmp.ne.s32.totalorder %s523, %s524
      %p533 = scmp.eq.s32.totalorder %s114, 0
      %p534 = por %p532, %p533
      %p535 = scmp.ne.s32.totalorder %s523, %s524
      %p536 = scmp.eq.s32.totalorder %s115, 1
      %p537 = por %p535, %p536
      %p539 = scmp.ne.s32.totalorder %s524, %s538
      %p540 = scmp.eq.s32.totalorder %s115, 0
      %p541 = por %p539, %p540
      %s543 = sadd.s32 %s542, 1
      %p546 = scmp.eq.s32.totalorder %s109, 1
      %p547 = scmp.ne.s32.totalorder %s542, %s544
      %p548 = scmp.eq.s32.totalorder %s109, 0
      %p549 = por %p547, %p548
      %p550 = scmp.ne.s32.totalorder %s542, %s544
      %p551 = scmp.eq.s32.totalorder %s114, 1
      %p552 = por %p550, %p551
      %p553 = scmp.ne.s32.totalorder %s544, %s545
      %p554 = scmp.eq.s32.totalorder %s114, 0
      %p555 = por %p553, %p554
      %p556 = scmp.ne.s32.totalorder %s544, %s545
      %p557 = scmp.eq.s32.totalorder %s115, 1
      %p558 = por %p556, %p557
      %p560 = scmp.ne.s32.totalorder %s545, %s559
      %p561 = scmp.eq.s32.totalorder %s115, 0
      %p562 = por %p560, %p561
      %s564 = sadd.s32 %s563, 1
      %p567 = scmp.eq.s32.totalorder %s109, 1
      %p568 = scmp.ne.s32.totalorder %s563, %s565
      %p569 = scmp.eq.s32.totalorder %s109, 0
      %p570 = por %p568, %p569
      %p571 = scmp.ne.s32.totalorder %s563, %s565
      %p572 = scmp.eq.s32.totalorder %s114, 1
      %p573 = por %p571, %p572
      %p574 = scmp.ne.s32.totalorder %s565, %s566
      %p575 = scmp.eq.s32.totalorder %s114, 0
      %p576 = por %p574, %p575
      %p577 = scmp.ne.s32.totalorder %s565, %s566
      %p578 = scmp.eq.s32.totalorder %s115, 1
      %p579 = por %p577, %p578
      %p581 = scmp.ne.s32.totalorder %s566, %s580
      %p582 = scmp.eq.s32.totalorder %s115, 0
      %p583 = por %p581, %p582
      %s585 = sadd.s32 %s584, 1
      %p588 = scmp.eq.s32.totalorder %s109, 1
      %p589 = scmp.ne.s32.totalorder %s584, %s586
      %p590 = scmp.eq.s32.totalorder %s109, 0
      %p591 = por %p589, %p590
      %p592 = scmp.ne.s32.totalorder %s584, %s586
      %p593 = scmp.eq.s32.totalorder %s114, 1
      %p594 = por %p592, %p593
      %p595 = scmp.ne.s32.totalorder %s586, %s587
      %p596 = scmp.eq.s32.totalorder %s114, 0
      %p597 = por %p595, %p596
      %p598 = scmp.ne.s32.totalorder %s586, %s587
      %p599 = scmp.eq.s32.totalorder %s115, 1
      %p600 = por %p598, %p599
      %p602 = scmp.ne.s32.totalorder %s587, %s601
      %p603 = scmp.eq.s32.totalorder %s115, 0
      %p604 = por %p602, %p603
      %s606 = sadd.s32 %s605, 1
      %p609 = scmp.eq.s32.totalorder %s109, 1
      %p610 = scmp.ne.s32.totalorder %s605, %s607
      %p611 = scmp.eq.s32.totalorder %s109, 0
      %p612 = por %p610, %p611
      %p613 = scmp.ne.s32.totalorder %s605, %s607
      %p614 = scmp.eq.s32.totalorder %s114, 1
      %p615 = por %p613, %p614
      %p616 = scmp.ne.s32.totalorder %s607, %s608
      %p617 = scmp.eq.s32.totalorder %s114, 0
      %p618 = por %p616, %p617
      %p619 = scmp.ne.s32.totalorder %s607, %s608
      %p620 = scmp.eq.s32.totalorder %s115, 1
      %p621 = por %p619, %p620
      %p623 = scmp.ne.s32.totalorder %s608, %s622
      %p624 = scmp.eq.s32.totalorder %s115, 0
      %p625 = por %p623, %p624
      %s627 = sadd.s32 %s626, 1
      %p630 = scmp.eq.s32.totalorder %s109, 1
      %p631 = scmp.ne.s32.totalorder %s626, %s628
      %p632 = scmp.eq.s32.totalorder %s109, 0
      %p633 = por %p631, %p632
      %p634 = scmp.ne.s32.totalorder %s626, %s628
      %p635 = scmp.eq.s32.totalorder %s114, 1
      %p636 = por %p634, %p635
      %p637 = scmp.ne.s32.totalorder %s628, %s629
      %p638 = scmp.eq.s32.totalorder %s114, 0
      %p639 = por %p637, %p638
      %p640 = scmp.ne.s32.totalorder %s628, %s629
      %p641 = scmp.eq.s32.totalorder %s115, 1
      %p642 = por %p640, %p641
      %p644 = scmp.ne.s32.totalorder %s629, %s643
      %p645 = scmp.eq.s32.totalorder %s115, 0
      %p646 = por %p644, %p645
      %s648 = sadd.s32 %s647, 1
      %p651 = scmp.eq.s32.totalorder %s109, 1
      %p652 = scmp.ne.s32.totalorder %s647, %s649
      %p653 = scmp.eq.s32.totalorder %s109, 0
      %p654 = por %p652, %p653
      %p655 = scmp.ne.s32.totalorder %s647, %s649
      %p656 = scmp.eq.s32.totalorder %s114, 1
      %p657 = por %p655, %p656
      %p658 = scmp.ne.s32.totalorder %s649, %s650
      %p659 = scmp.eq.s32.totalorder %s114, 0
      %p660 = por %p658, %p659
      %p661 = scmp.ne.s32.totalorder %s649, %s650
      %p662 = scmp.eq.s32.totalorder %s115, 1
      %p663 = por %p661, %p662
      %p665 = scmp.ne.s32.totalorder %s650, %s664
      %p666 = scmp.eq.s32.totalorder %s115, 0
      %p667 = por %p665, %p666
      %s669 = sadd.s32 %s668, 1
      %p672 = scmp.eq.s32.totalorder %s109, 1
      %p673 = scmp.ne.s32.totalorder %s668, %s670
      %p674 = scmp.eq.s32.totalorder %s109, 0
      %p675 = por %p673, %p674
      %p676 = scmp.ne.s32.totalorder %s668, %s670
      %p677 = scmp.eq.s32.totalorder %s114, 1
      %p678 = por %p676, %p677
      %p679 = scmp.ne.s32.totalorder %s670, %s671
      %p680 = scmp.eq.s32.totalorder %s114, 0
      %p681 = por %p679, %p680
      %p682 = scmp.ne.s32.totalorder %s670, %s671
      %p683 = scmp.eq.s32.totalorder %s115, 1
      %p684 = por %p682, %p683
      %p686 = scmp.ne.s32.totalorder %s671, %s685
      %p687 = scmp.eq.s32.totalorder %s115, 0
      %p688 = por %p686, %p687
      %s690 = sadd.s32 %s689, 1
      %p693 = scmp.eq.s32.totalorder %s109, 1
      %p694 = scmp.ne.s32.totalorder %s689, %s691
      %p695 = scmp.eq.s32.totalorder %s109, 0
      %p696 = por %p694, %p695
      %p697 = scmp.ne.s32.totalorder %s689, %s691
      %p698 = scmp.eq.s32.totalorder %s114, 1
      %p699 = por %p697, %p698
      %p700 = scmp.ne.s32.totalorder %s691, %s692
      %p701 = scmp.eq.s32.totalorder %s114, 0
      %p702 = por %p700, %p701
      %p703 = scmp.ne.s32.totalorder %s691, %s692
      %p704 = scmp.eq.s32.totalorder %s115, 1
      %p705 = por %p703, %p704
      %p707 = scmp.ne.s32.totalorder %s692, %s706
      %p708 = scmp.eq.s32.totalorder %s115, 0
      %p709 = por %p707, %p708
      %s711 = sadd.s32 %s710, 1
      %p714 = scmp.eq.s32.totalorder %s109, 1
      %p715 = scmp.ne.s32.totalorder %s710, %s712
      %p716 = scmp.eq.s32.totalorder %s109, 0
      %p717 = por %p715, %p716
      %p718 = scmp.ne.s32.totalorder %s710, %s712
      %p719 = scmp.eq.s32.totalorder %s114, 1
      %p720 = por %p718, %p719
      %p721 = scmp.ne.s32.totalorder %s712, %s713
      %p722 = scmp.eq.s32.totalorder %s114, 0
      %p723 = por %p721, %p722
      %p724 = scmp.ne.s32.totalorder %s712, %s713
      %p725 = scmp.eq.s32.totalorder %s115, 1
      %p726 = por %p724, %p725
      %p728 = scmp.ne.s32.totalorder %s713, %s727
      %p729 = scmp.eq.s32.totalorder %s115, 0
      %p730 = por %p728, %p729
      %s732 = sadd.s32 %s731, 1
      %p735 = scmp.eq.s32.totalorder %s109, 1
      %p736 = scmp.ne.s32.totalorder %s731, %s733
      %p737 = scmp.eq.s32.totalorder %s109, 0
      %p738 = por %p736, %p737
      %p739 = scmp.ne.s32.totalorder %s731, %s733
      %p740 = scmp.eq.s32.totalorder %s114, 1
      %p741 = por %p739, %p740
      %p742 = scmp.ne.s32.totalorder %s733, %s734
      %p743 = scmp.eq.s32.totalorder %s114, 0
      %p744 = por %p742, %p743
      %p745 = scmp.ne.s32.totalorder %s733, %s734
      %p746 = scmp.eq.s32.totalorder %s115, 1
      %p747 = por %p745, %p746
      %p749 = scmp.ne.s32.totalorder %s734, %s748
      %p750 = scmp.eq.s32.totalorder %s115, 0
      %p751 = por %p749, %p750
      %s753 = sadd.s32 %s752, 1
      %p756 = scmp.eq.s32.totalorder %s109, 1
      %p757 = scmp.ne.s32.totalorder %s752, %s754
      %p758 = scmp.eq.s32.totalorder %s109, 0
      %p759 = por %p757, %p758
      %p760 = scmp.ne.s32.totalorder %s752, %s754
      %p761 = scmp.eq.s32.totalorder %s114, 1
      %p762 = por %p760, %p761
      %p763 = scmp.ne.s32.totalorder %s754, %s755
      %p764 = scmp.eq.s32.totalorder %s114, 0
      %p765 = por %p763, %p764
      %p766 = scmp.ne.s32.totalorder %s754, %s755
      %p767 = scmp.eq.s32.totalorder %s115, 1
      %p768 = por %p766, %p767
      %p770 = scmp.ne.s32.totalorder %s755, %s769
      %p771 = scmp.eq.s32.totalorder %s115, 0
      %p772 = por %p770, %p771
      %s774 = sadd.s32 %s773, 1
      %p777 = scmp.eq.s32.totalorder %s109, 1
      %p778 = scmp.ne.s32.totalorder %s773, %s775
      %p779 = scmp.eq.s32.totalorder %s109, 0
      %p780 = por %p778, %p779
      %p781 = scmp.ne.s32.totalorder %s773, %s775
      %p782 = scmp.eq.s32.totalorder %s114, 1
      %p783 = por %p781, %p782
      %p784 = scmp.ne.s32.totalorder %s775, %s776
      %p785 = scmp.eq.s32.totalorder %s114, 0
      %p786 = por %p784, %p785
      %p787 = scmp.ne.s32.totalorder %s775, %s776
      %p788 = scmp.eq.s32.totalorder %s115, 1
      %p789 = por %p787, %p788
      %p791 = scmp.ne.s32.totalorder %s776, %s790
      %p792 = scmp.eq.s32.totalorder %s115, 0
      %p793 = por %p791, %p792
      %s795 = sadd.s32 %s794, 1
      %p798 = scmp.eq.s32.totalorder %s109, 1
      %p799 = scmp.ne.s32.totalorder %s794, %s796
      %p800 = scmp.eq.s32.totalorder %s109, 0
      %p801 = por %p799, %p800
      %p802 = scmp.ne.s32.totalorder %s794, %s796
      %p803 = scmp.eq.s32.totalorder %s114, 1
      %p804 = por %p802, %p803
      %p805 = scmp.ne.s32.totalorder %s796, %s797
      %p806 = scmp.eq.s32.totalorder %s114, 0
      %p807 = por %p805, %p806
      %p808 = scmp.ne.s32.totalorder %s796, %s797
      %p809 = scmp.eq.s32.totalorder %s115, 1
      %p810 = por %p808, %p809
      %p812 = scmp.ne.s32.totalorder %s797, %s811
      %p813 = scmp.eq.s32.totalorder %s115, 0
      %p814 = por %p812, %p813
      %s816 = sadd.s32 %s815, 1
      %p819 = scmp.eq.s32.totalorder %s109, 1
      %p820 = scmp.ne.s32.totalorder %s815, %s817
      %p821 = scmp.eq.s32.totalorder %s109, 0
      %p822 = por %p820, %p821
      %p823 = scmp.ne.s32.totalorder %s815, %s817
      %p824 = scmp.eq.s32.totalorder %s114, 1
      %p825 = por %p823, %p824
      %p826 = scmp.ne.s32.totalorder %s817, %s818
      %p827 = scmp.eq.s32.totalorder %s114, 0
      %p828 = por %p826, %p827
      %p829 = scmp.ne.s32.totalorder %s817, %s818
      %p830 = scmp.eq.s32.totalorder %s115, 1
      %p831 = por %p829, %p830
      %p833 = scmp.ne.s32.totalorder %s818, %s832
      %p834 = scmp.eq.s32.totalorder %s115, 0
      %p835 = por %p833, %p834
      %s837 = sadd.s32 %s836, 1
      %p840 = scmp.eq.s32.totalorder %s109, 1
      %p841 = scmp.ne.s32.totalorder %s836, %s838
      %p842 = scmp.eq.s32.totalorder %s109, 0
      %p843 = por %p841, %p842
      %p844 = scmp.ne.s32.totalorder %s836, %s838
      %p845 = scmp.eq.s32.totalorder %s114, 1
      %p846 = por %p844, %p845
      %p847 = scmp.ne.s32.totalorder %s838, %s839
      %p848 = scmp.eq.s32.totalorder %s114, 0
      %p849 = por %p847, %p848
      %p850 = scmp.ne.s32.totalorder %s838, %s839
      %p851 = scmp.eq.s32.totalorder %s115, 1
      %p852 = por %p850, %p851
      %p854 = scmp.ne.s32.totalorder %s839, %s853
      %p855 = scmp.eq.s32.totalorder %s115, 0
      %p856 = por %p854, %p855
      %s858 = sadd.s32 %s857, 1
      %p861 = scmp.eq.s32.totalorder %s109, 1
      %p862 = scmp.ne.s32.totalorder %s857, %s859
      %p863 = scmp.eq.s32.totalorder %s109, 0
      %p864 = por %p862, %p863
      %p865 = scmp.ne.s32.totalorder %s857, %s859
      %p866 = scmp.eq.s32.totalorder %s114, 1
      %p867 = por %p865, %p866
      %p868 = scmp.ne.s32.totalorder %s859, %s860
      %p869 = scmp.eq.s32.totalorder %s114, 0
      %p870 = por %p868, %p869
      %p871 = scmp.ne.s32.totalorder %s859, %s860
      %p872 = scmp.eq.s32.totalorder %s115, 1
      %p873 = por %p871, %p872
      %p875 = scmp.ne.s32.totalorder %s860, %s874
      %p876 = scmp.eq.s32.totalorder %s115, 0
      %p877 = por %p875, %p876
      %s879 = sadd.s32 %s878, 1
      %p882 = scmp.eq.s32.totalorder %s109, 1
      %p883 = scmp.ne.s32.totalorder %s878, %s880
      %p884 = scmp.eq.s32.totalorder %s109, 0
      %p885 = por %p883, %p884
      %p886 = scmp.ne.s32.totalorder %s878, %s880
      %p887 = scmp.eq.s32.totalorder %s114, 1
      %p888 = por %p886, %p887
      %p889 = scmp.ne.s32.totalorder %s880, %s881
      %p890 = scmp.eq.s32.totalorder %s114, 0
      %p891 = por %p889, %p890
      %p892 = scmp.ne.s32.totalorder %s880, %s881
      %p893 = scmp.eq.s32.totalorder %s115, 1
      %p894 = por %p892, %p893
      %p896 = scmp.ne.s32.totalorder %s881, %s895
      %p897 = scmp.eq.s32.totalorder %s115, 0
      %p898 = por %p896, %p897
      %s900 = sadd.s32 %s899, 1
      %p903 = scmp.eq.s32.totalorder %s109, 1
      %p904 = scmp.ne.s32.totalorder %s899, %s901
      %p905 = scmp.eq.s32.totalorder %s109, 0
      %p906 = por %p904, %p905
      %p907 = scmp.ne.s32.totalorder %s899, %s901
      %p908 = scmp.eq.s32.totalorder %s114, 1
      %p909 = por %p907, %p908
      %p910 = scmp.ne.s32.totalorder %s901, %s902
      %p911 = scmp.eq.s32.totalorder %s114, 0
      %p912 = por %p910, %p911
      %p913 = scmp.ne.s32.totalorder %s901, %s902
      %p914 = scmp.eq.s32.totalorder %s115, 1
      %p915 = por %p913, %p914
      %p917 = scmp.ne.s32.totalorder %s902, %s916
      %p918 = scmp.eq.s32.totalorder %s115, 0
      %p919 = por %p917, %p918
      %s921 = sadd.s32 %s920, 1
      %p924 = scmp.eq.s32.totalorder %s109, 1
      %p925 = scmp.ne.s32.totalorder %s920, %s922
      %p926 = scmp.eq.s32.totalorder %s109, 0
      %p927 = por %p925, %p926
      %p928 = scmp.ne.s32.totalorder %s920, %s922
      %p929 = scmp.eq.s32.totalorder %s114, 1
      %p930 = por %p928, %p929
      %p931 = scmp.ne.s32.totalorder %s922, %s923
      %p932 = scmp.eq.s32.totalorder %s114, 0
      %p933 = por %p931, %p932
      %p934 = scmp.ne.s32.totalorder %s922, %s923
      %p935 = scmp.eq.s32.totalorder %s115, 1
      %p936 = por %p934, %p935
      %p938 = scmp.ne.s32.totalorder %s923, %s937
      %p939 = scmp.eq.s32.totalorder %s115, 0
      %p940 = por %p938, %p939
      %s942 = sadd.s32 %s941, 1
      %p945 = scmp.eq.s32.totalorder %s109, 1
      %p946 = scmp.ne.s32.totalorder %s941, %s943
      %p947 = scmp.eq.s32.totalorder %s109, 0
      %p948 = por %p946, %p947
      %p949 = scmp.ne.s32.totalorder %s941, %s943
      %p950 = scmp.eq.s32.totalorder %s114, 1
      %p951 = por %p949, %p950
      %p952 = scmp.ne.s32.totalorder %s943, %s944
      %p953 = scmp.eq.s32.totalorder %s114, 0
      %p954 = por %p952, %p953
      %p955 = scmp.ne.s32.totalorder %s943, %s944
      %p956 = scmp.eq.s32.totalorder %s115, 1
      %p957 = por %p955, %p956
      %p959 = scmp.ne.s32.totalorder %s944, %s958
      %p960 = scmp.eq.s32.totalorder %s115, 0
      %p961 = por %p959, %p960
      %s963 = sadd.s32 %s962, 1
      %p966 = scmp.eq.s32.totalorder %s109, 1
      %p967 = scmp.ne.s32.totalorder %s962, %s964
      %p968 = scmp.eq.s32.totalorder %s109, 0
      %p969 = por %p967, %p968
      %p970 = scmp.ne.s32.totalorder %s962, %s964
      %p971 = scmp.eq.s32.totalorder %s114, 1
      %p972 = por %p970, %p971
      %p973 = scmp.ne.s32.totalorder %s964, %s965
      %p974 = scmp.eq.s32.totalorder %s114, 0
      %p975 = por %p973, %p974
      %p976 = scmp.ne.s32.totalorder %s964, %s965
      %p977 = scmp.eq.s32.totalorder %s115, 1
      %p978 = por %p976, %p977
      %p980 = scmp.ne.s32.totalorder %s965, %s979
      %p981 = scmp.eq.s32.totalorder %s115, 0
      %p982 = por %p980, %p981
      %s983 = ssub.s32 %s109, %s116
      %p984 = scmp.eq.s32.totalorder %s983, 0
      %s986 = sadd.s32 %s985, 1
      %s987 = scalar_select %p984, %s985, %s986
      %p990 = pneg %p984
      %p991 = scmp.eq.s32.totalorder %s109, 1
      %p992 = por %p990, %p991
      %p993 = scmp.ne.s32.totalorder %s985, %s988
      %p994 = scmp.eq.s32.totalorder %s109, 0
      %p995 = por %p993, %p994
      %p996 = scmp.ne.s32.totalorder %s985, %s988
      %p997 = scmp.eq.s32.totalorder %s114, 1
      %p998 = por %p996, %p997
      %p999 = scmp.ne.s32.totalorder %s988, %s989
      %p1000 = scmp.eq.s32.totalorder %s114, 0
      %p1001 = por %p999, %p1000
      %p1002 = scmp.ne.s32.totalorder %s988, %s989
      %p1003 = scmp.eq.s32.totalorder %s115, 1
      %p1004 = por %p1002, %p1003
      %p1006 = scmp.ne.s32.totalorder %s989, %s1005
      %p1007 = scmp.eq.s32.totalorder %s115, 0
      %p1008 = por %p1006, %p1007
      %p1009 = scmp.le.s32.totalorder 1, %s109
      %p1010 = scmp.lt.s32.totalorder %s109, 3
      %p1011 = pnand %p1009, %p1010
      %p1012 = pneg %p1011
      // Predicated region
      $region9: #{tpu_custom_call.1} parent=5 // pred_check
        _
      $region10: #{tpu_custom_call.1} parent=5 // pred_check_branch
        %1014 = sbr.rel (%p1011) target = $region12
      $region11: #{tpu_custom_call.1} parent=5 // pred_region
        %s1015 = ssub.s32 %s109, 1
        // Predicated region
        $region13: #{tpu_custom_call.1} parent=11 // pred_check
          %p1016 = pneg %p156
        $region14: #{tpu_custom_call.1} parent=11 // pred_check_branch
          %1018 = sbr.rel (%p1016) target = $region16
        $region15: #{tpu_custom_call.1} parent=11 // pred_region
          _
        $region16: #{tpu_custom_call.1} parent=11 // pred_fallthru
          _
        // Predicated region
        $region17: #{tpu_custom_call.1} parent=11 // pred_check
          %p1019 = pneg %p177
        $region18: #{tpu_custom_call.1} parent=11 // pred_check_branch
          %1021 = sbr.rel (%p1019) target = $region20
        $region19: #{tpu_custom_call.1} parent=11 // pred_region
          _
        $region20: #{tpu_custom_call.1} parent=11 // pred_fallthru
          _
        // Predicated region
        $region21: #{tpu_custom_call.1} parent=11 // pred_check
          %p1022 = pneg %p198
        $region22: #{tpu_custom_call.1} parent=11 // pred_check_branch
          %1024 = sbr.rel (%p1022) target = $region24
        $region23: #{tpu_custom_call.1} parent=11 // pred_region
          _
        $region24: #{tpu_custom_call.1} parent=11 // pred_fallthru
          _
        // Predicated region
        $region25: #{tpu_custom_call.1} parent=11 // pred_check
          %p1025 = pneg %p219
        $region26: #{tpu_custom_call.1} parent=11 // pred_check_branch
          %1027 = sbr.rel (%p1025) target = $region28
        $region27: #{tpu_custom_call.1} parent=11 // pred_region
          _
        $region28: #{tpu_custom_call.1} parent=11 // pred_fallthru
          _
        // Predicated region
        $region29: #{tpu_custom_call.1} parent=11 // pred_check
          %p1028 = pneg %p240
        $region30: #{tpu_custom_call.1} parent=11 // pred_check_branch
          %1030 = sbr.rel (%p1028) target = $region32
        $region31: #{tpu_custom_call.1} parent=11 // pred_region
          _
        $region32: #{tpu_custom_call.1} parent=11 // pred_fallthru
          _
        // Predicated region
        $region33: #{tpu_custom_call.1} parent=11 // pred_check
          %p1031 = pneg %p261
        $region34: #{tpu_custom_call.1} parent=11 // pred_check_branch
          %1033 = sbr.rel (%p1031) target = $region36
        $region35: #{tpu_custom_call.1} parent=11 // pred_region
          _
        $region36: #{tpu_custom_call.1} parent=11 // pred_fallthru
          _
        // Predicated region
        $region37: #{tpu_custom_call.1} parent=11 // pred_check
          %p1034 = pneg %p282
        $region38: #{tpu_custom_call.1} parent=11 // pred_check_branch
          %1036 = sbr.rel (%p1034) target = $region40
        $region39: #{tpu_custom_call.1} parent=11 // pred_region
          _
        $region40: #{tpu_custom_call.1} parent=11 // pred_fallthru
          _
        // Predicated region
        $region41: #{tpu_custom_call.1} parent=11 // pred_check
          %p1037 = pneg %p303
        $region42: #{tpu_custom_call.1} parent=11 // pred_check_branch
          %1039 = sbr.rel (%p1037) target = $region44
        $region43: #{tpu_custom_call.1} parent=11 // pred_region
          _
        $region44: #{tpu_custom_call.1} parent=11 // pred_fallthru
          _
        // Predicated region
        $region45: #{tpu_custom_call.1} parent=11 // pred_check
          %p1040 = pneg %p324
        $region46: #{tpu_custom_call.1} parent=11 // pred_check_branch
          %1042 = sbr.rel (%p1040) target = $region48
        $region47: #{tpu_custom_call.1} parent=11 // pred_region
          _
        $region48: #{tpu_custom_call.1} parent=11 // pred_fallthru
          _
        // Predicated region
        $region49: #{tpu_custom_call.1} parent=11 // pred_check
          %p1043 = pneg %p345
        $region50: #{tpu_custom_call.1} parent=11 // pred_check_branch
          %1045 = sbr.rel (%p1043) target = $region52
        $region51: #{tpu_custom_call.1} parent=11 // pred_region
          _
        $region52: #{tpu_custom_call.1} parent=11 // pred_fallthru
          _
        // Predicated region
        $region53: #{tpu_custom_call.1} parent=11 // pred_check
          %p1046 = pneg %p366
        $region54: #{tpu_custom_call.1} parent=11 // pred_check_branch
          %1048 = sbr.rel (%p1046) target = $region56
        $region55: #{tpu_custom_call.1} parent=11 // pred_region
          _
        $region56: #{tpu_custom_call.1} parent=11 // pred_fallthru
          _
        // Predicated region
        $region57: #{tpu_custom_call.1} parent=11 // pred_check
          %p1049 = pneg %p387
        $region58: #{tpu_custom_call.1} parent=11 // pred_check_branch
          %1051 = sbr.rel (%p1049) target = $region60
        $region59: #{tpu_custom_call.1} parent=11 // pred_region
          _
        $region60: #{tpu_custom_call.1} parent=11 // pred_fallthru
          _
        // Predicated region
        $region61: #{tpu_custom_call.1} parent=11 // pred_check
          %p1052 = pneg %p408
        $region62: #{tpu_custom_call.1} parent=11 // pred_check_branch
          %1054 = sbr.rel (%p1052) target = $region64
        $region63: #{tpu_custom_call.1} parent=11 // pred_region
          _
        $region64: #{tpu_custom_call.1} parent=11 // pred_fallthru
          _
        // Predicated region
        $region65: #{tpu_custom_call.1} parent=11 // pred_check
          %p1055 = pneg %p429
        $region66: #{tpu_custom_call.1} parent=11 // pred_check_branch
          %1057 = sbr.rel (%p1055) target = $region68
        $region67: #{tpu_custom_call.1} parent=11 // pred_region
          _
        $region68: #{tpu_custom_call.1} parent=11 // pred_fallthru
          _
        // Predicated region
        $region69: #{tpu_custom_call.1} parent=11 // pred_check
          %p1058 = pneg %p450
        $region70: #{tpu_custom_call.1} parent=11 // pred_check_branch
          %1060 = sbr.rel (%p1058) target = $region72
        $region71: #{tpu_custom_call.1} parent=11 // pred_region
          _
        $region72: #{tpu_custom_call.1} parent=11 // pred_fallthru
          _
        // Predicated region
        $region73: #{tpu_custom_call.1} parent=11 // pred_check
          %p1061 = pneg %p471
        $region74: #{tpu_custom_call.1} parent=11 // pred_check_branch
          %1063 = sbr.rel (%p1061) target = $region76
        $region75: #{tpu_custom_call.1} parent=11 // pred_region
          _
        $region76: #{tpu_custom_call.1} parent=11 // pred_fallthru
          _
        // Predicated region
        $region77: #{tpu_custom_call.1} parent=11 // pred_check
          %p1064 = pneg %p492
        $region78: #{tpu_custom_call.1} parent=11 // pred_check_branch
          %1066 = sbr.rel (%p1064) target = $region80
        $region79: #{tpu_custom_call.1} parent=11 // pred_region
          _
        $region80: #{tpu_custom_call.1} parent=11 // pred_fallthru
          _
        // Predicated region
        $region81: #{tpu_custom_call.1} parent=11 // pred_check
          %p1067 = pneg %p513
        $region82: #{tpu_custom_call.1} parent=11 // pred_check_branch
          %1069 = sbr.rel (%p1067) target = $region84
        $region83: #{tpu_custom_call.1} parent=11 // pred_region
          _
        $region84: #{tpu_custom_call.1} parent=11 // pred_fallthru
          _
        // Predicated region
        $region85: #{tpu_custom_call.1} parent=11 // pred_check
          %p1070 = pneg %p534
        $region86: #{tpu_custom_call.1} parent=11 // pred_check_branch
          %1072 = sbr.rel (%p1070) target = $region88
        $region87: #{tpu_custom_call.1} parent=11 // pred_region
          _
        $region88: #{tpu_custom_call.1} parent=11 // pred_fallthru
          _
        // Predicated region
        $region89: #{tpu_custom_call.1} parent=11 // pred_check
          %p1073 = pneg %p555
        $region90: #{tpu_custom_call.1} parent=11 // pred_check_branch
          %1075 = sbr.rel (%p1073) target = $region92
        $region91: #{tpu_custom_call.1} parent=11 // pred_region
          _
        $region92: #{tpu_custom_call.1} parent=11 // pred_fallthru
          _
        // Predicated region
        $region93: #{tpu_custom_call.1} parent=11 // pred_check
          %p1076 = pneg %p576
        $region94: #{tpu_custom_call.1} parent=11 // pred_check_branch
          %1078 = sbr.rel (%p1076) target = $region96
        $region95: #{tpu_custom_call.1} parent=11 // pred_region
          _
        $region96: #{tpu_custom_call.1} parent=11 // pred_fallthru
          _
        // Predicated region
        $region97: #{tpu_custom_call.1} parent=11 // pred_check
          %p1079 = pneg %p597
        $region98: #{tpu_custom_call.1} parent=11 // pred_check_branch
          %1081 = sbr.rel (%p1079) target = $region100
        $region99: #{tpu_custom_call.1} parent=11 // pred_region
          _
        $region100: #{tpu_custom_call.1} parent=11 // pred_fallthru
          _
        // Predicated region
        $region101: #{tpu_custom_call.1} parent=11 // pred_check
          %p1082 = pneg %p618
        $region102: #{tpu_custom_call.1} parent=11 // pred_check_branch
          %1084 = sbr.rel (%p1082) target = $region104
        $region103: #{tpu_custom_call.1} parent=11 // pred_region
          _
        $region104: #{tpu_custom_call.1} parent=11 // pred_fallthru
          _
        // Predicated region
        $region105: #{tpu_custom_call.1} parent=11 // pred_check
          %p1085 = pneg %p639
        $region106: #{tpu_custom_call.1} parent=11 // pred_check_branch
          %1087 = sbr.rel (%p1085) target = $region108
        $region107: #{tpu_custom_call.1} parent=11 // pred_region
          _
        $region108: #{tpu_custom_call.1} parent=11 // pred_fallthru
          _
        // Predicated region
        $region109: #{tpu_custom_call.1} parent=11 // pred_check
          %p1088 = pneg %p660
        $region110: #{tpu_custom_call.1} parent=11 // pred_check_branch
          %1090 = sbr.rel (%p1088) target = $region112
        $region111: #{tpu_custom_call.1} parent=11 // pred_region
          _
        $region112: #{tpu_custom_call.1} parent=11 // pred_fallthru
          _
        // Predicated region
        $region113: #{tpu_custom_call.1} parent=11 // pred_check
          %p1091 = pneg %p681
        $region114: #{tpu_custom_call.1} parent=11 // pred_check_branch
          %1093 = sbr.rel (%p1091) target = $region116
        $region115: #{tpu_custom_call.1} parent=11 // pred_region
          _
        $region116: #{tpu_custom_call.1} parent=11 // pred_fallthru
          _
        // Predicated region
        $region117: #{tpu_custom_call.1} parent=11 // pred_check
          %p1094 = pneg %p702
        $region118: #{tpu_custom_call.1} parent=11 // pred_check_branch
          %1096 = sbr.rel (%p1094) target = $region120
        $region119: #{tpu_custom_call.1} parent=11 // pred_region
          _
        $region120: #{tpu_custom_call.1} parent=11 // pred_fallthru
          _
        // Predicated region
        $region121: #{tpu_custom_call.1} parent=11 // pred_check
          %p1097 = pneg %p723
        $region122: #{tpu_custom_call.1} parent=11 // pred_check_branch
          %1099 = sbr.rel (%p1097) target = $region124
        $region123: #{tpu_custom_call.1} parent=11 // pred_region
          _
        $region124: #{tpu_custom_call.1} parent=11 // pred_fallthru
          _
        // Predicated region
        $region125: #{tpu_custom_call.1} parent=11 // pred_check
          %p1100 = pneg %p744
        $region126: #{tpu_custom_call.1} parent=11 // pred_check_branch
          %1102 = sbr.rel (%p1100) target = $region128
        $region127: #{tpu_custom_call.1} parent=11 // pred_region
          _
        $region128: #{tpu_custom_call.1} parent=11 // pred_fallthru
          _
        // Predicated region
        $region129: #{tpu_custom_call.1} parent=11 // pred_check
          %p1103 = pneg %p765
        $region130: #{tpu_custom_call.1} parent=11 // pred_check_branch
          %1105 = sbr.rel (%p1103) target = $region132
        $region131: #{tpu_custom_call.1} parent=11 // pred_region
          _
        $region132: #{tpu_custom_call.1} parent=11 // pred_fallthru
          _
        // Predicated region
        $region133: #{tpu_custom_call.1} parent=11 // pred_check
          %p1106 = pneg %p786
        $region134: #{tpu_custom_call.1} parent=11 // pred_check_branch
          %1108 = sbr.rel (%p1106) target = $region136
        $region135: #{tpu_custom_call.1} parent=11 // pred_region
          _
        $region136: #{tpu_custom_call.1} parent=11 // pred_fallthru
          _
        // Predicated region
        $region137: #{tpu_custom_call.1} parent=11 // pred_check
          %p1109 = pneg %p807
        $region138: #{tpu_custom_call.1} parent=11 // pred_check_branch
          %1111 = sbr.rel (%p1109) target = $region140
        $region139: #{tpu_custom_call.1} parent=11 // pred_region
          _
        $region140: #{tpu_custom_call.1} parent=11 // pred_fallthru
          _
        // Predicated region
        $region141: #{tpu_custom_call.1} parent=11 // pred_check
          %p1112 = pneg %p828
        $region142: #{tpu_custom_call.1} parent=11 // pred_check_branch
          %1114 = sbr.rel (%p1112) target = $region144
        $region143: #{tpu_custom_call.1} parent=11 // pred_region
          _
        $region144: #{tpu_custom_call.1} parent=11 // pred_fallthru
          _
        // Predicated region
        $region145: #{tpu_custom_call.1} parent=11 // pred_check
          %p1115 = pneg %p849
        $region146: #{tpu_custom_call.1} parent=11 // pred_check_branch
          %1117 = sbr.rel (%p1115) target = $region148
        $region147: #{tpu_custom_call.1} parent=11 // pred_region
          _
        $region148: #{tpu_custom_call.1} parent=11 // pred_fallthru
          _
        // Predicated region
        $region149: #{tpu_custom_call.1} parent=11 // pred_check
          %p1118 = pneg %p870
        $region150: #{tpu_custom_call.1} parent=11 // pred_check_branch
          %1120 = sbr.rel (%p1118) target = $region152
        $region151: #{tpu_custom_call.1} parent=11 // pred_region
          _
        $region152: #{tpu_custom_call.1} parent=11 // pred_fallthru
          _
        // Predicated region
        $region153: #{tpu_custom_call.1} parent=11 // pred_check
          %p1121 = pneg %p891
        $region154: #{tpu_custom_call.1} parent=11 // pred_check_branch
          %1123 = sbr.rel (%p1121) target = $region156
        $region155: #{tpu_custom_call.1} parent=11 // pred_region
          _
        $region156: #{tpu_custom_call.1} parent=11 // pred_fallthru
          _
        // Predicated region
        $region157: #{tpu_custom_call.1} parent=11 // pred_check
          %p1124 = pneg %p912
        $region158: #{tpu_custom_call.1} parent=11 // pred_check_branch
          %1126 = sbr.rel (%p1124) target = $region160
        $region159: #{tpu_custom_call.1} parent=11 // pred_region
          _
        $region160: #{tpu_custom_call.1} parent=11 // pred_fallthru
          _
        // Predicated region
        $region161: #{tpu_custom_call.1} parent=11 // pred_check
          %p1127 = pneg %p933
        $region162: #{tpu_custom_call.1} parent=11 // pred_check_branch
          %1129 = sbr.rel (%p1127) target = $region164
        $region163: #{tpu_custom_call.1} parent=11 // pred_region
          _
        $region164: #{tpu_custom_call.1} parent=11 // pred_fallthru
          _
        // Predicated region
        $region165: #{tpu_custom_call.1} parent=11 // pred_check
          %p1130 = pneg %p954
        $region166: #{tpu_custom_call.1} parent=11 // pred_check_branch
          %1132 = sbr.rel (%p1130) target = $region168
        $region167: #{tpu_custom_call.1} parent=11 // pred_region
          _
        $region168: #{tpu_custom_call.1} parent=11 // pred_fallthru
          _
        // Predicated region
        $region169: #{tpu_custom_call.1} parent=11 // pred_check
          %p1133 = pneg %p975
        $region170: #{tpu_custom_call.1} parent=11 // pred_check_branch
          %1135 = sbr.rel (%p1133) target = $region172
        $region171: #{tpu_custom_call.1} parent=11 // pred_region
          _
        $region172: #{tpu_custom_call.1} parent=11 // pred_fallthru
          _
      $region12: #{tpu_custom_call.1} parent=5 // pred_fallthru
        _
      %p1136 = scmp.lt.s32.totalorder %s109, 2
      // Predicated region
      $region173: #{tpu_custom_call.1} parent=5 // pred_check
        %p1137 = pneg %p1136
      $region174: #{tpu_custom_call.1} parent=5 // pred_check_branch
        %1139 = sbr.rel (%p1137) target = $region176
      $region175: #{tpu_custom_call.1} parent=5 // pred_region
        // Predicated region
        $region177: #{tpu_custom_call.1} parent=175 // pred_check
          %p1140 = pneg %p129
        $region178: #{tpu_custom_call.1} parent=175 // pred_check_branch
          %1142 = sbr.rel (%p1140) target = $region180
        $region179: #{tpu_custom_call.1} parent=175 // pred_region
          %p1143 = scmp.lt.s32.totalorder %s109, 1
          %s1144 = scalar_select %p1143, %s109, 1
          %s1145 = smul.addr %s1144, 8
          %s1146 = scalar_lea.vmem %s5, %s1145
        $region180: #{tpu_custom_call.1} parent=175 // pred_fallthru
          _
      $region176: #{tpu_custom_call.1} parent=5 // pred_fallthru
        _
      %p1147 = scmp.le.s32.totalorder 1, %s109
      %p1148 = scmp.lt.s32.totalorder %s109, 3
      %p1149 = pnand %p1147, %p1148
      %p1150 = pneg %p1149
      // Predicated region
      $region181: #{tpu_custom_call.1} parent=5 // pred_check
        _
      $region182: #{tpu_custom_call.1} parent=5 // pred_check_branch
        %1152 = sbr.rel (%p1149) target = $region184
      $region183: #{tpu_custom_call.1} parent=5 // pred_region
        %s1153 = ssub.s32 %s109, 1
        %p1154 = scmp.lt.s32.totalorder %s114, 1
        %s1155 = scalar_select %p1154, %s114, 1
        %s1156 = smul.addr %s1155, 8
        %s1157 = scalar_lea.vmem %s5, %s1156
        %p1158 = pneg %p135
        %p1159 = pneg %p132
        %p1160 = pneg %p156
        %p1161 = pneg %p153
        %p1162 = pneg %p177
        %p1163 = pneg %p174
        %p1164 = pneg %p198
        %p1165 = pneg %p195
        %p1166 = pneg %p219
        %p1167 = pneg %p216
        %p1168 = pneg %p240
        %p1169 = pneg %p237
        %p1170 = pneg %p261
        %p1171 = pneg %p258
        %p1172 = pneg %p282
        %p1173 = pneg %p279
        %p1174 = pneg %p303
        %p1175 = pneg %p300
        %p1176 = pneg %p324
        %p1177 = pneg %p321
        %p1178 = pneg %p345
        %p1179 = pneg %p342
        %p1180 = pneg %p366
        %p1181 = pneg %p363
        %p1182 = pneg %p387
        %p1183 = pneg %p384
        %p1184 = pneg %p408
        %p1185 = pneg %p405
        %p1186 = pneg %p429
        %p1187 = pneg %p426
        %p1188 = pneg %p450
        %p1189 = pneg %p447
        %p1190 = pneg %p471
        %p1191 = pneg %p468
        %p1192 = pneg %p492
        %p1193 = pneg %p489
        %p1194 = pneg %p513
        %p1195 = pneg %p510
        %p1196 = pneg %p534
        %p1197 = pneg %p531
        %p1198 = pneg %p555
        %p1199 = pneg %p552
        %p1200 = pneg %p576
        %p1201 = pneg %p573
        %p1202 = pneg %p597
        %p1203 = pneg %p594
        %p1204 = pneg %p618
        %p1205 = pneg %p615
        %p1206 = pneg %p639
        %p1207 = pneg %p636
        %p1208 = pneg %p660
        %p1209 = pneg %p657
        %p1210 = pneg %p681
        %p1211 = pneg %p678
        %p1212 = pneg %p702
        %p1213 = pneg %p699
        %p1214 = pneg %p723
        %p1215 = pneg %p720
        %p1216 = pneg %p744
        %p1217 = pneg %p741
        %p1218 = pneg %p765
        %p1219 = pneg %p762
        %p1220 = pneg %p786
        %p1221 = pneg %p783
        %p1222 = pneg %p807
        %p1223 = pneg %p804
        %p1224 = pneg %p828
        %p1225 = pneg %p825
        %p1226 = pneg %p849
        %p1227 = pneg %p846
        %p1228 = pneg %p870
        %p1229 = pneg %p867
        %p1230 = pneg %p891
        %p1231 = pneg %p888
        %p1232 = pneg %p912
        %p1233 = pneg %p909
        %p1234 = pneg %p933
        %p1235 = pneg %p930
        %p1236 = pneg %p954
        %p1237 = pneg %p951
        %p1238 = pneg %p975
        %p1239 = pneg %p972
        %p1240 = pneg %p1001
        %p1241 = pneg %p998
        %s1242 = sand.u32 %s988, 1
        %s1243 = scalar_lea.sflag [#allocation7], %s1242
        %s1244 = sand.u32 %s988, 1
        %s1245 = smul.addr %s1244, 8
        %s1246 = scalar_lea.vmem [#allocation6], %s1245
        %p1247 = scmp.lt.s32.totalorder %s114, 1
        %s1248 = scalar_select %p1247, %s114, 1
        %s1249 = smul.addr %s1248, 8
        %s1250 = scalar_lea.vmem %s5, %s1249
        %s1252 = smul.u32 %s114, 128
        %s1253 = sld [smem:[#allocation4 + %s1252]]
        %s1254 = scalar_lea.vmem %s7, %s1253
        %v1255 = vld [vmem:[%s1254] sm:$0x1]
        %vm1256 = vcmask 253952
        %1257 = vst.msk [vmem:[#allocation2] sm:$0x1] %vm1256, %v1255
        %s1258 = sadd.s32 %s1252, 1
        %s1259 = sld [smem:[#allocation4 + %s1258]]
        %s1260 = scalar_lea.vmem %s7, %s1259
        %v1261 = vld [vmem:[%s1260] sm:$0x1]
        %1262 = vst.msk [vmem:[#allocation2 + $0x1] sm:$0x1] %vm1256, %v1261
        %s1263 = sadd.s32 %s1252, 2
        %s1264 = sld [smem:[#allocation4 + %s1263]]
        %s1265 = scalar_lea.vmem %s7, %s1264
        %v1266 = vld [vmem:[%s1265] sm:$0x1]
        %1267 = vst.msk [vmem:[#allocation2 + $0x2] sm:$0x1] %vm1256, %v1266
        %s1268 = sadd.s32 %s1252, 3
        %s1269 = sld [smem:[#allocation4 + %s1268]]
        %s1270 = scalar_lea.vmem %s7, %s1269
        %v1271 = vld [vmem:[%s1270] sm:$0x1]
        %1272 = vst.msk [vmem:[#allocation2 + $0x3] sm:$0x1] %vm1256, %v1271
        %s1273 = sadd.s32 %s1252, 4
        %s1274 = sld [smem:[#allocation4 + %s1273]]
        %s1275 = scalar_lea.vmem %s7, %s1274
        %v1276 = vld [vmem:[%s1275] sm:$0x1]
        %1277 = vst.msk [vmem:[#allocation2 + $0x4] sm:$0x1] %vm1256, %v1276
        %s1278 = sadd.s32 %s1252, 5
        %s1279 = sld [smem:[#allocation4 + %s1278]]
        %s1280 = scalar_lea.vmem %s7, %s1279
        %v1281 = vld [vmem:[%s1280] sm:$0x1]
        %1282 = vst.msk [vmem:[#allocation2 + $0x5] sm:$0x1] %vm1256, %v1281
        %s1283 = sadd.s32 %s1252, 6
        %s1284 = sld [smem:[#allocation4 + %s1283]]
        %s1285 = scalar_lea.vmem %s7, %s1284
        %v1286 = vld [vmem:[%s1285] sm:$0x1]
        %1287 = vst.msk [vmem:[#allocation2 + $0x6] sm:$0x1] %vm1256, %v1286
        %s1288 = sadd.s32 %s1252, 7
        %s1289 = sld [smem:[#allocation4 + %s1288]]
        %s1290 = scalar_lea.vmem %s7, %s1289
        %v1291 = vld [vmem:[%s1290] sm:$0x1]
        %1292 = vst.msk [vmem:[#allocation2 + $0x7] sm:$0x1] %vm1256, %v1291
        %v1293 = vld [vmem:[#allocation2] sm:$0xff]
        %v1294 = vmul.f32 %v1293, 5.656854
        %v1295 = vld [vmem:[%s9] sm:$0x1]
        %v1297 = vperm.slane %v1295, 0
        %v1299 = vadd.f32 %v1294, %v1297
        %v1300 = vld [vmem:[%s1250] sm:$0xff]
        %v1301 = vlaneseq
        %v1302 = vshrl.u32 %v1301, 7
        %v1303 = vlaneseq
        %v1304 = vand.u32 %v1303, 127
        %vm1305 = vcmp.le.s32.totalorder %v1304, %v1302
        %s1306 = sld [smem:[#allocation5 + %s114]]
        %v1307 = vstv %s1306
        %vm1308 = vcmp.lt.s32.totalorder %v1304, %v1307
        %v1309 = vld [vmem:[%s11] sm:$0xf]
        %v1310 = vld [vmem:[%s11 + $0x4] sm:$0xf]
        %v1311 = vld [vmem:[%s11 + $0x8] sm:$0xf]
        %v1312 = vld [vmem:[%s11 + $0xc] sm:$0xf]
        %v1313 = vld [vmem:[%s11 + $0x10] sm:$0xf]
        %v1314 = vld [vmem:[%s11 + $0x14] sm:$0xf]
        %v1315 = vld [vmem:[%s11 + $0x18] sm:$0xf]
        %v1316 = vld [vmem:[%s11 + $0x1c] sm:$0xf]
        %v1317 = vld [vmem:[%s11 + $0x20] sm:$0xf]
        %v1318 = vld [vmem:[%s11 + $0x24] sm:$0xf]
        %v1319 = vld [vmem:[%s11 + $0x28] sm:$0xf]
        %v1320 = vld [vmem:[%s11 + $0x2c] sm:$0xf]
        %v1321 = vld [vmem:[%s11 + $0x30] sm:$0xf]
        %v1322 = vld [vmem:[%s11 + $0x34] sm:$0xf]
        %v1323 = vld [vmem:[%s11 + $0x38] sm:$0xf]
        %v1324 = vld [vmem:[%s11 + $0x3c] sm:$0xf]
        %v1325 = vld [vmem:[%s13] sm:$0xf]
        %v1326 = vld [vmem:[%s13 + $0x4] sm:$0xf]
        %v1327 = vld [vmem:[%s13 + $0x8] sm:$0xf]
        %v1328 = vld [vmem:[%s13 + $0xc] sm:$0xf]
        %v1329 = vld [vmem:[%s13 + $0x10] sm:$0xf]
        %v1330 = vld [vmem:[%s13 + $0x14] sm:$0xf]
        %v1331 = vld [vmem:[%s13 + $0x18] sm:$0xf]
        %v1332 = vld [vmem:[%s13 + $0x1c] sm:$0xf]
        %v1333 = vld [vmem:[%s13 + $0x20] sm:$0xf]
        %v1334 = vld [vmem:[%s13 + $0x24] sm:$0xf]
        %v1335 = vld [vmem:[%s13 + $0x28] sm:$0xf]
        %v1336 = vld [vmem:[%s13 + $0x2c] sm:$0xf]
        %v1337 = vld [vmem:[%s13 + $0x30] sm:$0xf]
        %v1338 = vld [vmem:[%s13 + $0x34] sm:$0xf]
        %v1339 = vld [vmem:[%s13 + $0x38] sm:$0xf]
        %v1340 = vld [vmem:[%s13 + $0x3c] sm:$0xf]
        %v1341 = vld [vmem:[%s15] sm:$0xf]
        %v1342 = vld [vmem:[%s15 + $0x4] sm:$0xf]
        %v1343 = vld [vmem:[%s15 + $0x8] sm:$0xf]
        %v1344 = vld [vmem:[%s15 + $0xc] sm:$0xf]
        %v1345 = vld [vmem:[%s15 + $0x10] sm:$0xf]
        %v1346 = vld [vmem:[%s15 + $0x14] sm:$0xf]
        %v1347 = vld [vmem:[%s15 + $0x18] sm:$0xf]
        %v1348 = vld [vmem:[%s15 + $0x1c] sm:$0xf]
        %v1349 = vld [vmem:[%s15 + $0x20] sm:$0xf]
        %v1350 = vld [vmem:[%s15 + $0x24] sm:$0xf]
        %v1351 = vld [vmem:[%s15 + $0x28] sm:$0xf]
        %v1352 = vld [vmem:[%s15 + $0x2c] sm:$0xf]
        %v1353 = vld [vmem:[%s15 + $0x30] sm:$0xf]
        %v1354 = vld [vmem:[%s15 + $0x34] sm:$0xf]
        %v1355 = vld [vmem:[%s15 + $0x38] sm:$0xf]
        %v1356 = vld [vmem:[%s15 + $0x3c] sm:$0xf]
        %v1357 = vld [vmem:[%s17] sm:$0xf]
        %v1358 = vld [vmem:[%s17 + $0x4] sm:$0xf]
        %v1359 = vld [vmem:[%s17 + $0x8] sm:$0xf]
        %v1360 = vld [vmem:[%s17 + $0xc] sm:$0xf]
        %v1361 = vpack.c.bf16 %v1299, %v1299
        %v1366 = vunpack.c.l.b16 %v1309
        %v1367 = vunpack.c.l.b16 %v1310
        %v1368 = vunpack.c.l.b16 %v1311
        %v1369 = vunpack.c.l.b16 %v1312
        %v1370 = vpack.c.b16 %v1367, %v1366
        %v1371 = vpack.c.b16 %v1369, %v1368
        %vm1374 = vcmask 261120
        %v1376 = vsel %vm1374, %v1361, 0
        %1378 = vmatpush.bf16.msra.mxu0 0
        %1379 = vmatpush.bf16.msra.mxu0 0
        %1380 = vmatpush.bf16.msra.mxu0 0
        %1381 = vmatpush.bf16.msra.mxu0 0
        %1382 = vmatpush.bf16.msra.mxu0 0
        %1383 = vmatpush.bf16.msra.mxu0 0
        %1384 = vmatpush.bf16.msra.mxu0 %v1371
        %1385 = vmatpush.bf16.msra.mxu0 %v1370
        %1386 = vmatmul.bf16.gmra.mxu0 %v1376
        %v1387 = vpop.f32.mrf.mxu0
        %v1388 = vadd.f32 0.0, %v1387
        %v1389 = vpop.f32.mrf.mxu0
        %1390 = vdwg.mxu0
        %v1395 = vunpack.c.l.b16 %v1313
        %v1396 = vunpack.c.l.b16 %v1314
        %v1397 = vunpack.c.l.b16 %v1315
        %v1398 = vunpack.c.l.b16 %v1316
        %v1399 = vpack.c.b16 %v1396, %v1395
        %v1400 = vpack.c.b16 %v1398, %v1397
        %1403 = vmatpush.bf16.msra.mxu0 0
        %1404 = vmatpush.bf16.msra.mxu0 0
        %1405 = vmatpush.bf16.msra.mxu0 0
        %1406 = vmatpush.bf16.msra.mxu0 0
        %1407 = vmatpush.bf16.msra.mxu0 0
        %1408 = vmatpush.bf16.msra.mxu0 0
        %1409 = vmatpush.bf16.msra.mxu0 %v1400
        %1410 = vmatpush.bf16.msra.mxu0 %v1399
        %1411 = vmatmul.bf16.gmra.mxu0 %v1376
        %v1412 = vpop.f32.mrf.mxu0
        %v1413 = vadd.f32 0.0, %v1412
        %v1414 = vpop.f32.mrf.mxu0
        %1415 = vdwg.mxu0
        %v1420 = vunpack.c.l.b16 %v1317
        %v1421 = vunpack.c.l.b16 %v1318
        %v1422 = vunpack.c.l.b16 %v1319
        %v1423 = vunpack.c.l.b16 %v1320
        %v1424 = vpack.c.b16 %v1421, %v1420
        %v1425 = vpack.c.b16 %v1423, %v1422
        %1428 = vmatpush.bf16.msra.mxu0 0
        %1429 = vmatpush.bf16.msra.mxu0 0
        %1430 = vmatpush.bf16.msra.mxu0 0
        %1431 = vmatpush.bf16.msra.mxu0 0
        %1432 = vmatpush.bf16.msra.mxu0 0
        %1433 = vmatpush.bf16.msra.mxu0 0
        %1434 = vmatpush.bf16.msra.mxu0 %v1425
        %1435 = vmatpush.bf16.msra.mxu0 %v1424
        %1436 = vmatmul.bf16.gmra.mxu0 %v1376
        %v1437 = vpop.f32.mrf.mxu0
        %v1438 = vadd.f32 0.0, %v1437
        %v1439 = vpop.f32.mrf.mxu0
        %1440 = vdwg.mxu0
        %v1445 = vunpack.c.l.b16 %v1321
        %v1446 = vunpack.c.l.b16 %v1322
        %v1447 = vunpack.c.l.b16 %v1323
        %v1448 = vunpack.c.l.b16 %v1324
        %v1449 = vpack.c.b16 %v1446, %v1445
        %v1450 = vpack.c.b16 %v1448, %v1447
        %1453 = vmatpush.bf16.msra.mxu0 0
        %1454 = vmatpush.bf16.msra.mxu0 0
        %1455 = vmatpush.bf16.msra.mxu0 0
        %1456 = vmatpush.bf16.msra.mxu0 0
        %1457 = vmatpush.bf16.msra.mxu0 0
        %1458 = vmatpush.bf16.msra.mxu0 0
        %1459 = vmatpush.bf16.msra.mxu0 %v1450
        %1460 = vmatpush.bf16.msra.mxu0 %v1449
        %1461 = vmatmul.bf16.gmra.mxu0 %v1376
        %v1462 = vpop.f32.mrf.mxu0
        %v1463 = vadd.f32 0.0, %v1462
        %v1464 = vpop.f32.mrf.mxu0
        %1465 = vdwg.mxu0
        %v1466 = vmul.f32 %v1388, 0.35355338
        %v1467 = vmul.f32 %v1413, 0.35355338
        %v1468 = vmul.f32 %v1438, 0.35355338
        %v1469 = vmul.f32 %v1463, 0.35355338
        %v1474 = vunpack.c.l.b16 %v1325
        %v1475 = vunpack.c.l.b16 %v1326
        %v1476 = vunpack.c.l.b16 %v1327
        %v1477 = vunpack.c.l.b16 %v1328
        %v1478 = vpack.c.b16 %v1475, %v1474
        %v1479 = vpack.c.b16 %v1477, %v1476
        %1482 = vmatpush.bf16.msra.mxu0 0
        %1483 = vmatpush.bf16.msra.mxu0 0
        %1484 = vmatpush.bf16.msra.mxu0 0
        %1485 = vmatpush.bf16.msra.mxu0 0
        %1486 = vmatpush.bf16.msra.mxu0 0
        %1487 = vmatpush.bf16.msra.mxu0 0
        %1488 = vmatpush.bf16.msra.mxu0 %v1479
        %1489 = vmatpush.bf16.msra.mxu0 %v1478
        %1490 = vmatmul.bf16.gmra.mxu0 %v1376
        %v1491 = vpop.f32.mrf.mxu0
        %v1492 = vadd.f32 0.0, %v1491
        %v1493 = vpop.f32.mrf.mxu0
        %1494 = vdwg.mxu0
        %v1499 = vunpack.c.l.b16 %v1329
        %v1500 = vunpack.c.l.b16 %v1330
        %v1501 = vunpack.c.l.b16 %v1331
        %v1502 = vunpack.c.l.b16 %v1332
        %v1503 = vpack.c.b16 %v1500, %v1499
        %v1504 = vpack.c.b16 %v1502, %v1501
        %1507 = vmatpush.bf16.msra.mxu0 0
        %1508 = vmatpush.bf16.msra.mxu0 0
        %1509 = vmatpush.bf16.msra.mxu0 0
        %1510 = vmatpush.bf16.msra.mxu0 0
        %1511 = vmatpush.bf16.msra.mxu0 0
        %1512 = vmatpush.bf16.msra.mxu0 0
        %1513 = vmatpush.bf16.msra.mxu0 %v1504
        %1514 = vmatpush.bf16.msra.mxu0 %v1503
        %1515 = vmatmul.bf16.gmra.mxu0 %v1376
        %v1516 = vpop.f32.mrf.mxu0
        %v1517 = vadd.f32 0.0, %v1516
        %v1518 = vpop.f32.mrf.mxu0
        %1519 = vdwg.mxu0
        %v1524 = vunpack.c.l.b16 %v1333
        %v1525 = vunpack.c.l.b16 %v1334
        %v1526 = vunpack.c.l.b16 %v1335
        %v1527 = vunpack.c.l.b16 %v1336
        %v1528 = vpack.c.b16 %v1525, %v1524
        %v1529 = vpack.c.b16 %v1527, %v1526
        %1532 = vmatpush.bf16.msra.mxu0 0
        %1533 = vmatpush.bf16.msra.mxu0 0
        %1534 = vmatpush.bf16.msra.mxu0 0
        %1535 = vmatpush.bf16.msra.mxu0 0
        %1536 = vmatpush.bf16.msra.mxu0 0
        %1537 = vmatpush.bf16.msra.mxu0 0
        %1538 = vmatpush.bf16.msra.mxu0 %v1529
        %1539 = vmatpush.bf16.msra.mxu0 %v1528
        %1540 = vmatmul.bf16.gmra.mxu0 %v1376
        %v1541 = vpop.f32.mrf.mxu0
        %v1542 = vadd.f32 0.0, %v1541
        %v1543 = vpop.f32.mrf.mxu0
        %1544 = vdwg.mxu0
        %v1549 = vunpack.c.l.b16 %v1337
        %v1550 = vunpack.c.l.b16 %v1338
        %v1551 = vunpack.c.l.b16 %v1339
        %v1552 = vunpack.c.l.b16 %v1340
        %v1553 = vpack.c.b16 %v1550, %v1549
        %v1554 = vpack.c.b16 %v1552, %v1551
        %1557 = vmatpush.bf16.msra.mxu0 0
        %1558 = vmatpush.bf16.msra.mxu0 0
        %1559 = vmatpush.bf16.msra.mxu0 0
        %1560 = vmatpush.bf16.msra.mxu0 0
        %1561 = vmatpush.bf16.msra.mxu0 0
        %1562 = vmatpush.bf16.msra.mxu0 0
        %1563 = vmatpush.bf16.msra.mxu0 %v1554
        %1564 = vmatpush.bf16.msra.mxu0 %v1553
        %1565 = vmatmul.bf16.gmra.mxu0 %v1376
        %v1566 = vpop.f32.mrf.mxu0
        %v1567 = vadd.f32 0.0, %v1566
        %v1568 = vpop.f32.mrf.mxu0
        %1569 = vdwg.mxu0
        %v1574 = vunpack.c.l.b16 %v1341
        %v1575 = vunpack.c.l.b16 %v1342
        %v1576 = vunpack.c.l.b16 %v1343
        %v1577 = vunpack.c.l.b16 %v1344
        %v1578 = vpack.c.b16 %v1575, %v1574
        %v1579 = vpack.c.b16 %v1577, %v1576
        %1582 = vmatpush.bf16.msra.mxu0 0
        %1583 = vmatpush.bf16.msra.mxu0 0
        %1584 = vmatpush.bf16.msra.mxu0 0
        %1585 = vmatpush.bf16.msra.mxu0 0
        %1586 = vmatpush.bf16.msra.mxu0 0
        %1587 = vmatpush.bf16.msra.mxu0 0
        %1588 = vmatpush.bf16.msra.mxu0 %v1579
        %1589 = vmatpush.bf16.msra.mxu0 %v1578
        %1590 = vmatmul.bf16.gmra.mxu0 %v1376
        %v1591 = vpop.f32.mrf.mxu0
        %v1592 = vadd.f32 0.0, %v1591
        %v1593 = vpop.f32.mrf.mxu0
        %1594 = vdwg.mxu0
        %v1599 = vunpack.c.l.b16 %v1345
        %v1600 = vunpack.c.l.b16 %v1346
        %v1601 = vunpack.c.l.b16 %v1347
        %v1602 = vunpack.c.l.b16 %v1348
        %v1603 = vpack.c.b16 %v1600, %v1599
        %v1604 = vpack.c.b16 %v1602, %v1601
        %1607 = vmatpush.bf16.msra.mxu0 0
        %1608 = vmatpush.bf16.msra.mxu0 0
        %1609 = vmatpush.bf16.msra.mxu0 0
        %1610 = vmatpush.bf16.msra.mxu0 0
        %1611 = vmatpush.bf16.msra.mxu0 0
        %1612 = vmatpush.bf16.msra.mxu0 0
        %1613 = vmatpush.bf16.msra.mxu0 %v1604
        %1614 = vmatpush.bf16.msra.mxu0 %v1603
        %1615 = vmatmul.bf16.gmra.mxu0 %v1376
        %v1616 = vpop.f32.mrf.mxu0
        %v1617 = vadd.f32 0.0, %v1616
        %v1618 = vpop.f32.mrf.mxu0
        %1619 = vdwg.mxu0
        %v1624 = vunpack.c.l.b16 %v1349
        %v1625 = vunpack.c.l.b16 %v1350
        %v1626 = vunpack.c.l.b16 %v1351
        %v1627 = vunpack.c.l.b16 %v1352
        %v1628 = vpack.c.b16 %v1625, %v1624
        %v1629 = vpack.c.b16 %v1627, %v1626
        %1632 = vmatpush.bf16.msra.mxu0 0
        %1633 = vmatpush.bf16.msra.mxu0 0
        %1634 = vmatpush.bf16.msra.mxu0 0
        %1635 = vmatpush.bf16.msra.mxu0 0
        %1636 = vmatpush.bf16.msra.mxu0 0
        %1637 = vmatpush.bf16.msra.mxu0 0
        %1638 = vmatpush.bf16.msra.mxu0 %v1629
        %1639 = vmatpush.bf16.msra.mxu0 %v1628
        %1640 = vmatmul.bf16.gmra.mxu0 %v1376
        %v1641 = vpop.f32.mrf.mxu0
        %v1642 = vadd.f32 0.0, %v1641
        %v1643 = vpop.f32.mrf.mxu0
        %1644 = vdwg.mxu0
        %v1649 = vunpack.c.l.b16 %v1353
        %v1650 = vunpack.c.l.b16 %v1354
        %v1651 = vunpack.c.l.b16 %v1355
        %v1652 = vunpack.c.l.b16 %v1356
        %v1653 = vpack.c.b16 %v1650, %v1649
        %v1654 = vpack.c.b16 %v1652, %v1651
        %1657 = vmatpush.bf16.msra.mxu0 0
        %1658 = vmatpush.bf16.msra.mxu0 0
        %1659 = vmatpush.bf16.msra.mxu0 0
        %1660 = vmatpush.bf16.msra.mxu0 0
        %1661 = vmatpush.bf16.msra.mxu0 0
        %1662 = vmatpush.bf16.msra.mxu0 0
        %1663 = vmatpush.bf16.msra.mxu0 %v1654
        %1664 = vmatpush.bf16.msra.mxu0 %v1653
        %1665 = vmatmul.bf16.gmra.mxu0 %v1376
        %v1666 = vpop.f32.mrf.mxu0
        %v1667 = vadd.f32 0.0, %v1666
        %v1668 = vpop.f32.mrf.mxu0
        %1669 = vdwg.mxu0
        %v1670 = vpack.c.bf16 %v1466, %v1466
        %v1671 = vpack.c.bf16 %v1467, %v1467
        %v1672 = vpack.c.bf16 %v1468, %v1468
        %v1673 = vpack.c.bf16 %v1469, %v1469
        %v1674 = vpack.c.bf16 %v1492, %v1492
        %v1675 = vpack.c.bf16 %v1517, %v1517
        %v1676 = vpack.c.bf16 %v1542, %v1542
        %v1677 = vpack.c.bf16 %v1567, %v1567
        %vm1678 = vcmask 64512
        %v1680 = vsel %vm1678, %v1670, 0
        %v1683 = vsel %vm1678, %v1674, 0
        %1685 = vmatpush.bf16.xpose.msra.mxu0 0
        %1686 = vmatpush.bf16.xpose.msra.mxu0 0
        %1687 = vmatpush.bf16.xpose.msra.mxu0 0
        %1688 = vmatpush.bf16.xpose.msra.mxu0 0
        %1689 = vmatpush.bf16.xpose.msra.mxu0 0
        %1690 = vmatpush.bf16.xpose.msra.mxu0 0
        %1691 = vmatpush.bf16.xpose.msra.mxu0 0
        %1692 = vmatpush.bf16.xpose.msra.mxu0 %v1683
        %1693 = vmatmul.bf16.gmra.mxu0 %v1680
        %v1694 = vpop.f32.mrf.mxu0
        %v1695 = vadd.f32 0.0, %v1694
        %v1696 = vpop.f32.mrf.mxu0
        %1697 = vdwg.mxu0
        %v1699 = vsel %vm1678, %v1671, 0
        %v1702 = vsel %vm1678, %v1675, 0
        %1704 = vmatpush.bf16.xpose.msra.mxu0 0
        %1705 = vmatpush.bf16.xpose.msra.mxu0 0
        %1706 = vmatpush.bf16.xpose.msra.mxu0 0
        %1707 = vmatpush.bf16.xpose.msra.mxu0 0
        %1708 = vmatpush.bf16.xpose.msra.mxu0 0
        %1709 = vmatpush.bf16.xpose.msra.mxu0 0
        %1710 = vmatpush.bf16.xpose.msra.mxu0 0
        %1711 = vmatpush.bf16.xpose.msra.mxu0 %v1702
        %1712 = vmatmul.bf16.gmra.mxu0 %v1699
        %v1713 = vpop.f32.mrf.mxu0
        %v1714 = vadd.f32 0.0, %v1713
        %v1715 = vpop.f32.mrf.mxu0
        %1716 = vdwg.mxu0
        %v1718 = vsel %vm1678, %v1672, 0
        %v1721 = vsel %vm1678, %v1676, 0
        %1723 = vmatpush.bf16.xpose.msra.mxu0 0
        %1724 = vmatpush.bf16.xpose.msra.mxu0 0
        %1725 = vmatpush.bf16.xpose.msra.mxu0 0
        %1726 = vmatpush.bf16.xpose.msra.mxu0 0
        %1727 = vmatpush.bf16.xpose.msra.mxu0 0
        %1728 = vmatpush.bf16.xpose.msra.mxu0 0
        %1729 = vmatpush.bf16.xpose.msra.mxu0 0
        %1730 = vmatpush.bf16.xpose.msra.mxu0 %v1721
        %1731 = vmatmul.bf16.gmra.mxu0 %v1718
        %v1732 = vpop.f32.mrf.mxu0
        %v1733 = vadd.f32 0.0, %v1732
        %v1734 = vpop.f32.mrf.mxu0
        %1735 = vdwg.mxu0
        %v1737 = vsel %vm1678, %v1673, 0
        %v1740 = vsel %vm1678, %v1677, 0
        %1742 = vmatpush.bf16.xpose.msra.mxu0 0
        %1743 = vmatpush.bf16.xpose.msra.mxu0 0
        %1744 = vmatpush.bf16.xpose.msra.mxu0 0
        %1745 = vmatpush.bf16.xpose.msra.mxu0 0
        %1746 = vmatpush.bf16.xpose.msra.mxu0 0
        %1747 = vmatpush.bf16.xpose.msra.mxu0 0
        %1748 = vmatpush.bf16.xpose.msra.mxu0 0
        %1749 = vmatpush.bf16.xpose.msra.mxu0 %v1740
        %1750 = vmatmul.bf16.gmra.mxu0 %v1737
        %v1751 = vpop.f32.mrf.mxu0
        %v1752 = vadd.f32 0.0, %v1751
        %v1753 = vpop.f32.mrf.mxu0
        %1754 = vdwg.mxu0
        %v1755 = vsel %vm1305, %v1695, 1e-06
        %v1756 = vsel %vm1305, %v1714, 1e-06
        %v1757 = vsel %vm1305, %v1733, 1e-06
        %v1758 = vsel %vm1305, %v1752, 1e-06
        %v1759 = vsel %vm1678, %v1755, -inf
        %1760 = vmax.xlane.f32.xlu0 %v1759
        %v1761 = vpop.xlane.xlu0 %1760
        %v1762 = vsel %vm1678, %v1756, -inf
        %1763 = vmax.xlane.f32.xlu0 %v1762
        %v1764 = vpop.xlane.xlu0 %1763
        %v1765 = vsel %vm1678, %v1757, -inf
        %1766 = vmax.xlane.f32.xlu0 %v1765
        %v1767 = vpop.xlane.xlu0 %1766
        %v1768 = vsel %vm1678, %v1758, -inf
        %1769 = vmax.xlane.f32.xlu0 %v1768
        %v1770 = vpop.xlane.xlu0 %1769
        %v1771 = vsub.f32 %v1755, %v1761
        %v1772 = vsub.f32 %v1756, %v1764
        %v1773 = vsub.f32 %v1757, %v1767
        %v1774 = vsub.f32 %v1758, %v1770
        %v1775 = vmul.f32 %v1771, 1.442695
        %v1776 = vpow.pop %v1775
        %v1777 = vmul.f32 %v1772, 1.442695
        %v1778 = vpow.pop %v1777
        %v1779 = vmul.f32 %v1773, 1.442695
        %v1780 = vpow.pop %v1779
        %v1781 = vmul.f32 %v1774, 1.442695
        %v1782 = vpow.pop %v1781
        %v1783 = vsel %vm1678, %v1776, 0.0
        %1784 = vadd.xlane.f32.xlu0 %v1783
        %v1785 = vpop.xlane.xlu0 %1784
        %v1786 = vsel %vm1678, %v1778, 0.0
        %1787 = vadd.xlane.f32.xlu0 %v1786
        %v1788 = vpop.xlane.xlu0 %1787
        %v1789 = vsel %vm1678, %v1780, 0.0
        %1790 = vadd.xlane.f32.xlu0 %v1789
        %v1791 = vpop.xlane.xlu0 %1790
        %v1792 = vsel %vm1678, %v1782, 0.0
        %1793 = vadd.xlane.f32.xlu0 %v1792
        %v1794 = vpop.xlane.xlu0 %1793
        %v1795 = vrcp.pop %v1785
        %v1796 = vrcp.pop %v1788
        %v1797 = vrcp.pop %v1791
        %v1798 = vrcp.pop %v1794
        %v1799 = vmul.f32 %v1776, %v1795
        %v1800 = vmul.f32 %v1778, %v1796
        %v1801 = vmul.f32 %v1780, %v1797
        %v1802 = vmul.f32 %v1782, %v1798
        %v1803 = vpack.c.bf16 %v1799, %v1799
        %v1804 = vpack.c.bf16 %v1800, %v1800
        %v1805 = vpack.c.bf16 %v1801, %v1801
        %v1806 = vpack.c.bf16 %v1802, %v1802
        %v1807 = vpack.c.bf16 %v1592, %v1592
        %v1808 = vpack.c.bf16 %v1617, %v1617
        %v1809 = vpack.c.bf16 %v1642, %v1642
        %v1810 = vpack.c.bf16 %v1667, %v1667
        %v1812 = vsel %vm1678, %v1803, 0
        %vm1814 = vcmask 1043456
        %v1816 = vsel %vm1814, %v1807, 0
        %1818 = vmatpush.bf16.msra.mxu0 0
        %1819 = vmatpush.bf16.msra.mxu0 0
        %1820 = vmatpush.bf16.msra.mxu0 0
        %1821 = vmatpush.bf16.msra.mxu0 0
        %1822 = vmatpush.bf16.msra.mxu0 0
        %1823 = vmatpush.bf16.msra.mxu0 0
        %1824 = vmatpush.bf16.msra.mxu0 0
        %1825 = vmatpush.bf16.msra.mxu0 %v1816
        %1826 = vmatmul.bf16.gmra.mxu0 %v1812
        %v1827 = vpop.f32.mrf.mxu0
        %v1828 = vadd.f32 0.0, %v1827
        %v1829 = vpop.f32.mrf.mxu0
        %1830 = vdwg.mxu0
        %v1832 = vsel %vm1678, %v1804, 0
        %v1835 = vsel %vm1814, %v1808, 0
        %1837 = vmatpush.bf16.msra.mxu0 0
        %1838 = vmatpush.bf16.msra.mxu0 0
        %1839 = vmatpush.bf16.msra.mxu0 0
        %1840 = vmatpush.bf16.msra.mxu0 0
        %1841 = vmatpush.bf16.msra.mxu0 0
        %1842 = vmatpush.bf16.msra.mxu0 0
        %1843 = vmatpush.bf16.msra.mxu0 0
        %1844 = vmatpush.bf16.msra.mxu0 %v1835
        %1845 = vmatmul.bf16.gmra.mxu0 %v1832
        %v1846 = vpop.f32.mrf.mxu0
        %v1847 = vadd.f32 0.0, %v1846
        %v1848 = vpop.f32.mrf.mxu0
        %1849 = vdwg.mxu0
        %v1851 = vsel %vm1678, %v1805, 0
        %v1854 = vsel %vm1814, %v1809, 0
        %1856 = vmatpush.bf16.msra.mxu0 0
        %1857 = vmatpush.bf16.msra.mxu0 0
        %1858 = vmatpush.bf16.msra.mxu0 0
        %1859 = vmatpush.bf16.msra.mxu0 0
        %1860 = vmatpush.bf16.msra.mxu0 0
        %1861 = vmatpush.bf16.msra.mxu0 0
        %1862 = vmatpush.bf16.msra.mxu0 0
        %1863 = vmatpush.bf16.msra.mxu0 %v1854
        %1864 = vmatmul.bf16.gmra.mxu0 %v1851
        %v1865 = vpop.f32.mrf.mxu0
        %v1866 = vadd.f32 0.0, %v1865
        %v1867 = vpop.f32.mrf.mxu0
        %1868 = vdwg.mxu0
        %v1870 = vsel %vm1678, %v1806, 0
        %v1873 = vsel %vm1814, %v1810, 0
        %1875 = vmatpush.bf16.msra.mxu0 0
        %1876 = vmatpush.bf16.msra.mxu0 0
        %1877 = vmatpush.bf16.msra.mxu0 0
        %1878 = vmatpush.bf16.msra.mxu0 0
        %1879 = vmatpush.bf16.msra.mxu0 0
        %1880 = vmatpush.bf16.msra.mxu0 0
        %1881 = vmatpush.bf16.msra.mxu0 0
        %1882 = vmatpush.bf16.msra.mxu0 %v1873
        %1883 = vmatmul.bf16.gmra.mxu0 %v1870
        %v1884 = vpop.f32.mrf.mxu0
        %v1885 = vadd.f32 0.0, %v1884
        %v1886 = vpop.f32.mrf.mxu0
        %1887 = vdwg.mxu0
        %v1888 = vpack.c.bf16 %v1828, %v1828
        %v1889 = vpack.c.bf16 %v1847, %v1847
        %v1890 = vpack.c.bf16 %v1866, %v1866
        %v1891 = vpack.c.bf16 %v1885, %v1885
        %v1893 = vsel %vm1678, %v1888, 0
        %v1896 = vsel %vm1814, %v1357, 0
        %1898 = vmatpush.bf16.msra.mxu0 0
        %1899 = vmatpush.bf16.msra.mxu0 0
        %1900 = vmatpush.bf16.msra.mxu0 0
        %1901 = vmatpush.bf16.msra.mxu0 0
        %1902 = vmatpush.bf16.msra.mxu0 0
        %1903 = vmatpush.bf16.msra.mxu0 0
        %1904 = vmatpush.bf16.msra.mxu0 0
        %1905 = vmatpush.bf16.msra.mxu0 %v1896
        %1906 = vmatmul.bf16.gmra.mxu0 %v1893
        %v1907 = vpop.f32.mrf.mxu0
        %v1908 = vadd.f32 0.0, %v1907
        %v1909 = vpop.f32.mrf.mxu0
        %1910 = vdwg.mxu0
        %v1912 = vsel %vm1678, %v1889, 0
        %v1915 = vsel %vm1814, %v1358, 0
        %1917 = vmatpush.bf16.msra.mxu0 0
        %1918 = vmatpush.bf16.msra.mxu0 0
        %1919 = vmatpush.bf16.msra.mxu0 0
        %1920 = vmatpush.bf16.msra.mxu0 0
        %1921 = vmatpush.bf16.msra.mxu0 0
        %1922 = vmatpush.bf16.msra.mxu0 0
        %1923 = vmatpush.bf16.msra.mxu0 0
        %1924 = vmatpush.bf16.msra.mxu0 %v1915
        %1925 = vmatmul.bf16.gmra.mxu0 %v1912
        %v1926 = vpop.f32.mrf.mxu0
        %v1927 = vadd.f32 0.0, %v1926
        %v1928 = vpop.f32.mrf.mxu0
        %1929 = vdwg.mxu0
        %v1931 = vsel %vm1678, %v1890, 0
        %v1934 = vsel %vm1814, %v1359, 0
        %1936 = vmatpush.bf16.msra.mxu0 0
        %1937 = vmatpush.bf16.msra.mxu0 0
        %1938 = vmatpush.bf16.msra.mxu0 0
        %1939 = vmatpush.bf16.msra.mxu0 0
        %1940 = vmatpush.bf16.msra.mxu0 0
        %1941 = vmatpush.bf16.msra.mxu0 0
        %1942 = vmatpush.bf16.msra.mxu0 0
        %1943 = vmatpush.bf16.msra.mxu0 %v1934
        %1944 = vmatmul.bf16.gmra.mxu0 %v1931
        %v1945 = vpop.f32.mrf.mxu0
        %v1946 = vadd.f32 0.0, %v1945
        %v1947 = vpop.f32.mrf.mxu0
        %1948 = vdwg.mxu0
        %v1950 = vsel %vm1678, %v1891, 0
        %v1953 = vsel %vm1814, %v1360, 0
        %1955 = vmatpush.bf16.msra.mxu0 0
        %1956 = vmatpush.bf16.msra.mxu0 0
        %1957 = vmatpush.bf16.msra.mxu0 0
        %1958 = vmatpush.bf16.msra.mxu0 0
        %1959 = vmatpush.bf16.msra.mxu0 0
        %1960 = vmatpush.bf16.msra.mxu0 0
        %1961 = vmatpush.bf16.msra.mxu0 0
        %1962 = vmatpush.bf16.msra.mxu0 %v1953
        %1963 = vmatmul.bf16.gmra.mxu0 %v1950
        %v1964 = vpop.f32.mrf.mxu0
        %v1965 = vadd.f32 0.0, %v1964
        %v1966 = vpop.f32.mrf.mxu0
        %1967 = vdwg.mxu0
        %v1968 = vsel %vm1374, %v1908, 0.0
        %v1969 = vsel %vm1374, %v1927, 0.0
        %v1970 = vadd.f32 %v1968, %v1969
        %v1971 = vsel %vm1374, %v1946, 0.0
        %v1972 = vadd.f32 %v1970, %v1971
        %v1973 = vsel %vm1374, %v1965, 0.0
        %v1974 = vadd.f32 %v1972, %v1973
        %v1975 = vld [vmem:[%s19] sm:$0x1]
        %v1976 = vld [vmem:[%s21] sm:$0x1]
        %v1977 = vadd.f32 %v1299, %v1974
        %v1978 = vsel %vm1374, %v1977, 0.0
        %1979 = vadd.xlane.f32.xlu0 %v1978
        %v1980 = vpop.xlane.xlu0 %1979
        %v1981 = vrcp.pop 32.0
        %v1982 = vmul.f32 32.0, %v1981
        %v1983 = vsub.f32 1.0, %v1982
        %v1984 = vmul.f32 %v1981, %v1983
        %v1985 = vadd.f32 %v1981, %v1984
        %vm1986 = vweird.f32 %v1981
        %v1987 = vsel %vm1986, %v1981, %v1985
        %v1988 = vmul.f32 %v1980, %v1987
        %v1989 = vsub.f32 %v1977, %v1988
        %v1990 = vmul.f32 %v1989, %v1989
        %v1991 = vsel %vm1374, %v1990, 0.0
        %1992 = vadd.xlane.f32.xlu0 %v1991
        %v1993 = vpop.xlane.xlu0 %1992
        %v1994 = vmul.f32 %v1993, %v1987
        %v1995 = vadd.f32 %v1994, 1e-05
        %v1996 = vrsqrt.pop %v1995
        %v1997 = vmul.f32 %v1996, %v1995
        %v1998 = vmul.f32 %v1997, %v1996
        %v1999 = vmul.f32 0.5, %v1998
        %v2000 = vsub.f32 1.5, %v1999
        %v2001 = vmul.f32 %v1996, %v2000
        %vm2002 = vweird.f32 %v1995
        %vm2003 = vweird.f32 %v1996
        %vm2004 = vmor %vm2002, %vm2003
        %v2005 = vsel %vm2004, %v1996, %v2001
        %v2006 = vmul.f32 %v1989, %v2005
        %v2008 = vperm.slane %v1975, 0
        %v2010 = vmul.f32 %v2006, %v2008
        %v2012 = vperm.slane %v1976, 0
        %v2014 = vadd.f32 %v2010, %v2012
        %v2015 = vld [vmem:[%s23] sm:$0xf]
        %v2016 = vld [vmem:[%s23 + $0x4] sm:$0xf]
        %v2017 = vld [vmem:[%s23 + $0x8] sm:$0xf]
        %v2018 = vld [vmem:[%s23 + $0xc] sm:$0xf]
        %v2019 = vld [vmem:[%s23 + $0x10] sm:$0xf]
        %v2020 = vld [vmem:[%s23 + $0x14] sm:$0xf]
        %v2021 = vld [vmem:[%s23 + $0x18] sm:$0xf]
        %v2022 = vld [vmem:[%s23 + $0x1c] sm:$0xf]
        %v2023 = vld [vmem:[%s23 + $0x20] sm:$0xf]
        %v2024 = vld [vmem:[%s23 + $0x24] sm:$0xf]
        %v2025 = vld [vmem:[%s23 + $0x28] sm:$0xf]
        %v2026 = vld [vmem:[%s23 + $0x2c] sm:$0xf]
        %v2027 = vld [vmem:[%s23 + $0x30] sm:$0xf]
        %v2028 = vld [vmem:[%s23 + $0x34] sm:$0xf]
        %v2029 = vld [vmem:[%s23 + $0x38] sm:$0xf]
        %v2030 = vld [vmem:[%s23 + $0x3c] sm:$0xf]
        %v2031 = vld [vmem:[%s25] sm:$0xf]
        %v2032 = vld [vmem:[%s25 + $0x4] sm:$0xf]
        %v2033 = vld [vmem:[%s25 + $0x8] sm:$0xf]
        %v2034 = vld [vmem:[%s25 + $0xc] sm:$0xf]
        %v2035 = vld [vmem:[%s25 + $0x10] sm:$0xf]
        %v2036 = vld [vmem:[%s25 + $0x14] sm:$0xf]
        %v2037 = vld [vmem:[%s25 + $0x18] sm:$0xf]
        %v2038 = vld [vmem:[%s25 + $0x1c] sm:$0xf]
        %v2039 = vld [vmem:[%s25 + $0x20] sm:$0xf]
        %v2040 = vld [vmem:[%s25 + $0x24] sm:$0xf]
        %v2041 = vld [vmem:[%s25 + $0x28] sm:$0xf]
        %v2042 = vld [vmem:[%s25 + $0x2c] sm:$0xf]
        %v2043 = vld [vmem:[%s25 + $0x30] sm:$0xf]
        %v2044 = vld [vmem:[%s25 + $0x34] sm:$0xf]
        %v2045 = vld [vmem:[%s25 + $0x38] sm:$0xf]
        %v2046 = vld [vmem:[%s25 + $0x3c] sm:$0xf]
        %v2047 = vld [vmem:[%s27] sm:$0xf]
        %v2048 = vld [vmem:[%s27 + $0x4] sm:$0xf]
        %v2049 = vld [vmem:[%s27 + $0x8] sm:$0xf]
        %v2050 = vld [vmem:[%s27 + $0xc] sm:$0xf]
        %v2051 = vld [vmem:[%s27 + $0x10] sm:$0xf]
        %v2052 = vld [vmem:[%s27 + $0x14] sm:$0xf]
        %v2053 = vld [vmem:[%s27 + $0x18] sm:$0xf]
        %v2054 = vld [vmem:[%s27 + $0x1c] sm:$0xf]
        %v2055 = vld [vmem:[%s27 + $0x20] sm:$0xf]
        %v2056 = vld [vmem:[%s27 + $0x24] sm:$0xf]
        %v2057 = vld [vmem:[%s27 + $0x28] sm:$0xf]
        %v2058 = vld [vmem:[%s27 + $0x2c] sm:$0xf]
        %v2059 = vld [vmem:[%s27 + $0x30] sm:$0xf]
        %v2060 = vld [vmem:[%s27 + $0x34] sm:$0xf]
        %v2061 = vld [vmem:[%s27 + $0x38] sm:$0xf]
        %v2062 = vld [vmem:[%s27 + $0x3c] sm:$0xf]
        %v2063 = vld [vmem:[%s29] sm:$0xf]
        %v2064 = vld [vmem:[%s29 + $0x4] sm:$0xf]
        %v2065 = vld [vmem:[%s29 + $0x8] sm:$0xf]
        %v2066 = vld [vmem:[%s29 + $0xc] sm:$0xf]
        %v2067 = vpack.c.bf16 %v2014, %v2014
        %v2068 = vpack.c.bf16 %v1300, %v1300
        %v2073 = vunpack.c.l.b16 %v2015
        %v2074 = vunpack.c.l.b16 %v2016
        %v2075 = vunpack.c.l.b16 %v2017
        %v2076 = vunpack.c.l.b16 %v2018
        %v2077 = vpack.c.b16 %v2074, %v2073
        %v2078 = vpack.c.b16 %v2076, %v2075
        %v2082 = vsel %vm1374, %v2067, 0
        %2084 = vmatpush.bf16.msra.mxu0 0
        %2085 = vmatpush.bf16.msra.mxu0 0
        %2086 = vmatpush.bf16.msra.mxu0 0
        %2087 = vmatpush.bf16.msra.mxu0 0
        %2088 = vmatpush.bf16.msra.mxu0 0
        %2089 = vmatpush.bf16.msra.mxu0 0
        %2090 = vmatpush.bf16.msra.mxu0 %v2078
        %2091 = vmatpush.bf16.msra.mxu0 %v2077
        %2092 = vmatmul.bf16.gmra.mxu0 %v2082
        %v2093 = vpop.f32.mrf.mxu0
        %v2094 = vadd.f32 0.0, %v2093
        %v2095 = vpop.f32.mrf.mxu0
        %2096 = vdwg.mxu0
        %v2101 = vunpack.c.l.b16 %v2019
        %v2102 = vunpack.c.l.b16 %v2020
        %v2103 = vunpack.c.l.b16 %v2021
        %v2104 = vunpack.c.l.b16 %v2022
        %v2105 = vpack.c.b16 %v2102, %v2101
        %v2106 = vpack.c.b16 %v2104, %v2103
        %2109 = vmatpush.bf16.msra.mxu0 0
        %2110 = vmatpush.bf16.msra.mxu0 0
        %2111 = vmatpush.bf16.msra.mxu0 0
        %2112 = vmatpush.bf16.msra.mxu0 0
        %2113 = vmatpush.bf16.msra.mxu0 0
        %2114 = vmatpush.bf16.msra.mxu0 0
        %2115 = vmatpush.bf16.msra.mxu0 %v2106
        %2116 = vmatpush.bf16.msra.mxu0 %v2105
        %2117 = vmatmul.bf16.gmra.mxu0 %v2082
        %v2118 = vpop.f32.mrf.mxu0
        %v2119 = vadd.f32 0.0, %v2118
        %v2120 = vpop.f32.mrf.mxu0
        %2121 = vdwg.mxu0
        %v2126 = vunpack.c.l.b16 %v2023
        %v2127 = vunpack.c.l.b16 %v2024
        %v2128 = vunpack.c.l.b16 %v2025
        %v2129 = vunpack.c.l.b16 %v2026
        %v2130 = vpack.c.b16 %v2127, %v2126
        %v2131 = vpack.c.b16 %v2129, %v2128
        %2134 = vmatpush.bf16.msra.mxu0 0
        %2135 = vmatpush.bf16.msra.mxu0 0
        %2136 = vmatpush.bf16.msra.mxu0 0
        %2137 = vmatpush.bf16.msra.mxu0 0
        %2138 = vmatpush.bf16.msra.mxu0 0
        %2139 = vmatpush.bf16.msra.mxu0 0
        %2140 = vmatpush.bf16.msra.mxu0 %v2131
        %2141 = vmatpush.bf16.msra.mxu0 %v2130
        %2142 = vmatmul.bf16.gmra.mxu0 %v2082
        %v2143 = vpop.f32.mrf.mxu0
        %v2144 = vadd.f32 0.0, %v2143
        %v2145 = vpop.f32.mrf.mxu0
        %2146 = vdwg.mxu0
        %v2151 = vunpack.c.l.b16 %v2027
        %v2152 = vunpack.c.l.b16 %v2028
        %v2153 = vunpack.c.l.b16 %v2029
        %v2154 = vunpack.c.l.b16 %v2030
        %v2155 = vpack.c.b16 %v2152, %v2151
        %v2156 = vpack.c.b16 %v2154, %v2153
        %2159 = vmatpush.bf16.msra.mxu0 0
        %2160 = vmatpush.bf16.msra.mxu0 0
        %2161 = vmatpush.bf16.msra.mxu0 0
        %2162 = vmatpush.bf16.msra.mxu0 0
        %2163 = vmatpush.bf16.msra.mxu0 0
        %2164 = vmatpush.bf16.msra.mxu0 0
        %2165 = vmatpush.bf16.msra.mxu0 %v2156
        %2166 = vmatpush.bf16.msra.mxu0 %v2155
        %2167 = vmatmul.bf16.gmra.mxu0 %v2082
        %v2168 = vpop.f32.mrf.mxu0
        %v2169 = vadd.f32 0.0, %v2168
        %v2170 = vpop.f32.mrf.mxu0
        %2171 = vdwg.mxu0
        %v2172 = vmul.f32 %v2094, 0.35355338
        %v2173 = vmul.f32 %v2119, 0.35355338
        %v2174 = vmul.f32 %v2144, 0.35355338
        %v2175 = vmul.f32 %v2169, 0.35355338
        %v2180 = vunpack.c.l.b16 %v2031
        %v2181 = vunpack.c.l.b16 %v2032
        %v2182 = vunpack.c.l.b16 %v2033
        %v2183 = vunpack.c.l.b16 %v2034
        %v2184 = vpack.c.b16 %v2181, %v2180
        %v2185 = vpack.c.b16 %v2183, %v2182
        %v2189 = vsel %vm1374, %v2068, 0
        %2191 = vmatpush.bf16.msra.mxu0 0
        %2192 = vmatpush.bf16.msra.mxu0 0
        %2193 = vmatpush.bf16.msra.mxu0 0
        %2194 = vmatpush.bf16.msra.mxu0 0
        %2195 = vmatpush.bf16.msra.mxu0 0
        %2196 = vmatpush.bf16.msra.mxu0 0
        %2197 = vmatpush.bf16.msra.mxu0 %v2185
        %2198 = vmatpush.bf16.msra.mxu0 %v2184
        %2199 = vmatmul.bf16.gmra.mxu0 %v2189
        %v2200 = vpop.f32.mrf.mxu0
        %v2201 = vadd.f32 0.0, %v2200
        %v2202 = vpop.f32.mrf.mxu0
        %2203 = vdwg.mxu0
        %v2208 = vunpack.c.l.b16 %v2035
        %v2209 = vunpack.c.l.b16 %v2036
        %v2210 = vunpack.c.l.b16 %v2037
        %v2211 = vunpack.c.l.b16 %v2038
        %v2212 = vpack.c.b16 %v2209, %v2208
        %v2213 = vpack.c.b16 %v2211, %v2210
        %2216 = vmatpush.bf16.msra.mxu0 0
        %2217 = vmatpush.bf16.msra.mxu0 0
        %2218 = vmatpush.bf16.msra.mxu0 0
        %2219 = vmatpush.bf16.msra.mxu0 0
        %2220 = vmatpush.bf16.msra.mxu0 0
        %2221 = vmatpush.bf16.msra.mxu0 0
        %2222 = vmatpush.bf16.msra.mxu0 %v2213
        %2223 = vmatpush.bf16.msra.mxu0 %v2212
        %2224 = vmatmul.bf16.gmra.mxu0 %v2189
        %v2225 = vpop.f32.mrf.mxu0
        %v2226 = vadd.f32 0.0, %v2225
        %v2227 = vpop.f32.mrf.mxu0
        %2228 = vdwg.mxu0
        %v2233 = vunpack.c.l.b16 %v2039
        %v2234 = vunpack.c.l.b16 %v2040
        %v2235 = vunpack.c.l.b16 %v2041
        %v2236 = vunpack.c.l.b16 %v2042
        %v2237 = vpack.c.b16 %v2234, %v2233
        %v2238 = vpack.c.b16 %v2236, %v2235
        %2241 = vmatpush.bf16.msra.mxu0 0
        %2242 = vmatpush.bf16.msra.mxu0 0
        %2243 = vmatpush.bf16.msra.mxu0 0
        %2244 = vmatpush.bf16.msra.mxu0 0
        %2245 = vmatpush.bf16.msra.mxu0 0
        %2246 = vmatpush.bf16.msra.mxu0 0
        %2247 = vmatpush.bf16.msra.mxu0 %v2238
        %2248 = vmatpush.bf16.msra.mxu0 %v2237
        %2249 = vmatmul.bf16.gmra.mxu0 %v2189
        %v2250 = vpop.f32.mrf.mxu0
        %v2251 = vadd.f32 0.0, %v2250
        %v2252 = vpop.f32.mrf.mxu0
        %2253 = vdwg.mxu0
        %v2258 = vunpack.c.l.b16 %v2043
        %v2259 = vunpack.c.l.b16 %v2044
        %v2260 = vunpack.c.l.b16 %v2045
        %v2261 = vunpack.c.l.b16 %v2046
        %v2262 = vpack.c.b16 %v2259, %v2258
        %v2263 = vpack.c.b16 %v2261, %v2260
        %2266 = vmatpush.bf16.msra.mxu0 0
        %2267 = vmatpush.bf16.msra.mxu0 0
        %2268 = vmatpush.bf16.msra.mxu0 0
        %2269 = vmatpush.bf16.msra.mxu0 0
        %2270 = vmatpush.bf16.msra.mxu0 0
        %2271 = vmatpush.bf16.msra.mxu0 0
        %2272 = vmatpush.bf16.msra.mxu0 %v2263
        %2273 = vmatpush.bf16.msra.mxu0 %v2262
        %2274 = vmatmul.bf16.gmra.mxu0 %v2189
        %v2275 = vpop.f32.mrf.mxu0
        %v2276 = vadd.f32 0.0, %v2275
        %v2277 = vpop.f32.mrf.mxu0
        %2278 = vdwg.mxu0
        %v2283 = vunpack.c.l.b16 %v2047
        %v2284 = vunpack.c.l.b16 %v2048
        %v2285 = vunpack.c.l.b16 %v2049
        %v2286 = vunpack.c.l.b16 %v2050
        %v2287 = vpack.c.b16 %v2284, %v2283
        %v2288 = vpack.c.b16 %v2286, %v2285
        %2291 = vmatpush.bf16.msra.mxu0 0
        %2292 = vmatpush.bf16.msra.mxu0 0
        %2293 = vmatpush.bf16.msra.mxu0 0
        %2294 = vmatpush.bf16.msra.mxu0 0
        %2295 = vmatpush.bf16.msra.mxu0 0
        %2296 = vmatpush.bf16.msra.mxu0 0
        %2297 = vmatpush.bf16.msra.mxu0 %v2288
        %2298 = vmatpush.bf16.msra.mxu0 %v2287
        %2299 = vmatmul.bf16.gmra.mxu0 %v2189
        %v2300 = vpop.f32.mrf.mxu0
        %v2301 = vadd.f32 0.0, %v2300
        %v2302 = vpop.f32.mrf.mxu0
        %2303 = vdwg.mxu0
        %v2308 = vunpack.c.l.b16 %v2051
        %v2309 = vunpack.c.l.b16 %v2052
        %v2310 = vunpack.c.l.b16 %v2053
        %v2311 = vunpack.c.l.b16 %v2054
        %v2312 = vpack.c.b16 %v2309, %v2308
        %v2313 = vpack.c.b16 %v2311, %v2310
        %2316 = vmatpush.bf16.msra.mxu0 0
        %2317 = vmatpush.bf16.msra.mxu0 0
        %2318 = vmatpush.bf16.msra.mxu0 0
        %2319 = vmatpush.bf16.msra.mxu0 0
        %2320 = vmatpush.bf16.msra.mxu0 0
        %2321 = vmatpush.bf16.msra.mxu0 0
        %2322 = vmatpush.bf16.msra.mxu0 %v2313
        %2323 = vmatpush.bf16.msra.mxu0 %v2312
        %2324 = vmatmul.bf16.gmra.mxu0 %v2189
        %v2325 = vpop.f32.mrf.mxu0
        %v2326 = vadd.f32 0.0, %v2325
        %v2327 = vpop.f32.mrf.mxu0
        %2328 = vdwg.mxu0
        %v2333 = vunpack.c.l.b16 %v2055
        %v2334 = vunpack.c.l.b16 %v2056
        %v2335 = vunpack.c.l.b16 %v2057
        %v2336 = vunpack.c.l.b16 %v2058
        %v2337 = vpack.c.b16 %v2334, %v2333
        %v2338 = vpack.c.b16 %v2336, %v2335
        %2341 = vmatpush.bf16.msra.mxu0 0
        %2342 = vmatpush.bf16.msra.mxu0 0
        %2343 = vmatpush.bf16.msra.mxu0 0
        %2344 = vmatpush.bf16.msra.mxu0 0
        %2345 = vmatpush.bf16.msra.mxu0 0
        %2346 = vmatpush.bf16.msra.mxu0 0
        %2347 = vmatpush.bf16.msra.mxu0 %v2338
        %2348 = vmatpush.bf16.msra.mxu0 %v2337
        %2349 = vmatmul.bf16.gmra.mxu0 %v2189
        %v2350 = vpop.f32.mrf.mxu0
        %v2351 = vadd.f32 0.0, %v2350
        %v2352 = vpop.f32.mrf.mxu0
        %2353 = vdwg.mxu0
        %v2358 = vunpack.c.l.b16 %v2059
        %v2359 = vunpack.c.l.b16 %v2060
        %v2360 = vunpack.c.l.b16 %v2061
        %v2361 = vunpack.c.l.b16 %v2062
        %v2362 = vpack.c.b16 %v2359, %v2358
        %v2363 = vpack.c.b16 %v2361, %v2360
        %2366 = vmatpush.bf16.msra.mxu0 0
        %2367 = vmatpush.bf16.msra.mxu0 0
        %2368 = vmatpush.bf16.msra.mxu0 0
        %2369 = vmatpush.bf16.msra.mxu0 0
        %2370 = vmatpush.bf16.msra.mxu0 0
        %2371 = vmatpush.bf16.msra.mxu0 0
        %2372 = vmatpush.bf16.msra.mxu0 %v2363
        %2373 = vmatpush.bf16.msra.mxu0 %v2362
        %2374 = vmatmul.bf16.gmra.mxu0 %v2189
        %v2375 = vpop.f32.mrf.mxu0
        %v2376 = vadd.f32 0.0, %v2375
        %v2377 = vpop.f32.mrf.mxu0
        %2378 = vdwg.mxu0
        %v2379 = vpack.c.bf16 %v2172, %v2172
        %v2380 = vpack.c.bf16 %v2173, %v2173
        %v2381 = vpack.c.bf16 %v2174, %v2174
        %v2382 = vpack.c.bf16 %v2175, %v2175
        %v2383 = vpack.c.bf16 %v2201, %v2201
        %v2384 = vpack.c.bf16 %v2226, %v2226
        %v2385 = vpack.c.bf16 %v2251, %v2251
        %v2386 = vpack.c.bf16 %v2276, %v2276
        %v2388 = vsel %vm1678, %v2379, 0
        %v2391 = vsel %vm1678, %v2383, 0
        %2393 = vmatpush.bf16.xpose.msra.mxu0 0
        %2394 = vmatpush.bf16.xpose.msra.mxu0 0
        %2395 = vmatpush.bf16.xpose.msra.mxu0 0
        %2396 = vmatpush.bf16.xpose.msra.mxu0 0
        %2397 = vmatpush.bf16.xpose.msra.mxu0 0
        %2398 = vmatpush.bf16.xpose.msra.mxu0 0
        %2399 = vmatpush.bf16.xpose.msra.mxu0 0
        %2400 = vmatpush.bf16.xpose.msra.mxu0 %v2391
        %2401 = vmatmul.bf16.gmra.mxu0 %v2388
        %v2402 = vpop.f32.mrf.mxu0
        %v2403 = vadd.f32 0.0, %v2402
        %v2404 = vpop.f32.mrf.mxu0
        %2405 = vdwg.mxu0
        %v2407 = vsel %vm1678, %v2380, 0
        %v2410 = vsel %vm1678, %v2384, 0
        %2412 = vmatpush.bf16.xpose.msra.mxu0 0
        %2413 = vmatpush.bf16.xpose.msra.mxu0 0
        %2414 = vmatpush.bf16.xpose.msra.mxu0 0
        %2415 = vmatpush.bf16.xpose.msra.mxu0 0
        %2416 = vmatpush.bf16.xpose.msra.mxu0 0
        %2417 = vmatpush.bf16.xpose.msra.mxu0 0
        %2418 = vmatpush.bf16.xpose.msra.mxu0 0
        %2419 = vmatpush.bf16.xpose.msra.mxu0 %v2410
        %2420 = vmatmul.bf16.gmra.mxu0 %v2407
        %v2421 = vpop.f32.mrf.mxu0
        %v2422 = vadd.f32 0.0, %v2421
        %v2423 = vpop.f32.mrf.mxu0
        %2424 = vdwg.mxu0
        %v2426 = vsel %vm1678, %v2381, 0
        %v2429 = vsel %vm1678, %v2385, 0
        %2431 = vmatpush.bf16.xpose.msra.mxu0 0
        %2432 = vmatpush.bf16.xpose.msra.mxu0 0
        %2433 = vmatpush.bf16.xpose.msra.mxu0 0
        %2434 = vmatpush.bf16.xpose.msra.mxu0 0
        %2435 = vmatpush.bf16.xpose.msra.mxu0 0
        %2436 = vmatpush.bf16.xpose.msra.mxu0 0
        %2437 = vmatpush.bf16.xpose.msra.mxu0 0
        %2438 = vmatpush.bf16.xpose.msra.mxu0 %v2429
        %2439 = vmatmul.bf16.gmra.mxu0 %v2426
        %v2440 = vpop.f32.mrf.mxu0
        %v2441 = vadd.f32 0.0, %v2440
        %v2442 = vpop.f32.mrf.mxu0
        %2443 = vdwg.mxu0
        %v2445 = vsel %vm1678, %v2382, 0
        %v2448 = vsel %vm1678, %v2386, 0
        %2450 = vmatpush.bf16.xpose.msra.mxu0 0
        %2451 = vmatpush.bf16.xpose.msra.mxu0 0
        %2452 = vmatpush.bf16.xpose.msra.mxu0 0
        %2453 = vmatpush.bf16.xpose.msra.mxu0 0
        %2454 = vmatpush.bf16.xpose.msra.mxu0 0
        %2455 = vmatpush.bf16.xpose.msra.mxu0 0
        %2456 = vmatpush.bf16.xpose.msra.mxu0 0
        %2457 = vmatpush.bf16.xpose.msra.mxu0 %v2448
        %2458 = vmatmul.bf16.gmra.mxu0 %v2445
        %v2459 = vpop.f32.mrf.mxu0
        %v2460 = vadd.f32 0.0, %v2459
        %v2461 = vpop.f32.mrf.mxu0
        %2462 = vdwg.mxu0
        %v2463 = vsel %vm1308, %v2403, 1e-06
        %v2464 = vsel %vm1308, %v2422, 1e-06
        %v2465 = vsel %vm1308, %v2441, 1e-06
        %v2466 = vsel %vm1308, %v2460, 1e-06
        %v2467 = vsel %vm1678, %v2463, -inf
        %2468 = vmax.xlane.f32.xlu0 %v2467
        %v2469 = vpop.xlane.xlu0 %2468
        %v2470 = vsel %vm1678, %v2464, -inf
        %2471 = vmax.xlane.f32.xlu0 %v2470
        %v2472 = vpop.xlane.xlu0 %2471
        %v2473 = vsel %vm1678, %v2465, -inf
        %2474 = vmax.xlane.f32.xlu0 %v2473
        %v2475 = vpop.xlane.xlu0 %2474
        %v2476 = vsel %vm1678, %v2466, -inf
        %2477 = vmax.xlane.f32.xlu0 %v2476
        %v2478 = vpop.xlane.xlu0 %2477
        %v2479 = vsub.f32 %v2463, %v2469
        %v2480 = vsub.f32 %v2464, %v2472
        %v2481 = vsub.f32 %v2465, %v2475
        %v2482 = vsub.f32 %v2466, %v2478
        %v2483 = vmul.f32 %v2479, 1.442695
        %v2484 = vpow.pop %v2483
        %v2485 = vmul.f32 %v2480, 1.442695
        %v2486 = vpow.pop %v2485
        %v2487 = vmul.f32 %v2481, 1.442695
        %v2488 = vpow.pop %v2487
        %v2489 = vmul.f32 %v2482, 1.442695
        %v2490 = vpow.pop %v2489
        %v2491 = vsel %vm1678, %v2484, 0.0
        %2492 = vadd.xlane.f32.xlu0 %v2491
        %v2493 = vpop.xlane.xlu0 %2492
        %v2494 = vsel %vm1678, %v2486, 0.0
        %2495 = vadd.xlane.f32.xlu0 %v2494
        %v2496 = vpop.xlane.xlu0 %2495
        %v2497 = vsel %vm1678, %v2488, 0.0
        %2498 = vadd.xlane.f32.xlu0 %v2497
        %v2499 = vpop.xlane.xlu0 %2498
        %v2500 = vsel %vm1678, %v2490, 0.0
        %2501 = vadd.xlane.f32.xlu0 %v2500
        %v2502 = vpop.xlane.xlu0 %2501
        %v2503 = vrcp.pop %v2493
        %v2504 = vrcp.pop %v2496
        %v2505 = vrcp.pop %v2499
        %v2506 = vrcp.pop %v2502
        %v2507 = vmul.f32 %v2484, %v2503
        %v2508 = vmul.f32 %v2486, %v2504
        %v2509 = vmul.f32 %v2488, %v2505
        %v2510 = vmul.f32 %v2490, %v2506
        %v2511 = vpack.c.bf16 %v2507, %v2507
        %v2512 = vpack.c.bf16 %v2508, %v2508
        %v2513 = vpack.c.bf16 %v2509, %v2509
        %v2514 = vpack.c.bf16 %v2510, %v2510
        %v2515 = vpack.c.bf16 %v2301, %v2301
        %v2516 = vpack.c.bf16 %v2326, %v2326
        %v2517 = vpack.c.bf16 %v2351, %v2351
        %v2518 = vpack.c.bf16 %v2376, %v2376
        %v2520 = vsel %vm1678, %v2511, 0
        %v2523 = vsel %vm1814, %v2515, 0
        %2525 = vmatpush.bf16.msra.mxu0 0
        %2526 = vmatpush.bf16.msra.mxu0 0
        %2527 = vmatpush.bf16.msra.mxu0 0
        %2528 = vmatpush.bf16.msra.mxu0 0
        %2529 = vmatpush.bf16.msra.mxu0 0
        %2530 = vmatpush.bf16.msra.mxu0 0
        %2531 = vmatpush.bf16.msra.mxu0 0
        %2532 = vmatpush.bf16.msra.mxu0 %v2523
        %2533 = vmatmul.bf16.gmra.mxu0 %v2520
        %v2534 = vpop.f32.mrf.mxu0
        %v2535 = vadd.f32 0.0, %v2534
        %v2536 = vpop.f32.mrf.mxu0
        %2537 = vdwg.mxu0
        %v2539 = vsel %vm1678, %v2512, 0
        %v2542 = vsel %vm1814, %v2516, 0
        %2544 = vmatpush.bf16.msra.mxu0 0
        %2545 = vmatpush.bf16.msra.mxu0 0
        %2546 = vmatpush.bf16.msra.mxu0 0
        %2547 = vmatpush.bf16.msra.mxu0 0
        %2548 = vmatpush.bf16.msra.mxu0 0
        %2549 = vmatpush.bf16.msra.mxu0 0
        %2550 = vmatpush.bf16.msra.mxu0 0
        %2551 = vmatpush.bf16.msra.mxu0 %v2542
        %2552 = vmatmul.bf16.gmra.mxu0 %v2539
        %v2553 = vpop.f32.mrf.mxu0
        %v2554 = vadd.f32 0.0, %v2553
        %v2555 = vpop.f32.mrf.mxu0
        %2556 = vdwg.mxu0
        %v2558 = vsel %vm1678, %v2513, 0
        %v2561 = vsel %vm1814, %v2517, 0
        %2563 = vmatpush.bf16.msra.mxu0 0
        %2564 = vmatpush.bf16.msra.mxu0 0
        %2565 = vmatpush.bf16.msra.mxu0 0
        %2566 = vmatpush.bf16.msra.mxu0 0
        %2567 = vmatpush.bf16.msra.mxu0 0
        %2568 = vmatpush.bf16.msra.mxu0 0
        %2569 = vmatpush.bf16.msra.mxu0 0
        %2570 = vmatpush.bf16.msra.mxu0 %v2561
        %2571 = vmatmul.bf16.gmra.mxu0 %v2558
        %v2572 = vpop.f32.mrf.mxu0
        %v2573 = vadd.f32 0.0, %v2572
        %v2574 = vpop.f32.mrf.mxu0
        %2575 = vdwg.mxu0
        %v2577 = vsel %vm1678, %v2514, 0
        %v2580 = vsel %vm1814, %v2518, 0
        %2582 = vmatpush.bf16.msra.mxu0 0
        %2583 = vmatpush.bf16.msra.mxu0 0
        %2584 = vmatpush.bf16.msra.mxu0 0
        %2585 = vmatpush.bf16.msra.mxu0 0
        %2586 = vmatpush.bf16.msra.mxu0 0
        %2587 = vmatpush.bf16.msra.mxu0 0
        %2588 = vmatpush.bf16.msra.mxu0 0
        %2589 = vmatpush.bf16.msra.mxu0 %v2580
        %2590 = vmatmul.bf16.gmra.mxu0 %v2577
        %v2591 = vpop.f32.mrf.mxu0
        %v2592 = vadd.f32 0.0, %v2591
        %v2593 = vpop.f32.mrf.mxu0
        %2594 = vdwg.mxu0
        %v2595 = vpack.c.bf16 %v2535, %v2535
        %v2596 = vpack.c.bf16 %v2554, %v2554
        %v2597 = vpack.c.bf16 %v2573, %v2573
        %v2598 = vpack.c.bf16 %v2592, %v2592
        %v2600 = vsel %vm1678, %v2595, 0
        %v2603 = vsel %vm1814, %v2063, 0
        %2605 = vmatpush.bf16.msra.mxu0 0
        %2606 = vmatpush.bf16.msra.mxu0 0
        %2607 = vmatpush.bf16.msra.mxu0 0
        %2608 = vmatpush.bf16.msra.mxu0 0
        %2609 = vmatpush.bf16.msra.mxu0 0
        %2610 = vmatpush.bf16.msra.mxu0 0
        %2611 = vmatpush.bf16.msra.mxu0 0
        %2612 = vmatpush.bf16.msra.mxu0 %v2603
        %2613 = vmatmul.bf16.gmra.mxu0 %v2600
        %v2614 = vpop.f32.mrf.mxu0
        %v2615 = vadd.f32 0.0, %v2614
        %v2616 = vpop.f32.mrf.mxu0
        %2617 = vdwg.mxu0
        %v2619 = vsel %vm1678, %v2596, 0
        %v2622 = vsel %vm1814, %v2064, 0
        %2624 = vmatpush.bf16.msra.mxu0 0
        %2625 = vmatpush.bf16.msra.mxu0 0
        %2626 = vmatpush.bf16.msra.mxu0 0
        %2627 = vmatpush.bf16.msra.mxu0 0
        %2628 = vmatpush.bf16.msra.mxu0 0
        %2629 = vmatpush.bf16.msra.mxu0 0
        %2630 = vmatpush.bf16.msra.mxu0 0
        %2631 = vmatpush.bf16.msra.mxu0 %v2622
        %2632 = vmatmul.bf16.gmra.mxu0 %v2619
        %v2633 = vpop.f32.mrf.mxu0
        %v2634 = vadd.f32 0.0, %v2633
        %v2635 = vpop.f32.mrf.mxu0
        %2636 = vdwg.mxu0
        %v2638 = vsel %vm1678, %v2597, 0
        %v2641 = vsel %vm1814, %v2065, 0
        %2643 = vmatpush.bf16.msra.mxu0 0
        %2644 = vmatpush.bf16.msra.mxu0 0
        %2645 = vmatpush.bf16.msra.mxu0 0
        %2646 = vmatpush.bf16.msra.mxu0 0
        %2647 = vmatpush.bf16.msra.mxu0 0
        %2648 = vmatpush.bf16.msra.mxu0 0
        %2649 = vmatpush.bf16.msra.mxu0 0
        %2650 = vmatpush.bf16.msra.mxu0 %v2641
        %2651 = vmatmul.bf16.gmra.mxu0 %v2638
        %v2652 = vpop.f32.mrf.mxu0
        %v2653 = vadd.f32 0.0, %v2652
        %v2654 = vpop.f32.mrf.mxu0
        %2655 = vdwg.mxu0
        %v2657 = vsel %vm1678, %v2598, 0
        %v2660 = vsel %vm1814, %v2066, 0
        %2662 = vmatpush.bf16.msra.mxu0 0
        %2663 = vmatpush.bf16.msra.mxu0 0
        %2664 = vmatpush.bf16.msra.mxu0 0
        %2665 = vmatpush.bf16.msra.mxu0 0
        %2666 = vmatpush.bf16.msra.mxu0 0
        %2667 = vmatpush.bf16.msra.mxu0 0
        %2668 = vmatpush.bf16.msra.mxu0 0
        %2669 = vmatpush.bf16.msra.mxu0 %v2660
        %2670 = vmatmul.bf16.gmra.mxu0 %v2657
        %v2671 = vpop.f32.mrf.mxu0
        %v2672 = vadd.f32 0.0, %v2671
        %v2673 = vpop.f32.mrf.mxu0
        %2674 = vdwg.mxu0
        %v2675 = vsel %vm1374, %v2615, 0.0
        %v2676 = vsel %vm1374, %v2634, 0.0
        %v2677 = vadd.f32 %v2675, %v2676
        %v2678 = vsel %vm1374, %v2653, 0.0
        %v2679 = vadd.f32 %v2677, %v2678
        %v2680 = vsel %vm1374, %v2672, 0.0
        %v2681 = vadd.f32 %v2679, %v2680
        %v2682 = vld [vmem:[%s31] sm:$0x1]
        %v2683 = vld [vmem:[%s33] sm:$0x1]
        %v2684 = vadd.f32 %v2014, %v2681
        %v2685 = vsel %vm1374, %v2684, 0.0
        %2686 = vadd.xlane.f32.xlu0 %v2685
        %v2687 = vpop.xlane.xlu0 %2686
        %v2688 = vmul.f32 %v2687, %v1987
        %v2689 = vsub.f32 %v2684, %v2688
        %v2690 = vmul.f32 %v2689, %v2689
        %v2691 = vsel %vm1374, %v2690, 0.0
        %2692 = vadd.xlane.f32.xlu0 %v2691
        %v2693 = vpop.xlane.xlu0 %2692
        %v2694 = vmul.f32 %v2693, %v1987
        %v2695 = vadd.f32 %v2694, 1e-05
        %v2696 = vrsqrt.pop %v2695
        %v2697 = vmul.f32 %v2696, %v2695
        %v2698 = vmul.f32 %v2697, %v2696
        %v2699 = vmul.f32 0.5, %v2698
        %v2700 = vsub.f32 1.5, %v2699
        %v2701 = vmul.f32 %v2696, %v2700
        %vm2702 = vweird.f32 %v2695
        %vm2703 = vweird.f32 %v2696
        %vm2704 = vmor %vm2702, %vm2703
        %v2705 = vsel %vm2704, %v2696, %v2701
        %v2706 = vmul.f32 %v2689, %v2705
        %v2708 = vperm.slane %v2682, 0
        %v2710 = vmul.f32 %v2706, %v2708
        %v2712 = vperm.slane %v2683, 0
        %v2714 = vadd.f32 %v2710, %v2712
        %v2715 = vld [vmem:[%s35] sm:$0xf]
        %v2716 = vld [vmem:[%s35 + $0x4] sm:$0xf]
        %v2717 = vld [vmem:[%s35 + $0x8] sm:$0xf]
        %v2718 = vld [vmem:[%s35 + $0xc] sm:$0xf]
        %v2719 = vld [vmem:[%s35 + $0x10] sm:$0xf]
        %v2720 = vld [vmem:[%s35 + $0x14] sm:$0xf]
        %v2721 = vld [vmem:[%s35 + $0x18] sm:$0xf]
        %v2722 = vld [vmem:[%s35 + $0x1c] sm:$0xf]
        %v2723 = vpack.c.bf16 %v2714, %v2714
        %v2724 = vld [vmem:[%s37] sm:$0x1]
        %v2726 = vperm.slane %v2724, 0
        %v2736 = vunpack.c.l.b16 %v2715
        %v2737 = vunpack.c.l.b16 %v2716
        %v2738 = vunpack.c.l.b16 %v2717
        %v2739 = vunpack.c.l.b16 %v2718
        %v2740 = vunpack.c.l.b16 %v2719
        %v2741 = vunpack.c.l.b16 %v2720
        %v2742 = vunpack.c.l.b16 %v2721
        %v2743 = vunpack.c.l.b16 %v2722
        %v2744 = vpack.c.b16 %v2737, %v2736
        %v2745 = vpack.c.b16 %v2739, %v2738
        %v2746 = vpack.c.b16 %v2741, %v2740
        %v2747 = vpack.c.b16 %v2743, %v2742
        %v2749 = vsel %vm1374, %v2723, 0
        %v2752 = vsel %vm1374, %v2744, 0
        %v2755 = vsel %vm1374, %v2745, 0
        %v2758 = vsel %vm1374, %v2746, 0
        %v2761 = vsel %vm1374, %v2747, 0
        %2763 = vmatpush.bf16.xpose.msra.mxu0 0
        %2764 = vmatpush.bf16.xpose.msra.mxu0 0
        %2765 = vmatpush.bf16.xpose.msra.mxu0 0
        %2766 = vmatpush.bf16.xpose.msra.mxu0 0
        %2767 = vmatpush.bf16.xpose.msra.mxu0 %v2761
        %2768 = vmatpush.bf16.xpose.msra.mxu0 %v2758
        %2769 = vmatpush.bf16.xpose.msra.mxu0 %v2755
        %2770 = vmatpush.bf16.xpose.msra.mxu0 %v2752
        %2771 = vmatmul.bf16.gmra.mxu0 %v2749
        %v2772 = vpop.f32.mrf.mxu0
        %v2773 = vadd.f32 %v2726, %v2772
        %v2774 = vpop.f32.mrf.mxu0
        %2775 = vdwg.mxu0
        %v2776 = vmax.f32 %v2773, 0.0
        %v2777 = vld [vmem:[%s39] sm:$0xf]
        %v2778 = vld [vmem:[%s39 + $0x4] sm:$0xf]
        %v2779 = vld [vmem:[%s39 + $0x8] sm:$0xf]
        %v2780 = vld [vmem:[%s39 + $0xc] sm:$0xf]
        %v2781 = vpack.c.bf16 %v2776, %v2776
        %v2782 = vld [vmem:[%s41] sm:$0x1]
        %v2784 = vperm.slane %v2782, 0
        %v2790 = vunpack.c.l.b16 %v2777
        %v2791 = vunpack.c.l.b16 %v2778
        %v2792 = vunpack.c.l.b16 %v2779
        %v2793 = vunpack.c.l.b16 %v2780
        %v2794 = vpack.c.b16 %v2791, %v2790
        %v2795 = vpack.c.b16 %v2793, %v2792
        %vm2796 = vcmask 523264
        %v2798 = vsel %vm2796, %v2781, 0
        %v2801 = vsel %vm2796, %v2794, 0
        %v2804 = vsel %vm2796, %v2795, 0
        %2806 = vmatpush.bf16.xpose.msra.mxu0 0
        %2807 = vmatpush.bf16.xpose.msra.mxu0 0
        %2808 = vmatpush.bf16.xpose.msra.mxu0 0
        %2809 = vmatpush.bf16.xpose.msra.mxu0 0
        %2810 = vmatpush.bf16.xpose.msra.mxu0 0
        %2811 = vmatpush.bf16.xpose.msra.mxu0 0
        %2812 = vmatpush.bf16.xpose.msra.mxu0 %v2804
        %2813 = vmatpush.bf16.xpose.msra.mxu0 %v2801
        %2814 = vmatmul.bf16.gmra.mxu0 %v2798
        %v2815 = vpop.f32.mrf.mxu0
        %v2816 = vadd.f32 %v2784, %v2815
        %v2817 = vpop.f32.mrf.mxu0
        %2818 = vdwg.mxu0
        %v2819 = vld [vmem:[%s43] sm:$0x1]
        %v2820 = vld [vmem:[%s45] sm:$0x1]
        %v2821 = vadd.f32 %v2714, %v2816
        %v2822 = vsel %vm1374, %v2821, 0.0
        %2823 = vadd.xlane.f32.xlu0 %v2822
        %v2824 = vpop.xlane.xlu0 %2823
        %v2825 = vmul.f32 %v2824, %v1987
        %v2826 = vsub.f32 %v2821, %v2825
        %v2827 = vmul.f32 %v2826, %v2826
        %v2828 = vsel %vm1374, %v2827, 0.0
        %2829 = vadd.xlane.f32.xlu0 %v2828
        %v2830 = vpop.xlane.xlu0 %2829
        %v2831 = vmul.f32 %v2830, %v1987
        %v2832 = vadd.f32 %v2831, 1e-05
        %v2833 = vrsqrt.pop %v2832
        %v2834 = vmul.f32 %v2833, %v2832
        %v2835 = vmul.f32 %v2834, %v2833
        %v2836 = vmul.f32 0.5, %v2835
        %v2837 = vsub.f32 1.5, %v2836
        %v2838 = vmul.f32 %v2833, %v2837
        %vm2839 = vweird.f32 %v2832
        %vm2840 = vweird.f32 %v2833
        %vm2841 = vmor %vm2839, %vm2840
        %v2842 = vsel %vm2841, %v2833, %v2838
        %v2843 = vmul.f32 %v2826, %v2842
        %v2845 = vperm.slane %v2819, 0
        %v2847 = vmul.f32 %v2843, %v2845
        %v2849 = vperm.slane %v2820, 0
        %v2851 = vadd.f32 %v2847, %v2849
        %v2852 = vld [vmem:[%s47] sm:$0xf]
        %v2853 = vld [vmem:[%s47 + $0x4] sm:$0xf]
        %v2854 = vld [vmem:[%s47 + $0x8] sm:$0xf]
        %v2855 = vld [vmem:[%s47 + $0xc] sm:$0xf]
        %v2856 = vld [vmem:[%s47 + $0x10] sm:$0xf]
        %v2857 = vld [vmem:[%s47 + $0x14] sm:$0xf]
        %v2858 = vld [vmem:[%s47 + $0x18] sm:$0xf]
        %v2859 = vld [vmem:[%s47 + $0x1c] sm:$0xf]
        %v2860 = vld [vmem:[%s47 + $0x20] sm:$0xf]
        %v2861 = vld [vmem:[%s47 + $0x24] sm:$0xf]
        %v2862 = vld [vmem:[%s47 + $0x28] sm:$0xf]
        %v2863 = vld [vmem:[%s47 + $0x2c] sm:$0xf]
        %v2864 = vld [vmem:[%s47 + $0x30] sm:$0xf]
        %v2865 = vld [vmem:[%s47 + $0x34] sm:$0xf]
        %v2866 = vld [vmem:[%s47 + $0x38] sm:$0xf]
        %v2867 = vld [vmem:[%s47 + $0x3c] sm:$0xf]
        %v2868 = vld [vmem:[%s49] sm:$0xf]
        %v2869 = vld [vmem:[%s49 + $0x4] sm:$0xf]
        %v2870 = vld [vmem:[%s49 + $0x8] sm:$0xf]
        %v2871 = vld [vmem:[%s49 + $0xc] sm:$0xf]
        %v2872 = vld [vmem:[%s49 + $0x10] sm:$0xf]
        %v2873 = vld [vmem:[%s49 + $0x14] sm:$0xf]
        %v2874 = vld [vmem:[%s49 + $0x18] sm:$0xf]
        %v2875 = vld [vmem:[%s49 + $0x1c] sm:$0xf]
        %v2876 = vld [vmem:[%s49 + $0x20] sm:$0xf]
        %v2877 = vld [vmem:[%s49 + $0x24] sm:$0xf]
        %v2878 = vld [vmem:[%s49 + $0x28] sm:$0xf]
        %v2879 = vld [vmem:[%s49 + $0x2c] sm:$0xf]
        %v2880 = vld [vmem:[%s49 + $0x30] sm:$0xf]
        %v2881 = vld [vmem:[%s49 + $0x34] sm:$0xf]
        %v2882 = vld [vmem:[%s49 + $0x38] sm:$0xf]
        %v2883 = vld [vmem:[%s49 + $0x3c] sm:$0xf]
        %v2884 = vld [vmem:[%s51] sm:$0xf]
        %v2885 = vld [vmem:[%s51 + $0x4] sm:$0xf]
        %v2886 = vld [vmem:[%s51 + $0x8] sm:$0xf]
        %v2887 = vld [vmem:[%s51 + $0xc] sm:$0xf]
        %v2888 = vld [vmem:[%s51 + $0x10] sm:$0xf]
        %v2889 = vld [vmem:[%s51 + $0x14] sm:$0xf]
        %v2890 = vld [vmem:[%s51 + $0x18] sm:$0xf]
        %v2891 = vld [vmem:[%s51 + $0x1c] sm:$0xf]
        %v2892 = vld [vmem:[%s51 + $0x20] sm:$0xf]
        %v2893 = vld [vmem:[%s51 + $0x24] sm:$0xf]
        %v2894 = vld [vmem:[%s51 + $0x28] sm:$0xf]
        %v2895 = vld [vmem:[%s51 + $0x2c] sm:$0xf]
        %v2896 = vld [vmem:[%s51 + $0x30] sm:$0xf]
        %v2897 = vld [vmem:[%s51 + $0x34] sm:$0xf]
        %v2898 = vld [vmem:[%s51 + $0x38] sm:$0xf]
        %v2899 = vld [vmem:[%s51 + $0x3c] sm:$0xf]
        %v2900 = vld [vmem:[%s53] sm:$0xf]
        %v2901 = vld [vmem:[%s53 + $0x4] sm:$0xf]
        %v2902 = vld [vmem:[%s53 + $0x8] sm:$0xf]
        %v2903 = vld [vmem:[%s53 + $0xc] sm:$0xf]
        %v2904 = vpack.c.bf16 %v2851, %v2851
        %v2909 = vunpack.c.l.b16 %v2852
        %v2910 = vunpack.c.l.b16 %v2853
        %v2911 = vunpack.c.l.b16 %v2854
        %v2912 = vunpack.c.l.b16 %v2855
        %v2913 = vpack.c.b16 %v2910, %v2909
        %v2914 = vpack.c.b16 %v2912, %v2911
        %v2918 = vsel %vm1374, %v2904, 0
        %2920 = vmatpush.bf16.msra.mxu0 0
        %2921 = vmatpush.bf16.msra.mxu0 0
        %2922 = vmatpush.bf16.msra.mxu0 0
        %2923 = vmatpush.bf16.msra.mxu0 0
        %2924 = vmatpush.bf16.msra.mxu0 0
        %2925 = vmatpush.bf16.msra.mxu0 0
        %2926 = vmatpush.bf16.msra.mxu0 %v2914
        %2927 = vmatpush.bf16.msra.mxu0 %v2913
        %2928 = vmatmul.bf16.gmra.mxu0 %v2918
        %v2929 = vpop.f32.mrf.mxu0
        %v2930 = vadd.f32 0.0, %v2929
        %v2931 = vpop.f32.mrf.mxu0
        %2932 = vdwg.mxu0
        %v2937 = vunpack.c.l.b16 %v2856
        %v2938 = vunpack.c.l.b16 %v2857
        %v2939 = vunpack.c.l.b16 %v2858
        %v2940 = vunpack.c.l.b16 %v2859
        %v2941 = vpack.c.b16 %v2938, %v2937
        %v2942 = vpack.c.b16 %v2940, %v2939
        %2945 = vmatpush.bf16.msra.mxu0 0
        %2946 = vmatpush.bf16.msra.mxu0 0
        %2947 = vmatpush.bf16.msra.mxu0 0
        %2948 = vmatpush.bf16.msra.mxu0 0
        %2949 = vmatpush.bf16.msra.mxu0 0
        %2950 = vmatpush.bf16.msra.mxu0 0
        %2951 = vmatpush.bf16.msra.mxu0 %v2942
        %2952 = vmatpush.bf16.msra.mxu0 %v2941
        %2953 = vmatmul.bf16.gmra.mxu0 %v2918
        %v2954 = vpop.f32.mrf.mxu0
        %v2955 = vadd.f32 0.0, %v2954
        %v2956 = vpop.f32.mrf.mxu0
        %2957 = vdwg.mxu0
        %v2962 = vunpack.c.l.b16 %v2860
        %v2963 = vunpack.c.l.b16 %v2861
        %v2964 = vunpack.c.l.b16 %v2862
        %v2965 = vunpack.c.l.b16 %v2863
        %v2966 = vpack.c.b16 %v2963, %v2962
        %v2967 = vpack.c.b16 %v2965, %v2964
        %2970 = vmatpush.bf16.msra.mxu0 0
        %2971 = vmatpush.bf16.msra.mxu0 0
        %2972 = vmatpush.bf16.msra.mxu0 0
        %2973 = vmatpush.bf16.msra.mxu0 0
        %2974 = vmatpush.bf16.msra.mxu0 0
        %2975 = vmatpush.bf16.msra.mxu0 0
        %2976 = vmatpush.bf16.msra.mxu0 %v2967
        %2977 = vmatpush.bf16.msra.mxu0 %v2966
        %2978 = vmatmul.bf16.gmra.mxu0 %v2918
        %v2979 = vpop.f32.mrf.mxu0
        %v2980 = vadd.f32 0.0, %v2979
        %v2981 = vpop.f32.mrf.mxu0
        %2982 = vdwg.mxu0
        %v2987 = vunpack.c.l.b16 %v2864
        %v2988 = vunpack.c.l.b16 %v2865
        %v2989 = vunpack.c.l.b16 %v2866
        %v2990 = vunpack.c.l.b16 %v2867
        %v2991 = vpack.c.b16 %v2988, %v2987
        %v2992 = vpack.c.b16 %v2990, %v2989
        %2995 = vmatpush.bf16.msra.mxu0 0
        %2996 = vmatpush.bf16.msra.mxu0 0
        %2997 = vmatpush.bf16.msra.mxu0 0
        %2998 = vmatpush.bf16.msra.mxu0 0
        %2999 = vmatpush.bf16.msra.mxu0 0
        %3000 = vmatpush.bf16.msra.mxu0 0
        %3001 = vmatpush.bf16.msra.mxu0 %v2992
        %3002 = vmatpush.bf16.msra.mxu0 %v2991
        %3003 = vmatmul.bf16.gmra.mxu0 %v2918
        %v3004 = vpop.f32.mrf.mxu0
        %v3005 = vadd.f32 0.0, %v3004
        %v3006 = vpop.f32.mrf.mxu0
        %3007 = vdwg.mxu0
        %v3008 = vmul.f32 %v2930, 0.35355338
        %v3009 = vmul.f32 %v2955, 0.35355338
        %v3010 = vmul.f32 %v2980, 0.35355338
        %v3011 = vmul.f32 %v3005, 0.35355338
        %v3016 = vunpack.c.l.b16 %v2868
        %v3017 = vunpack.c.l.b16 %v2869
        %v3018 = vunpack.c.l.b16 %v2870
        %v3019 = vunpack.c.l.b16 %v2871
        %v3020 = vpack.c.b16 %v3017, %v3016
        %v3021 = vpack.c.b16 %v3019, %v3018
        %3024 = vmatpush.bf16.msra.mxu0 0
        %3025 = vmatpush.bf16.msra.mxu0 0
        %3026 = vmatpush.bf16.msra.mxu0 0
        %3027 = vmatpush.bf16.msra.mxu0 0
        %3028 = vmatpush.bf16.msra.mxu0 0
        %3029 = vmatpush.bf16.msra.mxu0 0
        %3030 = vmatpush.bf16.msra.mxu0 %v3021
        %3031 = vmatpush.bf16.msra.mxu0 %v3020
        %3032 = vmatmul.bf16.gmra.mxu0 %v2918
        %v3033 = vpop.f32.mrf.mxu0
        %v3034 = vadd.f32 0.0, %v3033
        %v3035 = vpop.f32.mrf.mxu0
        %3036 = vdwg.mxu0
        %v3041 = vunpack.c.l.b16 %v2872
        %v3042 = vunpack.c.l.b16 %v2873
        %v3043 = vunpack.c.l.b16 %v2874
        %v3044 = vunpack.c.l.b16 %v2875
        %v3045 = vpack.c.b16 %v3042, %v3041
        %v3046 = vpack.c.b16 %v3044, %v3043
        %3049 = vmatpush.bf16.msra.mxu0 0
        %3050 = vmatpush.bf16.msra.mxu0 0
        %3051 = vmatpush.bf16.msra.mxu0 0
        %3052 = vmatpush.bf16.msra.mxu0 0
        %3053 = vmatpush.bf16.msra.mxu0 0
        %3054 = vmatpush.bf16.msra.mxu0 0
        %3055 = vmatpush.bf16.msra.mxu0 %v3046
        %3056 = vmatpush.bf16.msra.mxu0 %v3045
        %3057 = vmatmul.bf16.gmra.mxu0 %v2918
        %v3058 = vpop.f32.mrf.mxu0
        %v3059 = vadd.f32 0.0, %v3058
        %v3060 = vpop.f32.mrf.mxu0
        %3061 = vdwg.mxu0
        %v3066 = vunpack.c.l.b16 %v2876
        %v3067 = vunpack.c.l.b16 %v2877
        %v3068 = vunpack.c.l.b16 %v2878
        %v3069 = vunpack.c.l.b16 %v2879
        %v3070 = vpack.c.b16 %v3067, %v3066
        %v3071 = vpack.c.b16 %v3069, %v3068
        %3074 = vmatpush.bf16.msra.mxu0 0
        %3075 = vmatpush.bf16.msra.mxu0 0
        %3076 = vmatpush.bf16.msra.mxu0 0
        %3077 = vmatpush.bf16.msra.mxu0 0
        %3078 = vmatpush.bf16.msra.mxu0 0
        %3079 = vmatpush.bf16.msra.mxu0 0
        %3080 = vmatpush.bf16.msra.mxu0 %v3071
        %3081 = vmatpush.bf16.msra.mxu0 %v3070
        %3082 = vmatmul.bf16.gmra.mxu0 %v2918
        %v3083 = vpop.f32.mrf.mxu0
        %v3084 = vadd.f32 0.0, %v3083
        %v3085 = vpop.f32.mrf.mxu0
        %3086 = vdwg.mxu0
        %v3091 = vunpack.c.l.b16 %v2880
        %v3092 = vunpack.c.l.b16 %v2881
        %v3093 = vunpack.c.l.b16 %v2882
        %v3094 = vunpack.c.l.b16 %v2883
        %v3095 = vpack.c.b16 %v3092, %v3091
        %v3096 = vpack.c.b16 %v3094, %v3093
        %3099 = vmatpush.bf16.msra.mxu0 0
        %3100 = vmatpush.bf16.msra.mxu0 0
        %3101 = vmatpush.bf16.msra.mxu0 0
        %3102 = vmatpush.bf16.msra.mxu0 0
        %3103 = vmatpush.bf16.msra.mxu0 0
        %3104 = vmatpush.bf16.msra.mxu0 0
        %3105 = vmatpush.bf16.msra.mxu0 %v3096
        %3106 = vmatpush.bf16.msra.mxu0 %v3095
        %3107 = vmatmul.bf16.gmra.mxu0 %v2918
        %v3108 = vpop.f32.mrf.mxu0
        %v3109 = vadd.f32 0.0, %v3108
        %v3110 = vpop.f32.mrf.mxu0
        %3111 = vdwg.mxu0
        %v3116 = vunpack.c.l.b16 %v2884
        %v3117 = vunpack.c.l.b16 %v2885
        %v3118 = vunpack.c.l.b16 %v2886
        %v3119 = vunpack.c.l.b16 %v2887
        %v3120 = vpack.c.b16 %v3117, %v3116
        %v3121 = vpack.c.b16 %v3119, %v3118
        %3124 = vmatpush.bf16.msra.mxu0 0
        %3125 = vmatpush.bf16.msra.mxu0 0
        %3126 = vmatpush.bf16.msra.mxu0 0
        %3127 = vmatpush.bf16.msra.mxu0 0
        %3128 = vmatpush.bf16.msra.mxu0 0
        %3129 = vmatpush.bf16.msra.mxu0 0
        %3130 = vmatpush.bf16.msra.mxu0 %v3121
        %3131 = vmatpush.bf16.msra.mxu0 %v3120
        %3132 = vmatmul.bf16.gmra.mxu0 %v2918
        %v3133 = vpop.f32.mrf.mxu0
        %v3134 = vadd.f32 0.0, %v3133
        %v3135 = vpop.f32.mrf.mxu0
        %3136 = vdwg.mxu0
        %v3141 = vunpack.c.l.b16 %v2888
        %v3142 = vunpack.c.l.b16 %v2889
        %v3143 = vunpack.c.l.b16 %v2890
        %v3144 = vunpack.c.l.b16 %v2891
        %v3145 = vpack.c.b16 %v3142, %v3141
        %v3146 = vpack.c.b16 %v3144, %v3143
        %3149 = vmatpush.bf16.msra.mxu0 0
        %3150 = vmatpush.bf16.msra.mxu0 0
        %3151 = vmatpush.bf16.msra.mxu0 0
        %3152 = vmatpush.bf16.msra.mxu0 0
        %3153 = vmatpush.bf16.msra.mxu0 0
        %3154 = vmatpush.bf16.msra.mxu0 0
        %3155 = vmatpush.bf16.msra.mxu0 %v3146
        %3156 = vmatpush.bf16.msra.mxu0 %v3145
        %3157 = vmatmul.bf16.gmra.mxu0 %v2918
        %v3158 = vpop.f32.mrf.mxu0
        %v3159 = vadd.f32 0.0, %v3158
        %v3160 = vpop.f32.mrf.mxu0
        %3161 = vdwg.mxu0
        %v3166 = vunpack.c.l.b16 %v2892
        %v3167 = vunpack.c.l.b16 %v2893
        %v3168 = vunpack.c.l.b16 %v2894
        %v3169 = vunpack.c.l.b16 %v2895
        %v3170 = vpack.c.b16 %v3167, %v3166
        %v3171 = vpack.c.b16 %v3169, %v3168
        %3174 = vmatpush.bf16.msra.mxu0 0
        %3175 = vmatpush.bf16.msra.mxu0 0
        %3176 = vmatpush.bf16.msra.mxu0 0
        %3177 = vmatpush.bf16.msra.mxu0 0
        %3178 = vmatpush.bf16.msra.mxu0 0
        %3179 = vmatpush.bf16.msra.mxu0 0
        %3180 = vmatpush.bf16.msra.mxu0 %v3171
        %3181 = vmatpush.bf16.msra.mxu0 %v3170
        %3182 = vmatmul.bf16.gmra.mxu0 %v2918
        %v3183 = vpop.f32.mrf.mxu0
        %v3184 = vadd.f32 0.0, %v3183
        %v3185 = vpop.f32.mrf.mxu0
        %3186 = vdwg.mxu0
        %v3191 = vunpack.c.l.b16 %v2896
        %v3192 = vunpack.c.l.b16 %v2897
        %v3193 = vunpack.c.l.b16 %v2898
        %v3194 = vunpack.c.l.b16 %v2899
        %v3195 = vpack.c.b16 %v3192, %v3191
        %v3196 = vpack.c.b16 %v3194, %v3193
        %3199 = vmatpush.bf16.msra.mxu0 0
        %3200 = vmatpush.bf16.msra.mxu0 0
        %3201 = vmatpush.bf16.msra.mxu0 0
        %3202 = vmatpush.bf16.msra.mxu0 0
        %3203 = vmatpush.bf16.msra.mxu0 0
        %3204 = vmatpush.bf16.msra.mxu0 0
        %3205 = vmatpush.bf16.msra.mxu0 %v3196
        %3206 = vmatpush.bf16.msra.mxu0 %v3195
        %3207 = vmatmul.bf16.gmra.mxu0 %v2918
        %v3208 = vpop.f32.mrf.mxu0
        %v3209 = vadd.f32 0.0, %v3208
        %v3210 = vpop.f32.mrf.mxu0
        %3211 = vdwg.mxu0
        %v3212 = vpack.c.bf16 %v3008, %v3008
        %v3213 = vpack.c.bf16 %v3009, %v3009
        %v3214 = vpack.c.bf16 %v3010, %v3010
        %v3215 = vpack.c.bf16 %v3011, %v3011
        %v3216 = vpack.c.bf16 %v3034, %v3034
        %v3217 = vpack.c.bf16 %v3059, %v3059
        %v3218 = vpack.c.bf16 %v3084, %v3084
        %v3219 = vpack.c.bf16 %v3109, %v3109
        %v3221 = vsel %vm1678, %v3212, 0
        %v3224 = vsel %vm1678, %v3216, 0
        %3226 = vmatpush.bf16.xpose.msra.mxu0 0
        %3227 = vmatpush.bf16.xpose.msra.mxu0 0
        %3228 = vmatpush.bf16.xpose.msra.mxu0 0
        %3229 = vmatpush.bf16.xpose.msra.mxu0 0
        %3230 = vmatpush.bf16.xpose.msra.mxu0 0
        %3231 = vmatpush.bf16.xpose.msra.mxu0 0
        %3232 = vmatpush.bf16.xpose.msra.mxu0 0
        %3233 = vmatpush.bf16.xpose.msra.mxu0 %v3224
        %3234 = vmatmul.bf16.gmra.mxu0 %v3221
        %v3235 = vpop.f32.mrf.mxu0
        %v3236 = vadd.f32 0.0, %v3235
        %v3237 = vpop.f32.mrf.mxu0
        %3238 = vdwg.mxu0
        %v3240 = vsel %vm1678, %v3213, 0
        %v3243 = vsel %vm1678, %v3217, 0
        %3245 = vmatpush.bf16.xpose.msra.mxu0 0
        %3246 = vmatpush.bf16.xpose.msra.mxu0 0
        %3247 = vmatpush.bf16.xpose.msra.mxu0 0
        %3248 = vmatpush.bf16.xpose.msra.mxu0 0
        %3249 = vmatpush.bf16.xpose.msra.mxu0 0
        %3250 = vmatpush.bf16.xpose.msra.mxu0 0
        %3251 = vmatpush.bf16.xpose.msra.mxu0 0
        %3252 = vmatpush.bf16.xpose.msra.mxu0 %v3243
        %3253 = vmatmul.bf16.gmra.mxu0 %v3240
        %v3254 = vpop.f32.mrf.mxu0
        %v3255 = vadd.f32 0.0, %v3254
        %v3256 = vpop.f32.mrf.mxu0
        %3257 = vdwg.mxu0
        %v3259 = vsel %vm1678, %v3214, 0
        %v3262 = vsel %vm1678, %v3218, 0
        %3264 = vmatpush.bf16.xpose.msra.mxu0 0
        %3265 = vmatpush.bf16.xpose.msra.mxu0 0
        %3266 = vmatpush.bf16.xpose.msra.mxu0 0
        %3267 = vmatpush.bf16.xpose.msra.mxu0 0
        %3268 = vmatpush.bf16.xpose.msra.mxu0 0
        %3269 = vmatpush.bf16.xpose.msra.mxu0 0
        %3270 = vmatpush.bf16.xpose.msra.mxu0 0
        %3271 = vmatpush.bf16.xpose.msra.mxu0 %v3262
        %3272 = vmatmul.bf16.gmra.mxu0 %v3259
        %v3273 = vpop.f32.mrf.mxu0
        %v3274 = vadd.f32 0.0, %v3273
        %v3275 = vpop.f32.mrf.mxu0
        %3276 = vdwg.mxu0
        %v3278 = vsel %vm1678, %v3215, 0
        %v3281 = vsel %vm1678, %v3219, 0
        %3283 = vmatpush.bf16.xpose.msra.mxu0 0
        %3284 = vmatpush.bf16.xpose.msra.mxu0 0
        %3285 = vmatpush.bf16.xpose.msra.mxu0 0
        %3286 = vmatpush.bf16.xpose.msra.mxu0 0
        %3287 = vmatpush.bf16.xpose.msra.mxu0 0
        %3288 = vmatpush.bf16.xpose.msra.mxu0 0
        %3289 = vmatpush.bf16.xpose.msra.mxu0 0
        %3290 = vmatpush.bf16.xpose.msra.mxu0 %v3281
        %3291 = vmatmul.bf16.gmra.mxu0 %v3278
        %v3292 = vpop.f32.mrf.mxu0
        %v3293 = vadd.f32 0.0, %v3292
        %v3294 = vpop.f32.mrf.mxu0
        %3295 = vdwg.mxu0
        %v3296 = vsel %vm1305, %v3236, 1e-06
        %v3297 = vsel %vm1305, %v3255, 1e-06
        %v3298 = vsel %vm1305, %v3274, 1e-06
        %v3299 = vsel %vm1305, %v3293, 1e-06
        %v3300 = vsel %vm1678, %v3296, -inf
        %3301 = vmax.xlane.f32.xlu0 %v3300
        %v3302 = vpop.xlane.xlu0 %3301
        %v3303 = vsel %vm1678, %v3297, -inf
        %3304 = vmax.xlane.f32.xlu0 %v3303
        %v3305 = vpop.xlane.xlu0 %3304
        %v3306 = vsel %vm1678, %v3298, -inf
        %3307 = vmax.xlane.f32.xlu0 %v3306
        %v3308 = vpop.xlane.xlu0 %3307
        %v3309 = vsel %vm1678, %v3299, -inf
        %3310 = vmax.xlane.f32.xlu0 %v3309
        %v3311 = vpop.xlane.xlu0 %3310
        %v3312 = vsub.f32 %v3296, %v3302
        %v3313 = vsub.f32 %v3297, %v3305
        %v3314 = vsub.f32 %v3298, %v3308
        %v3315 = vsub.f32 %v3299, %v3311
        %v3316 = vmul.f32 %v3312, 1.442695
        %v3317 = vpow.pop %v3316
        %v3318 = vmul.f32 %v3313, 1.442695
        %v3319 = vpow.pop %v3318
        %v3320 = vmul.f32 %v3314, 1.442695
        %v3321 = vpow.pop %v3320
        %v3322 = vmul.f32 %v3315, 1.442695
        %v3323 = vpow.pop %v3322
        %v3324 = vsel %vm1678, %v3317, 0.0
        %3325 = vadd.xlane.f32.xlu0 %v3324
        %v3326 = vpop.xlane.xlu0 %3325
        %v3327 = vsel %vm1678, %v3319, 0.0
        %3328 = vadd.xlane.f32.xlu0 %v3327
        %v3329 = vpop.xlane.xlu0 %3328
        %v3330 = vsel %vm1678, %v3321, 0.0
        %3331 = vadd.xlane.f32.xlu0 %v3330
        %v3332 = vpop.xlane.xlu0 %3331
        %v3333 = vsel %vm1678, %v3323, 0.0
        %3334 = vadd.xlane.f32.xlu0 %v3333
        %v3335 = vpop.xlane.xlu0 %3334
        %v3336 = vrcp.pop %v3326
        %v3337 = vrcp.pop %v3329
        %v3338 = vrcp.pop %v3332
        %v3339 = vrcp.pop %v3335
        %v3340 = vmul.f32 %v3317, %v3336
        %v3341 = vmul.f32 %v3319, %v3337
        %v3342 = vmul.f32 %v3321, %v3338
        %v3343 = vmul.f32 %v3323, %v3339
        %v3344 = vpack.c.bf16 %v3340, %v3340
        %v3345 = vpack.c.bf16 %v3341, %v3341
        %v3346 = vpack.c.bf16 %v3342, %v3342
        %v3347 = vpack.c.bf16 %v3343, %v3343
        %v3348 = vpack.c.bf16 %v3134, %v3134
        %v3349 = vpack.c.bf16 %v3159, %v3159
        %v3350 = vpack.c.bf16 %v3184, %v3184
        %v3351 = vpack.c.bf16 %v3209, %v3209
        %v3353 = vsel %vm1678, %v3344, 0
        %v3356 = vsel %vm1814, %v3348, 0
        %3358 = vmatpush.bf16.msra.mxu0 0
        %3359 = vmatpush.bf16.msra.mxu0 0
        %3360 = vmatpush.bf16.msra.mxu0 0
        %3361 = vmatpush.bf16.msra.mxu0 0
        %3362 = vmatpush.bf16.msra.mxu0 0
        %3363 = vmatpush.bf16.msra.mxu0 0
        %3364 = vmatpush.bf16.msra.mxu0 0
        %3365 = vmatpush.bf16.msra.mxu0 %v3356
        %3366 = vmatmul.bf16.gmra.mxu0 %v3353
        %v3367 = vpop.f32.mrf.mxu0
        %v3368 = vadd.f32 0.0, %v3367
        %v3369 = vpop.f32.mrf.mxu0
        %3370 = vdwg.mxu0
        %v3372 = vsel %vm1678, %v3345, 0
        %v3375 = vsel %vm1814, %v3349, 0
        %3377 = vmatpush.bf16.msra.mxu0 0
        %3378 = vmatpush.bf16.msra.mxu0 0
        %3379 = vmatpush.bf16.msra.mxu0 0
        %3380 = vmatpush.bf16.msra.mxu0 0
        %3381 = vmatpush.bf16.msra.mxu0 0
        %3382 = vmatpush.bf16.msra.mxu0 0
        %3383 = vmatpush.bf16.msra.mxu0 0
        %3384 = vmatpush.bf16.msra.mxu0 %v3375
        %3385 = vmatmul.bf16.gmra.mxu0 %v3372
        %v3386 = vpop.f32.mrf.mxu0
        %v3387 = vadd.f32 0.0, %v3386
        %v3388 = vpop.f32.mrf.mxu0
        %3389 = vdwg.mxu0
        %v3391 = vsel %vm1678, %v3346, 0
        %v3394 = vsel %vm1814, %v3350, 0
        %3396 = vmatpush.bf16.msra.mxu0 0
        %3397 = vmatpush.bf16.msra.mxu0 0
        %3398 = vmatpush.bf16.msra.mxu0 0
        %3399 = vmatpush.bf16.msra.mxu0 0
        %3400 = vmatpush.bf16.msra.mxu0 0
        %3401 = vmatpush.bf16.msra.mxu0 0
        %3402 = vmatpush.bf16.msra.mxu0 0
        %3403 = vmatpush.bf16.msra.mxu0 %v3394
        %3404 = vmatmul.bf16.gmra.mxu0 %v3391
        %v3405 = vpop.f32.mrf.mxu0
        %v3406 = vadd.f32 0.0, %v3405
        %v3407 = vpop.f32.mrf.mxu0
        %3408 = vdwg.mxu0
        %v3410 = vsel %vm1678, %v3347, 0
        %v3413 = vsel %vm1814, %v3351, 0
        %3415 = vmatpush.bf16.msra.mxu0 0
        %3416 = vmatpush.bf16.msra.mxu0 0
        %3417 = vmatpush.bf16.msra.mxu0 0
        %3418 = vmatpush.bf16.msra.mxu0 0
        %3419 = vmatpush.bf16.msra.mxu0 0
        %3420 = vmatpush.bf16.msra.mxu0 0
        %3421 = vmatpush.bf16.msra.mxu0 0
        %3422 = vmatpush.bf16.msra.mxu0 %v3413
        %3423 = vmatmul.bf16.gmra.mxu0 %v3410
        %v3424 = vpop.f32.mrf.mxu0
        %v3425 = vadd.f32 0.0, %v3424
        %v3426 = vpop.f32.mrf.mxu0
        %3427 = vdwg.mxu0
        %v3428 = vpack.c.bf16 %v3368, %v3368
        %v3429 = vpack.c.bf16 %v3387, %v3387
        %v3430 = vpack.c.bf16 %v3406, %v3406
        %v3431 = vpack.c.bf16 %v3425, %v3425
        %v3433 = vsel %vm1678, %v3428, 0
        %v3436 = vsel %vm1814, %v2900, 0
        %3438 = vmatpush.bf16.msra.mxu0 0
        %3439 = vmatpush.bf16.msra.mxu0 0
        %3440 = vmatpush.bf16.msra.mxu0 0
        %3441 = vmatpush.bf16.msra.mxu0 0
        %3442 = vmatpush.bf16.msra.mxu0 0
        %3443 = vmatpush.bf16.msra.mxu0 0
        %3444 = vmatpush.bf16.msra.mxu0 0
        %3445 = vmatpush.bf16.msra.mxu0 %v3436
        %3446 = vmatmul.bf16.gmra.mxu0 %v3433
        %v3447 = vpop.f32.mrf.mxu0
        %v3448 = vadd.f32 0.0, %v3447
        %v3449 = vpop.f32.mrf.mxu0
        %3450 = vdwg.mxu0
        %v3452 = vsel %vm1678, %v3429, 0
        %v3455 = vsel %vm1814, %v2901, 0
        %3457 = vmatpush.bf16.msra.mxu0 0
        %3458 = vmatpush.bf16.msra.mxu0 0
        %3459 = vmatpush.bf16.msra.mxu0 0
        %3460 = vmatpush.bf16.msra.mxu0 0
        %3461 = vmatpush.bf16.msra.mxu0 0
        %3462 = vmatpush.bf16.msra.mxu0 0
        %3463 = vmatpush.bf16.msra.mxu0 0
        %3464 = vmatpush.bf16.msra.mxu0 %v3455
        %3465 = vmatmul.bf16.gmra.mxu0 %v3452
        %v3466 = vpop.f32.mrf.mxu0
        %v3467 = vadd.f32 0.0, %v3466
        %v3468 = vpop.f32.mrf.mxu0
        %3469 = vdwg.mxu0
        %v3471 = vsel %vm1678, %v3430, 0
        %v3474 = vsel %vm1814, %v2902, 0
        %3476 = vmatpush.bf16.msra.mxu0 0
        %3477 = vmatpush.bf16.msra.mxu0 0
        %3478 = vmatpush.bf16.msra.mxu0 0
        %3479 = vmatpush.bf16.msra.mxu0 0
        %3480 = vmatpush.bf16.msra.mxu0 0
        %3481 = vmatpush.bf16.msra.mxu0 0
        %3482 = vmatpush.bf16.msra.mxu0 0
        %3483 = vmatpush.bf16.msra.mxu0 %v3474
        %3484 = vmatmul.bf16.gmra.mxu0 %v3471
        %v3485 = vpop.f32.mrf.mxu0
        %v3486 = vadd.f32 0.0, %v3485
        %v3487 = vpop.f32.mrf.mxu0
        %3488 = vdwg.mxu0
        %v3490 = vsel %vm1678, %v3431, 0
        %v3493 = vsel %vm1814, %v2903, 0
        %3495 = vmatpush.bf16.msra.mxu0 0
        %3496 = vmatpush.bf16.msra.mxu0 0
        %3497 = vmatpush.bf16.msra.mxu0 0
        %3498 = vmatpush.bf16.msra.mxu0 0
        %3499 = vmatpush.bf16.msra.mxu0 0
        %3500 = vmatpush.bf16.msra.mxu0 0
        %3501 = vmatpush.bf16.msra.mxu0 0
        %3502 = vmatpush.bf16.msra.mxu0 %v3493
        %3503 = vmatmul.bf16.gmra.mxu0 %v3490
        %v3504 = vpop.f32.mrf.mxu0
        %v3505 = vadd.f32 0.0, %v3504
        %v3506 = vpop.f32.mrf.mxu0
        %3507 = vdwg.mxu0
        %v3508 = vsel %vm1374, %v3448, 0.0
        %v3509 = vsel %vm1374, %v3467, 0.0
        %v3510 = vadd.f32 %v3508, %v3509
        %v3511 = vsel %vm1374, %v3486, 0.0
        %v3512 = vadd.f32 %v3510, %v3511
        %v3513 = vsel %vm1374, %v3505, 0.0
        %v3514 = vadd.f32 %v3512, %v3513
        %v3515 = vld [vmem:[%s55] sm:$0x1]
        %v3516 = vld [vmem:[%s57] sm:$0x1]
        %v3517 = vadd.f32 %v2851, %v3514
        %v3518 = vsel %vm1374, %v3517, 0.0
        %3519 = vadd.xlane.f32.xlu0 %v3518
        %v3520 = vpop.xlane.xlu0 %3519
        %v3521 = vmul.f32 %v3520, %v1987
        %v3522 = vsub.f32 %v3517, %v3521
        %v3523 = vmul.f32 %v3522, %v3522
        %v3524 = vsel %vm1374, %v3523, 0.0
        %3525 = vadd.xlane.f32.xlu0 %v3524
        %v3526 = vpop.xlane.xlu0 %3525
        %v3527 = vmul.f32 %v3526, %v1987
        %v3528 = vadd.f32 %v3527, 1e-05
        %v3529 = vrsqrt.pop %v3528
        %v3530 = vmul.f32 %v3529, %v3528
        %v3531 = vmul.f32 %v3530, %v3529
        %v3532 = vmul.f32 0.5, %v3531
        %v3533 = vsub.f32 1.5, %v3532
        %v3534 = vmul.f32 %v3529, %v3533
        %vm3535 = vweird.f32 %v3528
        %vm3536 = vweird.f32 %v3529
        %vm3537 = vmor %vm3535, %vm3536
        %v3538 = vsel %vm3537, %v3529, %v3534
        %v3539 = vmul.f32 %v3522, %v3538
        %v3541 = vperm.slane %v3515, 0
        %v3543 = vmul.f32 %v3539, %v3541
        %v3545 = vperm.slane %v3516, 0
        %v3547 = vadd.f32 %v3543, %v3545
        %v3548 = vld [vmem:[%s59] sm:$0xf]
        %v3549 = vld [vmem:[%s59 + $0x4] sm:$0xf]
        %v3550 = vld [vmem:[%s59 + $0x8] sm:$0xf]
        %v3551 = vld [vmem:[%s59 + $0xc] sm:$0xf]
        %v3552 = vld [vmem:[%s59 + $0x10] sm:$0xf]
        %v3553 = vld [vmem:[%s59 + $0x14] sm:$0xf]
        %v3554 = vld [vmem:[%s59 + $0x18] sm:$0xf]
        %v3555 = vld [vmem:[%s59 + $0x1c] sm:$0xf]
        %v3556 = vld [vmem:[%s59 + $0x20] sm:$0xf]
        %v3557 = vld [vmem:[%s59 + $0x24] sm:$0xf]
        %v3558 = vld [vmem:[%s59 + $0x28] sm:$0xf]
        %v3559 = vld [vmem:[%s59 + $0x2c] sm:$0xf]
        %v3560 = vld [vmem:[%s59 + $0x30] sm:$0xf]
        %v3561 = vld [vmem:[%s59 + $0x34] sm:$0xf]
        %v3562 = vld [vmem:[%s59 + $0x38] sm:$0xf]
        %v3563 = vld [vmem:[%s59 + $0x3c] sm:$0xf]
        %v3564 = vld [vmem:[%s61] sm:$0xf]
        %v3565 = vld [vmem:[%s61 + $0x4] sm:$0xf]
        %v3566 = vld [vmem:[%s61 + $0x8] sm:$0xf]
        %v3567 = vld [vmem:[%s61 + $0xc] sm:$0xf]
        %v3568 = vld [vmem:[%s61 + $0x10] sm:$0xf]
        %v3569 = vld [vmem:[%s61 + $0x14] sm:$0xf]
        %v3570 = vld [vmem:[%s61 + $0x18] sm:$0xf]
        %v3571 = vld [vmem:[%s61 + $0x1c] sm:$0xf]
        %v3572 = vld [vmem:[%s61 + $0x20] sm:$0xf]
        %v3573 = vld [vmem:[%s61 + $0x24] sm:$0xf]
        %v3574 = vld [vmem:[%s61 + $0x28] sm:$0xf]
        %v3575 = vld [vmem:[%s61 + $0x2c] sm:$0xf]
        %v3576 = vld [vmem:[%s61 + $0x30] sm:$0xf]
        %v3577 = vld [vmem:[%s61 + $0x34] sm:$0xf]
        %v3578 = vld [vmem:[%s61 + $0x38] sm:$0xf]
        %v3579 = vld [vmem:[%s61 + $0x3c] sm:$0xf]
        %v3580 = vld [vmem:[%s63] sm:$0xf]
        %v3581 = vld [vmem:[%s63 + $0x4] sm:$0xf]
        %v3582 = vld [vmem:[%s63 + $0x8] sm:$0xf]
        %v3583 = vld [vmem:[%s63 + $0xc] sm:$0xf]
        %v3584 = vld [vmem:[%s63 + $0x10] sm:$0xf]
        %v3585 = vld [vmem:[%s63 + $0x14] sm:$0xf]
        %v3586 = vld [vmem:[%s63 + $0x18] sm:$0xf]
        %v3587 = vld [vmem:[%s63 + $0x1c] sm:$0xf]
        %v3588 = vld [vmem:[%s63 + $0x20] sm:$0xf]
        %v3589 = vld [vmem:[%s63 + $0x24] sm:$0xf]
        %v3590 = vld [vmem:[%s63 + $0x28] sm:$0xf]
        %v3591 = vld [vmem:[%s63 + $0x2c] sm:$0xf]
        %v3592 = vld [vmem:[%s63 + $0x30] sm:$0xf]
        %v3593 = vld [vmem:[%s63 + $0x34] sm:$0xf]
        %v3594 = vld [vmem:[%s63 + $0x38] sm:$0xf]
        %v3595 = vld [vmem:[%s63 + $0x3c] sm:$0xf]
        %v3596 = vld [vmem:[%s65] sm:$0xf]
        %v3597 = vld [vmem:[%s65 + $0x4] sm:$0xf]
        %v3598 = vld [vmem:[%s65 + $0x8] sm:$0xf]
        %v3599 = vld [vmem:[%s65 + $0xc] sm:$0xf]
        %v3600 = vpack.c.bf16 %v3547, %v3547
        %v3605 = vunpack.c.l.b16 %v3548
        %v3606 = vunpack.c.l.b16 %v3549
        %v3607 = vunpack.c.l.b16 %v3550
        %v3608 = vunpack.c.l.b16 %v3551
        %v3609 = vpack.c.b16 %v3606, %v3605
        %v3610 = vpack.c.b16 %v3608, %v3607
        %v3614 = vsel %vm1374, %v3600, 0
        %3616 = vmatpush.bf16.msra.mxu0 0
        %3617 = vmatpush.bf16.msra.mxu0 0
        %3618 = vmatpush.bf16.msra.mxu0 0
        %3619 = vmatpush.bf16.msra.mxu0 0
        %3620 = vmatpush.bf16.msra.mxu0 0
        %3621 = vmatpush.bf16.msra.mxu0 0
        %3622 = vmatpush.bf16.msra.mxu0 %v3610
        %3623 = vmatpush.bf16.msra.mxu0 %v3609
        %3624 = vmatmul.bf16.gmra.mxu0 %v3614
        %v3625 = vpop.f32.mrf.mxu0
        %v3626 = vadd.f32 0.0, %v3625
        %v3627 = vpop.f32.mrf.mxu0
        %3628 = vdwg.mxu0
        %v3633 = vunpack.c.l.b16 %v3552
        %v3634 = vunpack.c.l.b16 %v3553
        %v3635 = vunpack.c.l.b16 %v3554
        %v3636 = vunpack.c.l.b16 %v3555
        %v3637 = vpack.c.b16 %v3634, %v3633
        %v3638 = vpack.c.b16 %v3636, %v3635
        %3641 = vmatpush.bf16.msra.mxu0 0
        %3642 = vmatpush.bf16.msra.mxu0 0
        %3643 = vmatpush.bf16.msra.mxu0 0
        %3644 = vmatpush.bf16.msra.mxu0 0
        %3645 = vmatpush.bf16.msra.mxu0 0
        %3646 = vmatpush.bf16.msra.mxu0 0
        %3647 = vmatpush.bf16.msra.mxu0 %v3638
        %3648 = vmatpush.bf16.msra.mxu0 %v3637
        %3649 = vmatmul.bf16.gmra.mxu0 %v3614
        %v3650 = vpop.f32.mrf.mxu0
        %v3651 = vadd.f32 0.0, %v3650
        %v3652 = vpop.f32.mrf.mxu0
        %3653 = vdwg.mxu0
        %v3658 = vunpack.c.l.b16 %v3556
        %v3659 = vunpack.c.l.b16 %v3557
        %v3660 = vunpack.c.l.b16 %v3558
        %v3661 = vunpack.c.l.b16 %v3559
        %v3662 = vpack.c.b16 %v3659, %v3658
        %v3663 = vpack.c.b16 %v3661, %v3660
        %3666 = vmatpush.bf16.msra.mxu0 0
        %3667 = vmatpush.bf16.msra.mxu0 0
        %3668 = vmatpush.bf16.msra.mxu0 0
        %3669 = vmatpush.bf16.msra.mxu0 0
        %3670 = vmatpush.bf16.msra.mxu0 0
        %3671 = vmatpush.bf16.msra.mxu0 0
        %3672 = vmatpush.bf16.msra.mxu0 %v3663
        %3673 = vmatpush.bf16.msra.mxu0 %v3662
        %3674 = vmatmul.bf16.gmra.mxu0 %v3614
        %v3675 = vpop.f32.mrf.mxu0
        %v3676 = vadd.f32 0.0, %v3675
        %v3677 = vpop.f32.mrf.mxu0
        %3678 = vdwg.mxu0
        %v3683 = vunpack.c.l.b16 %v3560
        %v3684 = vunpack.c.l.b16 %v3561
        %v3685 = vunpack.c.l.b16 %v3562
        %v3686 = vunpack.c.l.b16 %v3563
        %v3687 = vpack.c.b16 %v3684, %v3683
        %v3688 = vpack.c.b16 %v3686, %v3685
        %3691 = vmatpush.bf16.msra.mxu0 0
        %3692 = vmatpush.bf16.msra.mxu0 0
        %3693 = vmatpush.bf16.msra.mxu0 0
        %3694 = vmatpush.bf16.msra.mxu0 0
        %3695 = vmatpush.bf16.msra.mxu0 0
        %3696 = vmatpush.bf16.msra.mxu0 0
        %3697 = vmatpush.bf16.msra.mxu0 %v3688
        %3698 = vmatpush.bf16.msra.mxu0 %v3687
        %3699 = vmatmul.bf16.gmra.mxu0 %v3614
        %v3700 = vpop.f32.mrf.mxu0
        %v3701 = vadd.f32 0.0, %v3700
        %v3702 = vpop.f32.mrf.mxu0
        %3703 = vdwg.mxu0
        %v3704 = vmul.f32 %v3626, 0.35355338
        %v3705 = vmul.f32 %v3651, 0.35355338
        %v3706 = vmul.f32 %v3676, 0.35355338
        %v3707 = vmul.f32 %v3701, 0.35355338
        %v3712 = vunpack.c.l.b16 %v3564
        %v3713 = vunpack.c.l.b16 %v3565
        %v3714 = vunpack.c.l.b16 %v3566
        %v3715 = vunpack.c.l.b16 %v3567
        %v3716 = vpack.c.b16 %v3713, %v3712
        %v3717 = vpack.c.b16 %v3715, %v3714
        %3720 = vmatpush.bf16.msra.mxu0 0
        %3721 = vmatpush.bf16.msra.mxu0 0
        %3722 = vmatpush.bf16.msra.mxu0 0
        %3723 = vmatpush.bf16.msra.mxu0 0
        %3724 = vmatpush.bf16.msra.mxu0 0
        %3725 = vmatpush.bf16.msra.mxu0 0
        %3726 = vmatpush.bf16.msra.mxu0 %v3717
        %3727 = vmatpush.bf16.msra.mxu0 %v3716
        %3728 = vmatmul.bf16.gmra.mxu0 %v2189
        %v3729 = vpop.f32.mrf.mxu0
        %v3730 = vadd.f32 0.0, %v3729
        %v3731 = vpop.f32.mrf.mxu0
        %3732 = vdwg.mxu0
        %v3737 = vunpack.c.l.b16 %v3568
        %v3738 = vunpack.c.l.b16 %v3569
        %v3739 = vunpack.c.l.b16 %v3570
        %v3740 = vunpack.c.l.b16 %v3571
        %v3741 = vpack.c.b16 %v3738, %v3737
        %v3742 = vpack.c.b16 %v3740, %v3739
        %3745 = vmatpush.bf16.msra.mxu0 0
        %3746 = vmatpush.bf16.msra.mxu0 0
        %3747 = vmatpush.bf16.msra.mxu0 0
        %3748 = vmatpush.bf16.msra.mxu0 0
        %3749 = vmatpush.bf16.msra.mxu0 0
        %3750 = vmatpush.bf16.msra.mxu0 0
        %3751 = vmatpush.bf16.msra.mxu0 %v3742
        %3752 = vmatpush.bf16.msra.mxu0 %v3741
        %3753 = vmatmul.bf16.gmra.mxu0 %v2189
        %v3754 = vpop.f32.mrf.mxu0
        %v3755 = vadd.f32 0.0, %v3754
        %v3756 = vpop.f32.mrf.mxu0
        %3757 = vdwg.mxu0
        %v3762 = vunpack.c.l.b16 %v3572
        %v3763 = vunpack.c.l.b16 %v3573
        %v3764 = vunpack.c.l.b16 %v3574
        %v3765 = vunpack.c.l.b16 %v3575
        %v3766 = vpack.c.b16 %v3763, %v3762
        %v3767 = vpack.c.b16 %v3765, %v3764
        %3770 = vmatpush.bf16.msra.mxu0 0
        %3771 = vmatpush.bf16.msra.mxu0 0
        %3772 = vmatpush.bf16.msra.mxu0 0
        %3773 = vmatpush.bf16.msra.mxu0 0
        %3774 = vmatpush.bf16.msra.mxu0 0
        %3775 = vmatpush.bf16.msra.mxu0 0
        %3776 = vmatpush.bf16.msra.mxu0 %v3767
        %3777 = vmatpush.bf16.msra.mxu0 %v3766
        %3778 = vmatmul.bf16.gmra.mxu0 %v2189
        %v3779 = vpop.f32.mrf.mxu0
        %v3780 = vadd.f32 0.0, %v3779
        %v3781 = vpop.f32.mrf.mxu0
        %3782 = vdwg.mxu0
        %v3787 = vunpack.c.l.b16 %v3576
        %v3788 = vunpack.c.l.b16 %v3577
        %v3789 = vunpack.c.l.b16 %v3578
        %v3790 = vunpack.c.l.b16 %v3579
        %v3791 = vpack.c.b16 %v3788, %v3787
        %v3792 = vpack.c.b16 %v3790, %v3789
        %3795 = vmatpush.bf16.msra.mxu0 0
        %3796 = vmatpush.bf16.msra.mxu0 0
        %3797 = vmatpush.bf16.msra.mxu0 0
        %3798 = vmatpush.bf16.msra.mxu0 0
        %3799 = vmatpush.bf16.msra.mxu0 0
        %3800 = vmatpush.bf16.msra.mxu0 0
        %3801 = vmatpush.bf16.msra.mxu0 %v3792
        %3802 = vmatpush.bf16.msra.mxu0 %v3791
        %3803 = vmatmul.bf16.gmra.mxu0 %v2189
        %v3804 = vpop.f32.mrf.mxu0
        %v3805 = vadd.f32 0.0, %v3804
        %v3806 = vpop.f32.mrf.mxu0
        %3807 = vdwg.mxu0
        %v3812 = vunpack.c.l.b16 %v3580
        %v3813 = vunpack.c.l.b16 %v3581
        %v3814 = vunpack.c.l.b16 %v3582
        %v3815 = vunpack.c.l.b16 %v3583
        %v3816 = vpack.c.b16 %v3813, %v3812
        %v3817 = vpack.c.b16 %v3815, %v3814
        %3820 = vmatpush.bf16.msra.mxu0 0
        %3821 = vmatpush.bf16.msra.mxu0 0
        %3822 = vmatpush.bf16.msra.mxu0 0
        %3823 = vmatpush.bf16.msra.mxu0 0
        %3824 = vmatpush.bf16.msra.mxu0 0
        %3825 = vmatpush.bf16.msra.mxu0 0
        %3826 = vmatpush.bf16.msra.mxu0 %v3817
        %3827 = vmatpush.bf16.msra.mxu0 %v3816
        %3828 = vmatmul.bf16.gmra.mxu0 %v2189
        %v3829 = vpop.f32.mrf.mxu0
        %v3830 = vadd.f32 0.0, %v3829
        %v3831 = vpop.f32.mrf.mxu0
        %3832 = vdwg.mxu0
        %v3837 = vunpack.c.l.b16 %v3584
        %v3838 = vunpack.c.l.b16 %v3585
        %v3839 = vunpack.c.l.b16 %v3586
        %v3840 = vunpack.c.l.b16 %v3587
        %v3841 = vpack.c.b16 %v3838, %v3837
        %v3842 = vpack.c.b16 %v3840, %v3839
        %3845 = vmatpush.bf16.msra.mxu0 0
        %3846 = vmatpush.bf16.msra.mxu0 0
        %3847 = vmatpush.bf16.msra.mxu0 0
        %3848 = vmatpush.bf16.msra.mxu0 0
        %3849 = vmatpush.bf16.msra.mxu0 0
        %3850 = vmatpush.bf16.msra.mxu0 0
        %3851 = vmatpush.bf16.msra.mxu0 %v3842
        %3852 = vmatpush.bf16.msra.mxu0 %v3841
        %3853 = vmatmul.bf16.gmra.mxu0 %v2189
        %v3854 = vpop.f32.mrf.mxu0
        %v3855 = vadd.f32 0.0, %v3854
        %v3856 = vpop.f32.mrf.mxu0
        %3857 = vdwg.mxu0
        %v3862 = vunpack.c.l.b16 %v3588
        %v3863 = vunpack.c.l.b16 %v3589
        %v3864 = vunpack.c.l.b16 %v3590
        %v3865 = vunpack.c.l.b16 %v3591
        %v3866 = vpack.c.b16 %v3863, %v3862
        %v3867 = vpack.c.b16 %v3865, %v3864
        %3870 = vmatpush.bf16.msra.mxu0 0
        %3871 = vmatpush.bf16.msra.mxu0 0
        %3872 = vmatpush.bf16.msra.mxu0 0
        %3873 = vmatpush.bf16.msra.mxu0 0
        %3874 = vmatpush.bf16.msra.mxu0 0
        %3875 = vmatpush.bf16.msra.mxu0 0
        %3876 = vmatpush.bf16.msra.mxu0 %v3867
        %3877 = vmatpush.bf16.msra.mxu0 %v3866
        %3878 = vmatmul.bf16.gmra.mxu0 %v2189
        %v3879 = vpop.f32.mrf.mxu0
        %v3880 = vadd.f32 0.0, %v3879
        %v3881 = vpop.f32.mrf.mxu0
        %3882 = vdwg.mxu0
        %v3887 = vunpack.c.l.b16 %v3592
        %v3888 = vunpack.c.l.b16 %v3593
        %v3889 = vunpack.c.l.b16 %v3594
        %v3890 = vunpack.c.l.b16 %v3595
        %v3891 = vpack.c.b16 %v3888, %v3887
        %v3892 = vpack.c.b16 %v3890, %v3889
        %3895 = vmatpush.bf16.msra.mxu0 0
        %3896 = vmatpush.bf16.msra.mxu0 0
        %3897 = vmatpush.bf16.msra.mxu0 0
        %3898 = vmatpush.bf16.msra.mxu0 0
        %3899 = vmatpush.bf16.msra.mxu0 0
        %3900 = vmatpush.bf16.msra.mxu0 0
        %3901 = vmatpush.bf16.msra.mxu0 %v3892
        %3902 = vmatpush.bf16.msra.mxu0 %v3891
        %3903 = vmatmul.bf16.gmra.mxu0 %v2189
        %v3904 = vpop.f32.mrf.mxu0
        %v3905 = vadd.f32 0.0, %v3904
        %v3906 = vpop.f32.mrf.mxu0
        %3907 = vdwg.mxu0
        %v3908 = vpack.c.bf16 %v3704, %v3704
        %v3909 = vpack.c.bf16 %v3705, %v3705
        %v3910 = vpack.c.bf16 %v3706, %v3706
        %v3911 = vpack.c.bf16 %v3707, %v3707
        %v3912 = vpack.c.bf16 %v3730, %v3730
        %v3913 = vpack.c.bf16 %v3755, %v3755
        %v3914 = vpack.c.bf16 %v3780, %v3780
        %v3915 = vpack.c.bf16 %v3805, %v3805
        %v3917 = vsel %vm1678, %v3908, 0
        %v3920 = vsel %vm1678, %v3912, 0
        %3922 = vmatpush.bf16.xpose.msra.mxu0 0
        %3923 = vmatpush.bf16.xpose.msra.mxu0 0
        %3924 = vmatpush.bf16.xpose.msra.mxu0 0
        %3925 = vmatpush.bf16.xpose.msra.mxu0 0
        %3926 = vmatpush.bf16.xpose.msra.mxu0 0
        %3927 = vmatpush.bf16.xpose.msra.mxu0 0
        %3928 = vmatpush.bf16.xpose.msra.mxu0 0
        %3929 = vmatpush.bf16.xpose.msra.mxu0 %v3920
        %3930 = vmatmul.bf16.gmra.mxu0 %v3917
        %v3931 = vpop.f32.mrf.mxu0
        %v3932 = vadd.f32 0.0, %v3931
        %v3933 = vpop.f32.mrf.mxu0
        %3934 = vdwg.mxu0
        %v3936 = vsel %vm1678, %v3909, 0
        %v3939 = vsel %vm1678, %v3913, 0
        %3941 = vmatpush.bf16.xpose.msra.mxu0 0
        %3942 = vmatpush.bf16.xpose.msra.mxu0 0
        %3943 = vmatpush.bf16.xpose.msra.mxu0 0
        %3944 = vmatpush.bf16.xpose.msra.mxu0 0
        %3945 = vmatpush.bf16.xpose.msra.mxu0 0
        %3946 = vmatpush.bf16.xpose.msra.mxu0 0
        %3947 = vmatpush.bf16.xpose.msra.mxu0 0
        %3948 = vmatpush.bf16.xpose.msra.mxu0 %v3939
        %3949 = vmatmul.bf16.gmra.mxu0 %v3936
        %v3950 = vpop.f32.mrf.mxu0
        %v3951 = vadd.f32 0.0, %v3950
        %v3952 = vpop.f32.mrf.mxu0
        %3953 = vdwg.mxu0
        %v3955 = vsel %vm1678, %v3910, 0
        %v3958 = vsel %vm1678, %v3914, 0
        %3960 = vmatpush.bf16.xpose.msra.mxu0 0
        %3961 = vmatpush.bf16.xpose.msra.mxu0 0
        %3962 = vmatpush.bf16.xpose.msra.mxu0 0
        %3963 = vmatpush.bf16.xpose.msra.mxu0 0
        %3964 = vmatpush.bf16.xpose.msra.mxu0 0
        %3965 = vmatpush.bf16.xpose.msra.mxu0 0
        %3966 = vmatpush.bf16.xpose.msra.mxu0 0
        %3967 = vmatpush.bf16.xpose.msra.mxu0 %v3958
        %3968 = vmatmul.bf16.gmra.mxu0 %v3955
        %v3969 = vpop.f32.mrf.mxu0
        %v3970 = vadd.f32 0.0, %v3969
        %v3971 = vpop.f32.mrf.mxu0
        %3972 = vdwg.mxu0
        %v3974 = vsel %vm1678, %v3911, 0
        %v3977 = vsel %vm1678, %v3915, 0
        %3979 = vmatpush.bf16.xpose.msra.mxu0 0
        %3980 = vmatpush.bf16.xpose.msra.mxu0 0
        %3981 = vmatpush.bf16.xpose.msra.mxu0 0
        %3982 = vmatpush.bf16.xpose.msra.mxu0 0
        %3983 = vmatpush.bf16.xpose.msra.mxu0 0
        %3984 = vmatpush.bf16.xpose.msra.mxu0 0
        %3985 = vmatpush.bf16.xpose.msra.mxu0 0
        %3986 = vmatpush.bf16.xpose.msra.mxu0 %v3977
        %3987 = vmatmul.bf16.gmra.mxu0 %v3974
        %v3988 = vpop.f32.mrf.mxu0
        %v3989 = vadd.f32 0.0, %v3988
        %v3990 = vpop.f32.mrf.mxu0
        %3991 = vdwg.mxu0
        %v3992 = vsel %vm1308, %v3932, 1e-06
        %v3993 = vsel %vm1308, %v3951, 1e-06
        %v3994 = vsel %vm1308, %v3970, 1e-06
        %v3995 = vsel %vm1308, %v3989, 1e-06
        %v3996 = vsel %vm1678, %v3992, -inf
        %3997 = vmax.xlane.f32.xlu0 %v3996
        %v3998 = vpop.xlane.xlu0 %3997
        %v3999 = vsel %vm1678, %v3993, -inf
        %4000 = vmax.xlane.f32.xlu0 %v3999
        %v4001 = vpop.xlane.xlu0 %4000
        %v4002 = vsel %vm1678, %v3994, -inf
        %4003 = vmax.xlane.f32.xlu0 %v4002
        %v4004 = vpop.xlane.xlu0 %4003
        %v4005 = vsel %vm1678, %v3995, -inf
        %4006 = vmax.xlane.f32.xlu0 %v4005
        %v4007 = vpop.xlane.xlu0 %4006
        %v4008 = vsub.f32 %v3992, %v3998
        %v4009 = vsub.f32 %v3993, %v4001
        %v4010 = vsub.f32 %v3994, %v4004
        %v4011 = vsub.f32 %v3995, %v4007
        %v4012 = vmul.f32 %v4008, 1.442695
        %v4013 = vpow.pop %v4012
        %v4014 = vmul.f32 %v4009, 1.442695
        %v4015 = vpow.pop %v4014
        %v4016 = vmul.f32 %v4010, 1.442695
        %v4017 = vpow.pop %v4016
        %v4018 = vmul.f32 %v4011, 1.442695
        %v4019 = vpow.pop %v4018
        %v4020 = vsel %vm1678, %v4013, 0.0
        %4021 = vadd.xlane.f32.xlu0 %v4020
        %v4022 = vpop.xlane.xlu0 %4021
        %v4023 = vsel %vm1678, %v4015, 0.0
        %4024 = vadd.xlane.f32.xlu0 %v4023
        %v4025 = vpop.xlane.xlu0 %4024
        %v4026 = vsel %vm1678, %v4017, 0.0
        %4027 = vadd.xlane.f32.xlu0 %v4026
        %v4028 = vpop.xlane.xlu0 %4027
        %v4029 = vsel %vm1678, %v4019, 0.0
        %4030 = vadd.xlane.f32.xlu0 %v4029
        %v4031 = vpop.xlane.xlu0 %4030
        %v4032 = vrcp.pop %v4022
        %v4033 = vrcp.pop %v4025
        %v4034 = vrcp.pop %v4028
        %v4035 = vrcp.pop %v4031
        %v4036 = vmul.f32 %v4013, %v4032
        %v4037 = vmul.f32 %v4015, %v4033
        %v4038 = vmul.f32 %v4017, %v4034
        %v4039 = vmul.f32 %v4019, %v4035
        %v4040 = vpack.c.bf16 %v4036, %v4036
        %v4041 = vpack.c.bf16 %v4037, %v4037
        %v4042 = vpack.c.bf16 %v4038, %v4038
        %v4043 = vpack.c.bf16 %v4039, %v4039
        %v4044 = vpack.c.bf16 %v3830, %v3830
        %v4045 = vpack.c.bf16 %v3855, %v3855
        %v4046 = vpack.c.bf16 %v3880, %v3880
        %v4047 = vpack.c.bf16 %v3905, %v3905
        %v4049 = vsel %vm1678, %v4040, 0
        %v4052 = vsel %vm1814, %v4044, 0
        %4054 = vmatpush.bf16.msra.mxu0 0
        %4055 = vmatpush.bf16.msra.mxu0 0
        %4056 = vmatpush.bf16.msra.mxu0 0
        %4057 = vmatpush.bf16.msra.mxu0 0
        %4058 = vmatpush.bf16.msra.mxu0 0
        %4059 = vmatpush.bf16.msra.mxu0 0
        %4060 = vmatpush.bf16.msra.mxu0 0
        %4061 = vmatpush.bf16.msra.mxu0 %v4052
        %4062 = vmatmul.bf16.gmra.mxu0 %v4049
        %v4063 = vpop.f32.mrf.mxu0
        %v4064 = vadd.f32 0.0, %v4063
        %v4065 = vpop.f32.mrf.mxu0
        %4066 = vdwg.mxu0
        %v4068 = vsel %vm1678, %v4041, 0
        %v4071 = vsel %vm1814, %v4045, 0
        %4073 = vmatpush.bf16.msra.mxu0 0
        %4074 = vmatpush.bf16.msra.mxu0 0
        %4075 = vmatpush.bf16.msra.mxu0 0
        %4076 = vmatpush.bf16.msra.mxu0 0
        %4077 = vmatpush.bf16.msra.mxu0 0
        %4078 = vmatpush.bf16.msra.mxu0 0
        %4079 = vmatpush.bf16.msra.mxu0 0
        %4080 = vmatpush.bf16.msra.mxu0 %v4071
        %4081 = vmatmul.bf16.gmra.mxu0 %v4068
        %v4082 = vpop.f32.mrf.mxu0
        %v4083 = vadd.f32 0.0, %v4082
        %v4084 = vpop.f32.mrf.mxu0
        %4085 = vdwg.mxu0
        %v4087 = vsel %vm1678, %v4042, 0
        %v4090 = vsel %vm1814, %v4046, 0
        %4092 = vmatpush.bf16.msra.mxu0 0
        %4093 = vmatpush.bf16.msra.mxu0 0
        %4094 = vmatpush.bf16.msra.mxu0 0
        %4095 = vmatpush.bf16.msra.mxu0 0
        %4096 = vmatpush.bf16.msra.mxu0 0
        %4097 = vmatpush.bf16.msra.mxu0 0
        %4098 = vmatpush.bf16.msra.mxu0 0
        %4099 = vmatpush.bf16.msra.mxu0 %v4090
        %4100 = vmatmul.bf16.gmra.mxu0 %v4087
        %v4101 = vpop.f32.mrf.mxu0
        %v4102 = vadd.f32 0.0, %v4101
        %v4103 = vpop.f32.mrf.mxu0
        %4104 = vdwg.mxu0
        %v4106 = vsel %vm1678, %v4043, 0
        %v4109 = vsel %vm1814, %v4047, 0
        %4111 = vmatpush.bf16.msra.mxu0 0
        %4112 = vmatpush.bf16.msra.mxu0 0
        %4113 = vmatpush.bf16.msra.mxu0 0
        %4114 = vmatpush.bf16.msra.mxu0 0
        %4115 = vmatpush.bf16.msra.mxu0 0
        %4116 = vmatpush.bf16.msra.mxu0 0
        %4117 = vmatpush.bf16.msra.mxu0 0
        %4118 = vmatpush.bf16.msra.mxu0 %v4109
        %4119 = vmatmul.bf16.gmra.mxu0 %v4106
        %v4120 = vpop.f32.mrf.mxu0
        %v4121 = vadd.f32 0.0, %v4120
        %v4122 = vpop.f32.mrf.mxu0
        %4123 = vdwg.mxu0
        %v4124 = vpack.c.bf16 %v4064, %v4064
        %v4125 = vpack.c.bf16 %v4083, %v4083
        %v4126 = vpack.c.bf16 %v4102, %v4102
        %v4127 = vpack.c.bf16 %v4121, %v4121
        %v4129 = vsel %vm1678, %v4124, 0
        %v4132 = vsel %vm1814, %v3596, 0
        %4134 = vmatpush.bf16.msra.mxu0 0
        %4135 = vmatpush.bf16.msra.mxu0 0
        %4136 = vmatpush.bf16.msra.mxu0 0
        %4137 = vmatpush.bf16.msra.mxu0 0
        %4138 = vmatpush.bf16.msra.mxu0 0
        %4139 = vmatpush.bf16.msra.mxu0 0
        %4140 = vmatpush.bf16.msra.mxu0 0
        %4141 = vmatpush.bf16.msra.mxu0 %v4132
        %4142 = vmatmul.bf16.gmra.mxu0 %v4129
        %v4143 = vpop.f32.mrf.mxu0
        %v4144 = vadd.f32 0.0, %v4143
        %v4145 = vpop.f32.mrf.mxu0
        %4146 = vdwg.mxu0
        %v4148 = vsel %vm1678, %v4125, 0
        %v4151 = vsel %vm1814, %v3597, 0
        %4153 = vmatpush.bf16.msra.mxu0 0
        %4154 = vmatpush.bf16.msra.mxu0 0
        %4155 = vmatpush.bf16.msra.mxu0 0
        %4156 = vmatpush.bf16.msra.mxu0 0
        %4157 = vmatpush.bf16.msra.mxu0 0
        %4158 = vmatpush.bf16.msra.mxu0 0
        %4159 = vmatpush.bf16.msra.mxu0 0
        %4160 = vmatpush.bf16.msra.mxu0 %v4151
        %4161 = vmatmul.bf16.gmra.mxu0 %v4148
        %v4162 = vpop.f32.mrf.mxu0
        %v4163 = vadd.f32 0.0, %v4162
        %v4164 = vpop.f32.mrf.mxu0
        %4165 = vdwg.mxu0
        %v4167 = vsel %vm1678, %v4126, 0
        %v4170 = vsel %vm1814, %v3598, 0
        %4172 = vmatpush.bf16.msra.mxu0 0
        %4173 = vmatpush.bf16.msra.mxu0 0
        %4174 = vmatpush.bf16.msra.mxu0 0
        %4175 = vmatpush.bf16.msra.mxu0 0
        %4176 = vmatpush.bf16.msra.mxu0 0
        %4177 = vmatpush.bf16.msra.mxu0 0
        %4178 = vmatpush.bf16.msra.mxu0 0
        %4179 = vmatpush.bf16.msra.mxu0 %v4170
        %4180 = vmatmul.bf16.gmra.mxu0 %v4167
        %v4181 = vpop.f32.mrf.mxu0
        %v4182 = vadd.f32 0.0, %v4181
        %v4183 = vpop.f32.mrf.mxu0
        %4184 = vdwg.mxu0
        %v4186 = vsel %vm1678, %v4127, 0
        %v4189 = vsel %vm1814, %v3599, 0
        %4191 = vmatpush.bf16.msra.mxu0 0
        %4192 = vmatpush.bf16.msra.mxu0 0
        %4193 = vmatpush.bf16.msra.mxu0 0
        %4194 = vmatpush.bf16.msra.mxu0 0
        %4195 = vmatpush.bf16.msra.mxu0 0
        %4196 = vmatpush.bf16.msra.mxu0 0
        %4197 = vmatpush.bf16.msra.mxu0 0
        %4198 = vmatpush.bf16.msra.mxu0 %v4189
        %4199 = vmatmul.bf16.gmra.mxu0 %v4186
        %v4200 = vpop.f32.mrf.mxu0
        %v4201 = vadd.f32 0.0, %v4200
        %v4202 = vpop.f32.mrf.mxu0
        %4203 = vdwg.mxu0
        %v4204 = vsel %vm1374, %v4144, 0.0
        %v4205 = vsel %vm1374, %v4163, 0.0
        %v4206 = vadd.f32 %v4204, %v4205
        %v4207 = vsel %vm1374, %v4182, 0.0
        %v4208 = vadd.f32 %v4206, %v4207
        %v4209 = vsel %vm1374, %v4201, 0.0
        %v4210 = vadd.f32 %v4208, %v4209
        %v4211 = vld [vmem:[%s67] sm:$0x1]
        %v4212 = vld [vmem:[%s69] sm:$0x1]
        %v4213 = vadd.f32 %v3547, %v4210
        %v4214 = vsel %vm1374, %v4213, 0.0
        %4215 = vadd.xlane.f32.xlu0 %v4214
        %v4216 = vpop.xlane.xlu0 %4215
        %v4217 = vmul.f32 %v4216, %v1987
        %v4218 = vsub.f32 %v4213, %v4217
        %v4219 = vmul.f32 %v4218, %v4218
        %v4220 = vsel %vm1374, %v4219, 0.0
        %4221 = vadd.xlane.f32.xlu0 %v4220
        %v4222 = vpop.xlane.xlu0 %4221
        %v4223 = vmul.f32 %v4222, %v1987
        %v4224 = vadd.f32 %v4223, 1e-05
        %v4225 = vrsqrt.pop %v4224
        %v4226 = vmul.f32 %v4225, %v4224
        %v4227 = vmul.f32 %v4226, %v4225
        %v4228 = vmul.f32 0.5, %v4227
        %v4229 = vsub.f32 1.5, %v4228
        %v4230 = vmul.f32 %v4225, %v4229
        %vm4231 = vweird.f32 %v4224
        %vm4232 = vweird.f32 %v4225
        %vm4233 = vmor %vm4231, %vm4232
        %v4234 = vsel %vm4233, %v4225, %v4230
        %v4235 = vmul.f32 %v4218, %v4234
        %v4237 = vperm.slane %v4211, 0
        %v4239 = vmul.f32 %v4235, %v4237
        %v4241 = vperm.slane %v4212, 0
        %v4243 = vadd.f32 %v4239, %v4241
        %v4244 = vld [vmem:[%s71] sm:$0xf]
        %v4245 = vld [vmem:[%s71 + $0x4] sm:$0xf]
        %v4246 = vld [vmem:[%s71 + $0x8] sm:$0xf]
        %v4247 = vld [vmem:[%s71 + $0xc] sm:$0xf]
        %v4248 = vld [vmem:[%s71 + $0x10] sm:$0xf]
        %v4249 = vld [vmem:[%s71 + $0x14] sm:$0xf]
        %v4250 = vld [vmem:[%s71 + $0x18] sm:$0xf]
        %v4251 = vld [vmem:[%s71 + $0x1c] sm:$0xf]
        %v4252 = vpack.c.bf16 %v4243, %v4243
        %v4253 = vld [vmem:[%s73] sm:$0x1]
        %v4255 = vperm.slane %v4253, 0
        %v4265 = vunpack.c.l.b16 %v4244
        %v4266 = vunpack.c.l.b16 %v4245
        %v4267 = vunpack.c.l.b16 %v4246
        %v4268 = vunpack.c.l.b16 %v4247
        %v4269 = vunpack.c.l.b16 %v4248
        %v4270 = vunpack.c.l.b16 %v4249
        %v4271 = vunpack.c.l.b16 %v4250
        %v4272 = vunpack.c.l.b16 %v4251
        %v4273 = vpack.c.b16 %v4266, %v4265
        %v4274 = vpack.c.b16 %v4268, %v4267
        %v4275 = vpack.c.b16 %v4270, %v4269
        %v4276 = vpack.c.b16 %v4272, %v4271
        %v4278 = vsel %vm1374, %v4252, 0
        %v4281 = vsel %vm1374, %v4273, 0
        %v4284 = vsel %vm1374, %v4274, 0
        %v4287 = vsel %vm1374, %v4275, 0
        %v4290 = vsel %vm1374, %v4276, 0
        %4292 = vmatpush.bf16.xpose.msra.mxu0 0
        %4293 = vmatpush.bf16.xpose.msra.mxu0 0
        %4294 = vmatpush.bf16.xpose.msra.mxu0 0
        %4295 = vmatpush.bf16.xpose.msra.mxu0 0
        %4296 = vmatpush.bf16.xpose.msra.mxu0 %v4290
        %4297 = vmatpush.bf16.xpose.msra.mxu0 %v4287
        %4298 = vmatpush.bf16.xpose.msra.mxu0 %v4284
        %4299 = vmatpush.bf16.xpose.msra.mxu0 %v4281
        %4300 = vmatmul.bf16.gmra.mxu0 %v4278
        %v4301 = vpop.f32.mrf.mxu0
        %v4302 = vadd.f32 %v4255, %v4301
        %v4303 = vpop.f32.mrf.mxu0
        %4304 = vdwg.mxu0
        %v4305 = vmax.f32 %v4302, 0.0
        %v4306 = vld [vmem:[%s75] sm:$0xf]
        %v4307 = vld [vmem:[%s75 + $0x4] sm:$0xf]
        %v4308 = vld [vmem:[%s75 + $0x8] sm:$0xf]
        %v4309 = vld [vmem:[%s75 + $0xc] sm:$0xf]
        %v4310 = vpack.c.bf16 %v4305, %v4305
        %v4311 = vld [vmem:[%s77] sm:$0x1]
        %v4313 = vperm.slane %v4311, 0
        %v4319 = vunpack.c.l.b16 %v4306
        %v4320 = vunpack.c.l.b16 %v4307
        %v4321 = vunpack.c.l.b16 %v4308
        %v4322 = vunpack.c.l.b16 %v4309
        %v4323 = vpack.c.b16 %v4320, %v4319
        %v4324 = vpack.c.b16 %v4322, %v4321
        %v4326 = vsel %vm2796, %v4310, 0
        %v4329 = vsel %vm2796, %v4323, 0
        %v4332 = vsel %vm2796, %v4324, 0
        %4334 = vmatpush.bf16.xpose.msra.mxu0 0
        %4335 = vmatpush.bf16.xpose.msra.mxu0 0
        %4336 = vmatpush.bf16.xpose.msra.mxu0 0
        %4337 = vmatpush.bf16.xpose.msra.mxu0 0
        %4338 = vmatpush.bf16.xpose.msra.mxu0 0
        %4339 = vmatpush.bf16.xpose.msra.mxu0 0
        %4340 = vmatpush.bf16.xpose.msra.mxu0 %v4332
        %4341 = vmatpush.bf16.xpose.msra.mxu0 %v4329
        %4342 = vmatmul.bf16.gmra.mxu0 %v4326
        %v4343 = vpop.f32.mrf.mxu0
        %v4344 = vadd.f32 %v4313, %v4343
        %v4345 = vpop.f32.mrf.mxu0
        %4346 = vdwg.mxu0
        %v4347 = vld [vmem:[%s79] sm:$0x1]
        %v4348 = vld [vmem:[%s81] sm:$0x1]
        %v4349 = vadd.f32 %v4243, %v4344
        %v4350 = vsel %vm1374, %v4349, 0.0
        %4351 = vadd.xlane.f32.xlu0 %v4350
        %v4352 = vpop.xlane.xlu0 %4351
        %v4353 = vmul.f32 %v4352, %v1987
        %v4354 = vsub.f32 %v4349, %v4353
        %v4355 = vmul.f32 %v4354, %v4354
        %v4356 = vsel %vm1374, %v4355, 0.0
        %4357 = vadd.xlane.f32.xlu0 %v4356
        %v4358 = vpop.xlane.xlu0 %4357
        %v4359 = vmul.f32 %v4358, %v1987
        %v4360 = vadd.f32 %v4359, 1e-05
        %v4361 = vrsqrt.pop %v4360
        %v4362 = vmul.f32 %v4361, %v4360
        %v4363 = vmul.f32 %v4362, %v4361
        %v4364 = vmul.f32 0.5, %v4363
        %v4365 = vsub.f32 1.5, %v4364
        %v4366 = vmul.f32 %v4361, %v4365
        %vm4367 = vweird.f32 %v4360
        %vm4368 = vweird.f32 %v4361
        %vm4369 = vmor %vm4367, %vm4368
        %v4370 = vsel %vm4369, %v4361, %v4366
        %v4371 = vmul.f32 %v4354, %v4370
        %v4373 = vperm.slane %v4347, 0
        %v4375 = vmul.f32 %v4371, %v4373
        %v4377 = vperm.slane %v4348, 0
        %v4379 = vadd.f32 %v4375, %v4377
        %v4380 = vld [vmem:[%s83] sm:$0xf]
        %v4381 = vld [vmem:[%s83 + $0x4] sm:$0xf]
        %v4382 = vld [vmem:[%s83 + $0x8] sm:$0xf]
        %v4383 = vld [vmem:[%s83 + $0xc] sm:$0xf]
        %v4384 = vld [vmem:[%s83 + $0x10] sm:$0xf]
        %v4385 = vld [vmem:[%s83 + $0x14] sm:$0xf]
        %v4386 = vld [vmem:[%s83 + $0x18] sm:$0xf]
        %v4387 = vld [vmem:[%s83 + $0x1c] sm:$0xf]
        %v4388 = vld [vmem:[%s83 + $0x20] sm:$0xf]
        %v4389 = vld [vmem:[%s83 + $0x24] sm:$0xf]
        %v4390 = vld [vmem:[%s83 + $0x28] sm:$0xf]
        %v4391 = vld [vmem:[%s83 + $0x2c] sm:$0xf]
        %v4392 = vld [vmem:[%s83 + $0x30] sm:$0xf]
        %v4393 = vld [vmem:[%s83 + $0x34] sm:$0xf]
        %v4394 = vld [vmem:[%s83 + $0x38] sm:$0xf]
        %v4395 = vld [vmem:[%s83 + $0x3c] sm:$0xf]
        %v4396 = vpack.c.bf16 %v4379, %v4379
        %v4397 = vld [vmem:[%s85] sm:$0x1]
        %v4399 = vperm.slane %v4397, 0
        %v4417 = vunpack.c.l.b16 %v4380
        %v4418 = vunpack.c.l.b16 %v4381
        %v4419 = vunpack.c.l.b16 %v4382
        %v4420 = vunpack.c.l.b16 %v4383
        %v4421 = vunpack.c.l.b16 %v4384
        %v4422 = vunpack.c.l.b16 %v4385
        %v4423 = vunpack.c.l.b16 %v4386
        %v4424 = vunpack.c.l.b16 %v4387
        %v4425 = vunpack.c.l.b16 %v4388
        %v4426 = vunpack.c.l.b16 %v4389
        %v4427 = vunpack.c.l.b16 %v4390
        %v4428 = vunpack.c.l.b16 %v4391
        %v4429 = vunpack.c.l.b16 %v4392
        %v4430 = vunpack.c.l.b16 %v4393
        %v4431 = vunpack.c.l.b16 %v4394
        %v4432 = vunpack.c.l.b16 %v4395
        %v4433 = vpack.c.b16 %v4418, %v4417
        %v4434 = vpack.c.b16 %v4420, %v4419
        %v4435 = vpack.c.b16 %v4422, %v4421
        %v4436 = vpack.c.b16 %v4424, %v4423
        %v4437 = vpack.c.b16 %v4426, %v4425
        %v4438 = vpack.c.b16 %v4428, %v4427
        %v4439 = vpack.c.b16 %v4430, %v4429
        %v4440 = vpack.c.b16 %v4432, %v4431
        %v4442 = vsel %vm1374, %v4396, 0
        %v4445 = vsel %vm1374, %v4433, 0
        %v4448 = vsel %vm1374, %v4434, 0
        %v4451 = vsel %vm1374, %v4435, 0
        %v4454 = vsel %vm1374, %v4436, 0
        %v4457 = vsel %vm1374, %v4437, 0
        %v4460 = vsel %vm1374, %v4438, 0
        %v4463 = vsel %vm1374, %v4439, 0
        %v4466 = vsel %vm1374, %v4440, 0
        %4468 = vmatpush.bf16.xpose.msra.mxu0 %v4466
        %4469 = vmatpush.bf16.xpose.msra.mxu0 %v4463
        %4470 = vmatpush.bf16.xpose.msra.mxu0 %v4460
        %4471 = vmatpush.bf16.xpose.msra.mxu0 %v4457
        %4472 = vmatpush.bf16.xpose.msra.mxu0 %v4454
        %4473 = vmatpush.bf16.xpose.msra.mxu0 %v4451
        %4474 = vmatpush.bf16.xpose.msra.mxu0 %v4448
        %4475 = vmatpush.bf16.xpose.msra.mxu0 %v4445
        %4476 = vmatmul.bf16.gmra.mxu0 %v4442
        %v4477 = vpop.f32.mrf.mxu0
        %v4478 = vadd.f32 %v4399, %v4477
        %v4479 = vpop.f32.mrf.mxu0
        %4480 = vdwg.mxu0
        %4481 = vst [vmem:[%s1246] sm:$0xff] %v4478
        %s4482 = sand.u32 %s988, 1
        %s4483 = scalar_lea.sflag [#allocation7], %s4482
        %s4484 = sand.u32 %s988, 1
        %s4485 = smul.addr %s4484, 8
        %s4486 = scalar_lea.vmem [#allocation6], %s4485
        // Predicated region
        $region185: #{tpu_custom_call.1} parent=183 // pred_check
          %p4487 = pneg %p998
        $region186: #{tpu_custom_call.1} parent=183 // pred_check_branch
          %4489 = sbr.rel (%p4487) target = $region188
        $region187: #{tpu_custom_call.1} parent=183 // pred_region
          %4491 = vsyncadd %s4483, 0
          %s4492 = smul.addr %s114, 8
          %s4493 = scalar_lea.hbm %s87, %s4492
          %s4495 = sshll.u32 %s4486, 4
          %s4496 = int_to_ptr.vmem [resolvable:$true] %s4495
          %s4497 = sshll.u32 %s4493, 4
          %s4498 = int_to_ptr.hbm [resolvable:$true] %s4497
          %4500 = dma.vmem_to_hbm [thread:$0]  %s4496, 128, %s4498, %s4483
        $region188: #{tpu_custom_call.1} parent=183 // pred_fallthru
          _
      $region184: #{tpu_custom_call.1} parent=5 // pred_fallthru
        _
      %p4501 = scmp.le.s32.totalorder 2, %s109
      // Predicated region
      $region189: #{tpu_custom_call.1} parent=5 // pred_check
        %p4502 = pneg %p4501
      $region190: #{tpu_custom_call.1} parent=5 // pred_check_branch
        %4504 = sbr.rel (%p4502) target = $region192
      $region191: #{tpu_custom_call.1} parent=5 // pred_region
        %s4505 = ssub.s32 %s109, 2
        // Predicated region
        $region193: #{tpu_custom_call.1} parent=191 // pred_check
          %p4506 = pneg %p1004
        $region194: #{tpu_custom_call.1} parent=191 // pred_check_branch
          %4508 = sbr.rel (%p4506) target = $region196
        $region195: #{tpu_custom_call.1} parent=191 // pred_region
          %s4509 = sand.u32 %s989, 1
          %s4510 = scalar_lea.sflag [#allocation7], %s4509
          %s4511 = sand.u32 %s989, 1
          %s4512 = smul.addr %s4511, 8
          %s4513 = scalar_lea.vmem [#allocation6], %s4512
          %4515 = dma.done %s4510, 128
        $region196: #{tpu_custom_call.1} parent=191 // pred_fallthru
          _
      $region192: #{tpu_custom_call.1} parent=5 // pred_fallthru
        _
    $region6: #{tpu_custom_call.1} parent=1 // loop_footer
      %s113 = sadd.s32 1, %s109
    $region7: #{tpu_custom_call.1} parent=1 // loop_footer_branch
      %108 = sbr.rel target = $region3
    $region8: #{tpu_custom_call.1} parent=1 // loop_exit
      _
    %4516 = vsyncpa [#allocation7], 1
    %s4517 = scalar_lea.sflag [#allocation7], 1
    %4518 = vsyncpa %s4517, 1

</llo_original>
